<compile_context>
chip_gen: v7x
topology: tpu7x:2x2x1
jax: 0.10.0
libtpu: 0.0.40
codegen_flags: <defaults>
</compile_context>

<pallas_src>
import functools

import jax
import jax.numpy as jnp
from jax.experimental import pallas as pl
from jax.experimental.pallas import tpu as pltpu


# ------------------------------ fused kernel ------------------------------- #

def _fused_stack_lstm_kernel(seq_len, batch, num_layers, hid, stack_size, *refs):
    T, B, L, H = seq_len, batch, num_layers, hid

    ops_ref = refs[0]                                   # SMEM (T, B) int32
    emb_ref = refs[1]                                   # VMEM (T*B, emb), row = t*B + b
    lstm_refs = refs[2:2 + 3 * L]                       # per layer: wihT (in_l,4H), whhT (H,4H), bias (1,4H)
    base = 2 + 3 * L
    wfT_ref, bf_ref, inith_ref, initc_ref = refs[base:base + 4]
    out_ref = refs[base + 4]                            # VMEM (B*T, V)
    hstack_ref, cstack_ref, hseq_ref = refs[base + 5:base + 8]

    # ---- stack init (parity with torch.zeros + initial hidden/cell at depth 0) ----
    hstack_ref[...] = jnp.zeros_like(hstack_ref)
    cstack_ref[...] = jnp.zeros_like(cstack_ref)
    hstack_ref[0:1, :, :] = jnp.broadcast_to(inith_ref[...].reshape(1, 1, H), (1, B * L, H))
    cstack_ref[0:1, :, :] = jnp.broadcast_to(initc_ref[...].reshape(1, 1, H), (1, B * L, H))

    # ---- weights as values (tiny; hoisted out of the recurrent loop) ----
    wihT = [lstm_refs[3 * l][...] for l in range(L)]
    whhT = [lstm_refs[3 * l + 1][...] for l in range(L)]
    bias = [lstm_refs[3 * l + 2][...] for l in range(L)]

    # ---- layer-0 input projection for ALL timesteps: one MXU matmul, off the serial chain ----
    ih0_all = jnp.dot(emb_ref[...], wihT[0],
                      preferred_element_type=jnp.float32) + bias[0]          # (T*B, 4H)

    # per-batch stack pointers live on the scalar unit, carried through the unrolled loop
    pos = [0 for _ in range(B)]

    for t in range(T):                                  # static unroll: small T, full scheduler visibility
        # ---- gather current stack heads (data-dependent depth, per batch) ----
        h_prev, c_prev = [], []
        for l in range(L):
            h_prev.append(jnp.concatenate(
                [hstack_ref[pl.ds(pos[b], 1), b * L + l:b * L + l + 1, :].reshape(1, H)
                 for b in range(B)], axis=0))           # (B, H)
            c_prev.append(jnp.concatenate(
                [cstack_ref[pl.ds(pos[b], 1), b * L + l:b * L + l + 1, :].reshape(1, H)
                 for b in range(B)], axis=0))           # (B, H)

        # ---- multi-layer LSTM cell ----
        new_h, new_c = [], []
        layer_in = None
        for l in range(L):
            if l == 0:
                gates = (ih0_all[t * B:(t + 1) * B, :]
                         + jnp.dot(h_prev[0], whhT[0], preferred_element_type=jnp.float32))
            else:
                gates = (jnp.dot(layer_in, wihT[l], preferred_element_type=jnp.float32)
                         + jnp.dot(h_prev[l], whhT[l], preferred_element_type=jnp.float32)
                         + bias[l])
            sig = jax.nn.sigmoid(gates)                 # whole-vreg EUP pass
            tnh = jnp.tanh(gates)
            i_g = sig[:, 0 * H:1 * H]
            f_g = sig[:, 1 * H:2 * H]
            g_g = tnh[:, 2 * H:3 * H]
            o_g = sig[:, 3 * H:4 * H]
            c_n = f_g * c_prev[l] + i_g * g_g
            h_n = o_g * jnp.tanh(c_n)
            new_h.append(h_n)
            new_c.append(c_n)
            layer_in = h_n                              # next layer consumes this layer's hidden

        # ---- push at pos+1, advance pointer by op, emit last-layer hidden at new head ----
        for b in range(B):
            wp = jnp.minimum(pos[b] + 1, stack_size)    # explicit clip: no HW bounds check on VMEM
            for l in range(L):
                hstack_ref[pl.ds(wp, 1), b * L + l:b * L + l + 1, :] = new_h[l][b:b + 1].reshape(1, 1, H)
                cstack_ref[pl.ds(wp, 1), b * L + l:b * L + l + 1, :] = new_c[l][b:b + 1].reshape(1, 1, H)
            p_new = jnp.clip(pos[b] + ops_ref[t, b], 0, stack_size)
            pos[b] = p_new
            ret = hstack_ref[pl.ds(p_new, 1), b * L + (L - 1):b * L + L, :]   # (1,1,H) last layer
            row = b * T + t                              # torch stack(dim=1).view(B*T, -1) row order
            hseq_ref[row:row + 1, :] = ret.reshape(1, H)

    # ---- final Linear + LogSoftmax over vocab ----
    logits = (jnp.dot(hseq_ref[...], wfT_ref[...], preferred_element_type=jnp.float32)
              + bf_ref[...])
    m = jnp.max(logits, axis=-1, keepdims=True)
    lse = m + jnp.log(jnp.sum(jnp.exp(logits - m), axis=-1, keepdims=True))
    out_ref[...] = logits - lse


# --------------------------- params & forward ------------------------------ #

def init_params(key, emb_dim, hid_dim, vocab_size, num_layers=2):
    keys = jax.random.split(key, 5 + 4 * num_layers)
    k = iter(range(len(keys)))
    params = {}
    # nn.Embedding default init: N(0, 1)
    params["emb"] = jax.random.normal(keys[next(k)], (vocab_size, emb_dim), jnp.float32)
    bound = 1.0 / float(hid_dim) ** 0.5
    lstm = []
    for l in range(num_layers):
        in_l = emb_dim if l == 0 else hid_dim
        w_ih = jax.random.uniform(keys[next(k)], (4 * hid_dim, in_l), jnp.float32, -bound, bound)
        w_hh = jax.random.uniform(keys[next(k)], (4 * hid_dim, hid_dim), jnp.float32, -bound, bound)
        b_ih = jax.random.uniform(keys[next(k)], (4 * hid_dim,), jnp.float32, -bound, bound)
        b_hh = jax.random.uniform(keys[next(k)], (4 * hid_dim,), jnp.float32, -bound, bound)
        lstm.append((w_ih.T, w_hh.T, (b_ih + b_hh)[None, :]))
    params["lstm"] = lstm
    # nn.Linear(hid_dim, vocab_size) default init: U(-1/sqrt(hid), 1/sqrt(hid))
    w_f = jax.random.uniform(keys[next(k)], (vocab_size, hid_dim), jnp.float32, -bound, bound)
    b_f = jax.random.uniform(keys[next(k)], (vocab_size,), jnp.float32, -bound, bound)
    params["final_wT"] = w_f.T
    params["final_b"] = b_f[None, :]
    # torch.rand((hidden_size,)) initial stack entries (kept 2-D for TPU friendliness)
    params["init_h"] = jax.random.uniform(keys[next(k)], (1, hid_dim), jnp.float32)
    params["init_c"] = jax.random.uniform(keys[next(k)], (1, hid_dim), jnp.float32)
    return params


def batched_toy_stack_forward(params, inputs, ops, stack_size, num_layers=2):
    seq_len, batch = inputs.shape
    hid = params["init_h"].shape[-1]
    emb_dim = params["emb"].shape[1]
    vocab = params["final_wT"].shape[1]

    # one XLA gather for the embedding table; everything else lives in the fused kernel
    word_emb = jnp.take(params["emb"], inputs, axis=0)            # (T, B, E)
    emb_flat = word_emb.reshape(seq_len * batch, emb_dim)          # row = t*B + b
    step_ops = ops[1:].astype(jnp.int32)                           # torch uses ops[1:]

    args = [step_ops, emb_flat]
    for (wihT, whhT, bias) in params["lstm"]:
        args += [wihT, whhT, bias]
    args += [params["final_wT"], params["final_b"], params["init_h"], params["init_c"]]

    kernel = functools.partial(_fused_stack_lstm_kernel,
                               seq_len, batch, num_layers, hid, stack_size)
    smem = pl.BlockSpec(memory_space=pltpu.MemorySpace.SMEM)
    vmem = pl.BlockSpec(memory_space=pltpu.MemorySpace.VMEM)
    return pl.pallas_call(
        kernel,
        out_shape=jax.ShapeDtypeStruct((batch * seq_len, vocab), jnp.float32),
        in_specs=[smem] + [vmem] * (len(args) - 1),
        out_specs=vmem,
        scratch_shapes=[
            pltpu.VMEM((stack_size + 1, batch * num_layers, hid), jnp.float32),   # hidden stack
            pltpu.VMEM((stack_size + 1, batch * num_layers, hid), jnp.float32),   # cell stack
            pltpu.VMEM((batch * seq_len, hid), jnp.float32),                      # collected hidden rows
        ],
        compiler_params=pltpu.CompilerParams(vmem_limit_bytes=4 * 1024 * 1024),
    )(*args)


# --------------------------- pure-JAX reference ----------------------------- #

def reference_forward(params, inputs, ops, stack_size, num_layers=2):
    seq_len, batch = inputs.shape
    hid = params["init_h"].shape[-1]
    hp = jax.lax.Precision.HIGHEST
    word_emb = jnp.take(params["emb"], inputs, axis=0)
    hstack = jnp.zeros((stack_size + 1, batch, num_layers, hid), jnp.float32)
    cstack = jnp.zeros_like(hstack)
    hstack = hstack.at[0].set(jnp.broadcast_to(params["init_h"].reshape(1, 1, hid),
                                               (batch, num_layers, hid)))
    cstack = cstack.at[0].set(jnp.broadcast_to(params["init_c"].reshape(1, 1, hid),
                                               (batch, num_layers, hid)))
    pos = jnp.zeros((batch,), jnp.int32)
    bidx = jnp.arange(batch)
    outs = []
    for t in range(seq_len):
        x = word_emb[t]
        h_cur = hstack[pos, bidx]
        c_cur = cstack[pos, bidx]
        layer_in = x
        nh, nc = [], []
        for l, (wihT, whhT, bias) in enumerate(params["lstm"]):
            gates = (jnp.dot(layer_in, wihT, precision=hp)
                     + jnp.dot(h_cur[:, l, :], whhT, precision=hp) + bias)
            i_g = jax.nn.sigmoid(gates[:, 0 * hid:1 * hid])
            f_g = jax.nn.sigmoid(gates[:, 1 * hid:2 * hid])
            g_g = jnp.tanh(gates[:, 2 * hid:3 * hid])
            o_g = jax.nn.sigmoid(gates[:, 3 * hid:4 * hid])
            c_n = f_g * c_cur[:, l, :] + i_g * g_g
            h_n = o_g * jnp.tanh(c_n)
            nh.append(h_n)
            nc.append(c_n)
            layer_in = h_n
        next_h = jnp.stack(nh, axis=1)
        next_c = jnp.stack(nc, axis=1)
        wp = jnp.minimum(pos + 1, stack_size)
        hstack = hstack.at[wp, bidx].set(next_h)
        cstack = cstack.at[wp, bidx].set(next_c)
        pos = jnp.clip(pos + ops[t + 1], 0, stack_size)
        outs.append(hstack[pos, bidx][:, -1, :])
    hiddens = jnp.stack(outs, axis=1).reshape(batch * seq_len, hid)
    logits = jnp.dot(hiddens, params["final_wT"], precision=hp) + params["final_b"]
    return jax.nn.log_softmax(logits, axis=-1)


# --------------------------------- main ------------------------------------ #

if __name__ == "__main__":
    emb_dim, hid_dim, vocab_size = 16, 32, 16
    seq_len, batch, stack_size, num_layers = 8, 2, 16, 2

    key = jax.random.PRNGKey(0)
    pkey, ikey = jax.random.split(key)
    params = init_params(pkey, emb_dim, hid_dim, vocab_size, num_layers)

    inputs = jax.random.randint(ikey, (seq_len, batch), 0, vocab_size, dtype=jnp.int32)
    # deterministic stack ops keeping the stack pointer within [0, stack_size]
    op_col = jnp.array([0, 1, 1, 1, -1, 1, 0, 1, -1], dtype=jnp.int32)   # (seq_len + 1,)
    ops = jnp.tile(op_col[:, None], (1, batch))                          # (seq_len + 1, batch)

    fwd = jax.jit(functools.partial(batched_toy_stack_forward,
                                    stack_size=stack_size, num_layers=num_layers))
    out = fwd(params, inputs, ops)
    jax.block_until_ready(out)

    assert out.shape == (seq_len * batch, vocab_size)
    assert bool(jnp.all(jnp.isfinite(out)))

    ref = reference_forward(params, inputs, ops, stack_size, num_layers)
    max_err = float(jnp.max(jnp.abs(out - ref)))
    assert max_err < 2e-2, f"mismatch vs pure-JAX reference: {max_err}"

    print("KERNEL_OK")
</pallas_src>

<mosaic_0001>
module attributes {stable_mosaic.version = 11 : i64} {
  func.func @_fused_stack_lstm_kernel(%arg0: memref<8x2xi32, #tpu.memory_space<smem>>, %arg1: memref<16x16xf32, #tpu.memory_space<vmem>>, %arg2: memref<16x128xf32, #tpu.memory_space<vmem>>, %arg3: memref<32x128xf32, #tpu.memory_space<vmem>>, %arg4: memref<1x128xf32, #tpu.memory_space<vmem>>, %arg5: memref<32x128xf32, #tpu.memory_space<vmem>>, %arg6: memref<32x128xf32, #tpu.memory_space<vmem>>, %arg7: memref<1x128xf32, #tpu.memory_space<vmem>>, %arg8: memref<32x16xf32, #tpu.memory_space<vmem>>, %arg9: memref<1x16xf32, #tpu.memory_space<vmem>>, %arg10: memref<1x32xf32, #tpu.memory_space<vmem>>, %arg11: memref<1x32xf32, #tpu.memory_space<vmem>>, %arg12: memref<16x16xf32, #tpu.memory_space<vmem>>, %arg13: memref<17x4x32xf32, #tpu.memory_space<vmem>>, %arg14: memref<17x4x32xf32, #tpu.memory_space<vmem>>, %arg15: memref<16x32xf32, #tpu.memory_space<vmem>>) attributes {dimension_semantics = [], scalar_prefetch = 0 : i64, scratch_operands = 3 : i64, tpu.core_type = #tpu.core_type<tc>} {
    %cst = arith.constant 0.000000e+00 : f32
    %0 = vector.broadcast %cst : f32 to vector<17x4x32xf32>
    %c0 = arith.constant 0 : index
    %c0_0 = arith.constant 0 : index
    %c0_1 = arith.constant 0 : index
    %1 = vector.load %arg13[%c0, %c0_0, %c0_1] : memref<17x4x32xf32, #tpu.memory_space<vmem>>, vector<17x4x32xf32>
    tpu.vector_store %arg13[%c0, %c0_0, %c0_1], %0 {strides = array<i32>} : memref<17x4x32xf32, #tpu.memory_space<vmem>>, vector<17x4x32xf32>,
    %cst_2 = arith.constant 0.000000e+00 : f32
    %2 = vector.broadcast %cst_2 : f32 to vector<17x4x32xf32>
    %c0_3 = arith.constant 0 : index
    %c0_4 = arith.constant 0 : index
    %c0_5 = arith.constant 0 : index
    %3 = vector.load %arg14[%c0_3, %c0_4, %c0_5] : memref<17x4x32xf32, #tpu.memory_space<vmem>>, vector<17x4x32xf32>
    tpu.vector_store %arg14[%c0_3, %c0_4, %c0_5], %2 {strides = array<i32>} : memref<17x4x32xf32, #tpu.memory_space<vmem>>, vector<17x4x32xf32>,
    %c0_6 = arith.constant 0 : index
    %c0_7 = arith.constant 0 : index
    %4 = vector.load %arg10[%c0_6, %c0_7] : memref<1x32xf32, #tpu.memory_space<vmem>>, vector<1x32xf32>
    %5 = vector.shape_cast %4 : vector<1x32xf32> to vector<1x1x32xf32>
    %6 = vector.shape_cast %5 : vector<1x1x32xf32> to vector<1x1x32xf32>
    %7 = vector.broadcast %6 : vector<1x1x32xf32> to vector<1x4x32xf32>
    %c0_8 = arith.constant 0 : index
    %c0_9 = arith.constant 0 : index
    %c0_10 = arith.constant 0 : index
    %8 = vector.load %arg13[%c0_8, %c0_9, %c0_10] : memref<17x4x32xf32, #tpu.memory_space<vmem>>, vector<1x4x32xf32>
    tpu.vector_store %arg13[%c0_8, %c0_9, %c0_10], %7 {strides = array<i32>} : memref<17x4x32xf32, #tpu.memory_space<vmem>>, vector<1x4x32xf32>,
    %c0_11 = arith.constant 0 : index
    %c0_12 = arith.constant 0 : index
    %9 = vector.load %arg11[%c0_11, %c0_12] : memref<1x32xf32, #tpu.memory_space<vmem>>, vector<1x32xf32>
    %10 = vector.shape_cast %9 : vector<1x32xf32> to vector<1x1x32xf32>
    %11 = vector.shape_cast %10 : vector<1x1x32xf32> to vector<1x1x32xf32>
    %12 = vector.broadcast %11 : vector<1x1x32xf32> to vector<1x4x32xf32>
    %c0_13 = arith.constant 0 : index
    %c0_14 = arith.constant 0 : index
    %c0_15 = arith.constant 0 : index
    %13 = vector.load %arg14[%c0_13, %c0_14, %c0_15] : memref<17x4x32xf32, #tpu.memory_space<vmem>>, vector<1x4x32xf32>
    tpu.vector_store %arg14[%c0_13, %c0_14, %c0_15], %12 {strides = array<i32>} : memref<17x4x32xf32, #tpu.memory_space<vmem>>, vector<1x4x32xf32>,
    %c0_16 = arith.constant 0 : index
    %c0_17 = arith.constant 0 : index
    %14 = vector.load %arg2[%c0_16, %c0_17] : memref<16x128xf32, #tpu.memory_space<vmem>>, vector<16x128xf32>
    %c0_18 = arith.constant 0 : index
    %c0_19 = arith.constant 0 : index
    %15 = vector.load %arg5[%c0_18, %c0_19] : memref<32x128xf32, #tpu.memory_space<vmem>>, vector<32x128xf32>
    %c0_20 = arith.constant 0 : index
    %c0_21 = arith.constant 0 : index
    %16 = vector.load %arg3[%c0_20, %c0_21] : memref<32x128xf32, #tpu.memory_space<vmem>>, vector<32x128xf32>
    %c0_22 = arith.constant 0 : index
    %c0_23 = arith.constant 0 : index
    %17 = vector.load %arg6[%c0_22, %c0_23] : memref<32x128xf32, #tpu.memory_space<vmem>>, vector<32x128xf32>
    %c0_24 = arith.constant 0 : index
    %c0_25 = arith.constant 0 : index
    %18 = vector.load %arg4[%c0_24, %c0_25] : memref<1x128xf32, #tpu.memory_space<vmem>>, vector<1x128xf32>
    %c0_26 = arith.constant 0 : index
    %c0_27 = arith.constant 0 : index
    %19 = vector.load %arg7[%c0_26, %c0_27] : memref<1x128xf32, #tpu.memory_space<vmem>>, vector<1x128xf32>
    %c0_28 = arith.constant 0 : index
    %c0_29 = arith.constant 0 : index
    %20 = vector.load %arg1[%c0_28, %c0_29] : memref<16x16xf32, #tpu.memory_space<vmem>>, vector<16x16xf32>
    %cst_30 = arith.constant dense<0.000000e+00> : vector<16x128xf32>
    %21 = tpu.matmul %20, %14, %cst_30 {dimension_numbers = #tpu.dot_dimension_numbers<[1], [0], [0], [1], [0, 0, 1, 1], [], []>} : vector<16x16xf32>, vector<16x128xf32>, vector<16x128xf32> -> vector<16x128xf32>
    %22 = vector.broadcast %18 : vector<1x128xf32> to vector<16x128xf32>
    %23 = arith.addf %21, %22 : vector<16x128xf32>
    %c0_31 = arith.constant 0 : index
    %c0_32 = arith.constant 0 : index
    %c0_33 = arith.constant 0 : index
    %24 = vector.load %arg13[%c0_31, %c0_32, %c0_33] : memref<17x4x32xf32, #tpu.memory_space<vmem>>, vector<1x1x32xf32>
    %25 = vector.shape_cast %24 : vector<1x1x32xf32> to vector<1x32xf32>
    %c0_34 = arith.constant 0 : index
    %c2 = arith.constant 2 : index
    %c0_35 = arith.constant 0 : index
    %26 = vector.load %arg13[%c0_34, %c2, %c0_35] : memref<17x4x32xf32, #tpu.memory_space<vmem>>, vector<1x1x32xf32>
    %27 = vector.shape_cast %26 : vector<1x1x32xf32> to vector<1x32xf32>
    %28 = tpu.concatenate %25, %27 in 0 : vector<1x32xf32>, vector<1x32xf32> -> vector<2x32xf32>
    %c0_36 = arith.constant 0 : index
    %c0_37 = arith.constant 0 : index
    %c0_38 = arith.constant 0 : index
    %29 = vector.load %arg14[%c0_36, %c0_37, %c0_38] : memref<17x4x32xf32, #tpu.memory_space<vmem>>, vector<1x1x32xf32>
    %30 = vector.shape_cast %29 : vector<1x1x32xf32> to vector<1x32xf32>
    %c0_39 = arith.constant 0 : index
    %c2_40 = arith.constant 2 : index
    %c0_41 = arith.constant 0 : index
    %31 = vector.load %arg14[%c0_39, %c2_40, %c0_41] : memref<17x4x32xf32, #tpu.memory_space<vmem>>, vector<1x1x32xf32>
    %32 = vector.shape_cast %31 : vector<1x1x32xf32> to vector<1x32xf32>
    %33 = tpu.concatenate %30, %32 in 0 : vector<1x32xf32>, vector<1x32xf32> -> vector<2x32xf32>
    %c0_42 = arith.constant 0 : index
    %c1 = arith.constant 1 : index
    %c0_43 = arith.constant 0 : index
    %34 = vector.load %arg13[%c0_42, %c1, %c0_43] : memref<17x4x32xf32, #tpu.memory_space<vmem>>, vector<1x1x32xf32>
    %35 = vector.shape_cast %34 : vector<1x1x32xf32> to vector<1x32xf32>
    %c0_44 = arith.constant 0 : index
    %c3 = arith.constant 3 : index
    %c0_45 = arith.constant 0 : index
    %36 = vector.load %arg13[%c0_44, %c3, %c0_45] : memref<17x4x32xf32, #tpu.memory_space<vmem>>, vector<1x1x32xf32>
    %37 = vector.shape_cast %36 : vector<1x1x32xf32> to vector<1x32xf32>
    %38 = tpu.concatenate %35, %37 in 0 : vector<1x32xf32>, vector<1x32xf32> -> vector<2x32xf32>
    %c0_46 = arith.constant 0 : index
    %c1_47 = arith.constant 1 : index
    %c0_48 = arith.constant 0 : index
    %39 = vector.load %arg14[%c0_46, %c1_47, %c0_48] : memref<17x4x32xf32, #tpu.memory_space<vmem>>, vector<1x1x32xf32>
    %40 = vector.shape_cast %39 : vector<1x1x32xf32> to vector<1x32xf32>
    %c0_49 = arith.constant 0 : index
    %c3_50 = arith.constant 3 : index
    %c0_51 = arith.constant 0 : index
    %41 = vector.load %arg14[%c0_49, %c3_50, %c0_51] : memref<17x4x32xf32, #tpu.memory_space<vmem>>, vector<1x1x32xf32>
    %42 = vector.shape_cast %41 : vector<1x1x32xf32> to vector<1x32xf32>
    %43 = tpu.concatenate %40, %42 in 0 : vector<1x32xf32>, vector<1x32xf32> -> vector<2x32xf32>
    %44 = vector.extract_strided_slice %23 {offsets = [0, 0], sizes = [2, 128], strides = [1, 1]} : vector<16x128xf32> to vector<2x128xf32>
    %cst_52 = arith.constant dense<0.000000e+00> : vector<2x128xf32>
    %45 = tpu.matmul %28, %16, %cst_52 {dimension_numbers = #tpu.dot_dimension_numbers<[1], [0], [0], [1], [0, 0, 1, 1], [], []>} : vector<2x32xf32>, vector<32x128xf32>, vector<2x128xf32> -> vector<2x128xf32>
    %46 = arith.addf %44, %45 : vector<2x128xf32>
    %47 = arith.negf %46 : vector<2x128xf32>
    %48 = math.exp %47 : vector<2x128xf32>
    %cst_53 = arith.constant 1.000000e+00 : f32
    %49 = vector.broadcast %cst_53 : f32 to vector<2x128xf32>
    %50 = arith.addf %49, %48 : vector<2x128xf32>
    %51 = arith.divf %49, %50 : vector<2x128xf32>
    %52 = math.tanh %46 : vector<2x128xf32>
    %53 = vector.extract_strided_slice %51 {offsets = [0, 0], sizes = [2, 32], strides = [1, 1]} : vector<2x128xf32> to vector<2x32xf32>
    %54 = vector.extract_strided_slice %51 {offsets = [0, 32], sizes = [2, 32], strides = [1, 1]} : vector<2x128xf32> to vector<2x32xf32>
    %55 = vector.extract_strided_slice %52 {offsets = [0, 64], sizes = [2, 32], strides = [1, 1]} : vector<2x128xf32> to vector<2x32xf32>
    %56 = vector.extract_strided_slice %51 {offsets = [0, 96], sizes = [2, 32], strides = [1, 1]} : vector<2x128xf32> to vector<2x32xf32>
    %57 = arith.mulf %54, %33 : vector<2x32xf32>
    %58 = arith.mulf %53, %55 : vector<2x32xf32>
    %59 = arith.addf %57, %58 : vector<2x32xf32>
    %60 = math.tanh %59 : vector<2x32xf32>
    %61 = arith.mulf %56, %60 : vector<2x32xf32>
    %cst_54 = arith.constant dense<0.000000e+00> : vector<2x128xf32>
    %62 = tpu.matmul %61, %15, %cst_54 {dimension_numbers = #tpu.dot_dimension_numbers<[1], [0], [0], [1], [0, 0, 1, 1], [], []>} : vector<2x32xf32>, vector<32x128xf32>, vector<2x128xf32> -> vector<2x128xf32>
    %cst_55 = arith.constant dense<0.000000e+00> : vector<2x128xf32>
    %63 = tpu.matmul %38, %17, %cst_55 {dimension_numbers = #tpu.dot_dimension_numbers<[1], [0], [0], [1], [0, 0, 1, 1], [], []>} : vector<2x32xf32>, vector<32x128xf32>, vector<2x128xf32> -> vector<2x128xf32>
    %64 = arith.addf %62, %63 : vector<2x128xf32>
    %65 = vector.broadcast %19 : vector<1x128xf32> to vector<2x128xf32>
    %66 = arith.addf %64, %65 : vector<2x128xf32>
    %67 = arith.negf %66 : vector<2x128xf32>
    %68 = math.exp %67 : vector<2x128xf32>
    %cst_56 = arith.constant 1.000000e+00 : f32
    %69 = vector.broadcast %cst_56 : f32 to vector<2x128xf32>
    %70 = arith.addf %69, %68 : vector<2x128xf32>
    %71 = arith.divf %69, %70 : vector<2x128xf32>
    %72 = math.tanh %66 : vector<2x128xf32>
    %73 = vector.extract_strided_slice %71 {offsets = [0, 0], sizes = [2, 32], strides = [1, 1]} : vector<2x128xf32> to vector<2x32xf32>
    %74 = vector.extract_strided_slice %71 {offsets = [0, 32], sizes = [2, 32], strides = [1, 1]} : vector<2x128xf32> to vector<2x32xf32>
    %75 = vector.extract_strided_slice %72 {offsets = [0, 64], sizes = [2, 32], strides = [1, 1]} : vector<2x128xf32> to vector<2x32xf32>
    %76 = vector.extract_strided_slice %71 {offsets = [0, 96], sizes = [2, 32], strides = [1, 1]} : vector<2x128xf32> to vector<2x32xf32>
    %77 = arith.mulf %74, %43 : vector<2x32xf32>
    %78 = arith.mulf %73, %75 : vector<2x32xf32>
    %79 = arith.addf %77, %78 : vector<2x32xf32>
    %80 = math.tanh %79 : vector<2x32xf32>
    %81 = arith.mulf %76, %80 : vector<2x32xf32>
    %c1_i32 = arith.constant 1 : i32
    %c16_i32 = arith.constant 16 : i32
    %82 = arith.minsi %c1_i32, %c16_i32 : i32
    %83 = vector.extract_strided_slice %61 {offsets = [0, 0], sizes = [1, 32], strides = [1, 1]} : vector<2x32xf32> to vector<1x32xf32>
    %84 = vector.shape_cast %83 : vector<1x32xf32> to vector<1x1x32xf32>
    %85 = arith.index_cast %82 : i32 to index
    %c0_57 = arith.constant 0 : index
    %c0_58 = arith.constant 0 : index
    %86 = vector.load %arg13[%85, %c0_57, %c0_58] : memref<17x4x32xf32, #tpu.memory_space<vmem>>, vector<1x1x32xf32>
    tpu.vector_store %arg13[%85, %c0_57, %c0_58], %84 {strides = array<i32>} : memref<17x4x32xf32, #tpu.memory_space<vmem>>, vector<1x1x32xf32>,
    %87 = vector.extract_strided_slice %59 {offsets = [0, 0], sizes = [1, 32], strides = [1, 1]} : vector<2x32xf32> to vector<1x32xf32>
    %88 = vector.shape_cast %87 : vector<1x32xf32> to vector<1x1x32xf32>
    %89 = arith.index_cast %82 : i32 to index
    %c0_59 = arith.constant 0 : index
    %c0_60 = arith.constant 0 : index
    %90 = vector.load %arg14[%89, %c0_59, %c0_60] : memref<17x4x32xf32, #tpu.memory_space<vmem>>, vector<1x1x32xf32>
    tpu.vector_store %arg14[%89, %c0_59, %c0_60], %88 {strides = array<i32>} : memref<17x4x32xf32, #tpu.memory_space<vmem>>, vector<1x1x32xf32>,
    %91 = vector.extract_strided_slice %81 {offsets = [0, 0], sizes = [1, 32], strides = [1, 1]} : vector<2x32xf32> to vector<1x32xf32>
    %92 = vector.shape_cast %91 : vector<1x32xf32> to vector<1x1x32xf32>
    %93 = arith.index_cast %82 : i32 to index
    %c1_61 = arith.constant 1 : index
    %c0_62 = arith.constant 0 : index
    %94 = vector.load %arg13[%93, %c1_61, %c0_62] : memref<17x4x32xf32, #tpu.memory_space<vmem>>, vector<1x1x32xf32>
    tpu.vector_store %arg13[%93, %c1_61, %c0_62], %92 {strides = array<i32>} : memref<17x4x32xf32, #tpu.memory_space<vmem>>, vector<1x1x32xf32>,
    %95 = vector.extract_strided_slice %79 {offsets = [0, 0], sizes = [1, 32], strides = [1, 1]} : vector<2x32xf32> to vector<1x32xf32>
    %96 = vector.shape_cast %95 : vector<1x32xf32> to vector<1x1x32xf32>
    %97 = arith.index_cast %82 : i32 to index
    %c1_63 = arith.constant 1 : index
    %c0_64 = arith.constant 0 : index
    %98 = vector.load %arg14[%97, %c1_63, %c0_64] : memref<17x4x32xf32, #tpu.memory_space<vmem>>, vector<1x1x32xf32>
    tpu.vector_store %arg14[%97, %c1_63, %c0_64], %96 {strides = array<i32>} : memref<17x4x32xf32, #tpu.memory_space<vmem>>, vector<1x1x32xf32>,
    %c0_65 = arith.constant 0 : index
    %c0_66 = arith.constant 0 : index
    %99 = memref.load %arg0[%c0_65, %c0_66] : memref<8x2xi32, #tpu.memory_space<smem>>
    %c0_i32 = arith.constant 0 : i32
    %100 = arith.addi %c0_i32, %99 : i32
    %c0_i32_67 = arith.constant 0 : i32
    %c16_i32_68 = arith.constant 16 : i32
    %101 = arith.maxsi %c0_i32_67, %100 : i32
    %102 = arith.minsi %c16_i32_68, %101 : i32
    %103 = arith.index_cast %102 : i32 to index
    %c1_69 = arith.constant 1 : index
    %c0_70 = arith.constant 0 : index
    %104 = vector.load %arg13[%103, %c1_69, %c0_70] : memref<17x4x32xf32, #tpu.memory_space<vmem>>, vector<1x1x32xf32>
    %105 = vector.shape_cast %104 : vector<1x1x32xf32> to vector<1x32xf32>
    %c0_71 = arith.constant 0 : index
    %c0_72 = arith.constant 0 : index
    %106 = vector.load %arg15[%c0_71, %c0_72] : memref<16x32xf32, #tpu.memory_space<vmem>>, vector<1x32xf32>
    tpu.vector_store %arg15[%c0_71, %c0_72], %105 {strides = array<i32>} : memref<16x32xf32, #tpu.memory_space<vmem>>, vector<1x32xf32>,
    %c1_i32_73 = arith.constant 1 : i32
    %c16_i32_74 = arith.constant 16 : i32
    %107 = arith.minsi %c1_i32_73, %c16_i32_74 : i32
    %108 = vector.extract_strided_slice %61 {offsets = [1, 0], sizes = [1, 32], strides = [1, 1]} : vector<2x32xf32> to vector<1x32xf32>
    %109 = vector.shape_cast %108 : vector<1x32xf32> to vector<1x1x32xf32>
    %110 = arith.index_cast %107 : i32 to index
    %c2_75 = arith.constant 2 : index
    %c0_76 = arith.constant 0 : index
    %111 = vector.load %arg13[%110, %c2_75, %c0_76] : memref<17x4x32xf32, #tpu.memory_space<vmem>>, vector<1x1x32xf32>
    tpu.vector_store %arg13[%110, %c2_75, %c0_76], %109 {strides = array<i32>} : memref<17x4x32xf32, #tpu.memory_space<vmem>>, vector<1x1x32xf32>,
    %112 = vector.extract_strided_slice %59 {offsets = [1, 0], sizes = [1, 32], strides = [1, 1]} : vector<2x32xf32> to vector<1x32xf32>
    %113 = vector.shape_cast %112 : vector<1x32xf32> to vector<1x1x32xf32>
    %114 = arith.index_cast %107 : i32 to index
    %c2_77 = arith.constant 2 : index
    %c0_78 = arith.constant 0 : index
    %115 = vector.load %arg14[%114, %c2_77, %c0_78] : memref<17x4x32xf32, #tpu.memory_space<vmem>>, vector<1x1x32xf32>
    tpu.vector_store %arg14[%114, %c2_77, %c0_78], %113 {strides = array<i32>} : memref<17x4x32xf32, #tpu.memory_space<vmem>>, vector<1x1x32xf32>,
    %116 = vector.extract_strided_slice %81 {offsets = [1, 0], sizes = [1, 32], strides = [1, 1]} : vector<2x32xf32> to vector<1x32xf32>
    %117 = vector.shape_cast %116 : vector<1x32xf32> to vector<1x1x32xf32>
    %118 = arith.index_cast %107 : i32 to index
    %c3_79 = arith.constant 3 : index
    %c0_80 = arith.constant 0 : index
    %119 = vector.load %arg13[%118, %c3_79, %c0_80] : memref<17x4x32xf32, #tpu.memory_space<vmem>>, vector<1x1x32xf32>
    tpu.vector_store %arg13[%118, %c3_79, %c0_80], %117 {strides = array<i32>} : memref<17x4x32xf32, #tpu.memory_space<vmem>>, vector<1x1x32xf32>,
    %120 = vector.extract_strided_slice %79 {offsets = [1, 0], sizes = [1, 32], strides = [1, 1]} : vector<2x32xf32> to vector<1x32xf32>
    %121 = vector.shape_cast %120 : vector<1x32xf32> to vector<1x1x32xf32>
    %122 = arith.index_cast %107 : i32 to index
    %c3_81 = arith.constant 3 : index
    %c0_82 = arith.constant 0 : index
    %123 = vector.load %arg14[%122, %c3_81, %c0_82] : memref<17x4x32xf32, #tpu.memory_space<vmem>>, vector<1x1x32xf32>
    tpu.vector_store %arg14[%122, %c3_81, %c0_82], %121 {strides = array<i32>} : memref<17x4x32xf32, #tpu.memory_space<vmem>>, vector<1x1x32xf32>,
    %c0_83 = arith.constant 0 : index
    %c1_84 = arith.constant 1 : index
    %124 = memref.load %arg0[%c0_83, %c1_84] : memref<8x2xi32, #tpu.memory_space<smem>>
    %c0_i32_85 = arith.constant 0 : i32
    %125 = arith.addi %c0_i32_85, %124 : i32
    %c0_i32_86 = arith.constant 0 : i32
    %c16_i32_87 = arith.constant 16 : i32
    %126 = arith.maxsi %c0_i32_86, %125 : i32
    %127 = arith.minsi %c16_i32_87, %126 : i32
    %128 = arith.index_cast %127 : i32 to index
    %c3_88 = arith.constant 3 : index
    %c0_89 = arith.constant 0 : index
    %129 = vector.load %arg13[%128, %c3_88, %c0_89] : memref<17x4x32xf32, #tpu.memory_space<vmem>>, vector<1x1x32xf32>
    %130 = vector.shape_cast %129 : vector<1x1x32xf32> to vector<1x32xf32>
    %c8 = arith.constant 8 : index
    %c0_90 = arith.constant 0 : index
    %131 = vector.load %arg15[%c8, %c0_90] : memref<16x32xf32, #tpu.memory_space<vmem>>, vector<1x32xf32>
    tpu.vector_store %arg15[%c8, %c0_90], %130 {strides = array<i32>} : memref<16x32xf32, #tpu.memory_space<vmem>>, vector<1x32xf32>,
    %132 = arith.index_cast %102 : i32 to index
    %c0_91 = arith.constant 0 : index
    %c0_92 = arith.constant 0 : index
    %133 = vector.load %arg13[%132, %c0_91, %c0_92] : memref<17x4x32xf32, #tpu.memory_space<vmem>>, vector<1x1x32xf32>
    %134 = vector.shape_cast %133 : vector<1x1x32xf32> to vector<1x32xf32>
    %135 = arith.index_cast %127 : i32 to index
    %c2_93 = arith.constant 2 : index
    %c0_94 = arith.constant 0 : index
    %136 = vector.load %arg13[%135, %c2_93, %c0_94] : memref<17x4x32xf32, #tpu.memory_space<vmem>>, vector<1x1x32xf32>
    %137 = vector.shape_cast %136 : vector<1x1x32xf32> to vector<1x32xf32>
    %138 = tpu.concatenate %134, %137 in 0 : vector<1x32xf32>, vector<1x32xf32> -> vector<2x32xf32>
    %139 = arith.index_cast %102 : i32 to index
    %c0_95 = arith.constant 0 : index
    %c0_96 = arith.constant 0 : index
    %140 = vector.load %arg14[%139, %c0_95, %c0_96] : memref<17x4x32xf32, #tpu.memory_space<vmem>>, vector<1x1x32xf32>
    %141 = vector.shape_cast %140 : vector<1x1x32xf32> to vector<1x32xf32>
    %142 = arith.index_cast %127 : i32 to index
    %c2_97 = arith.constant 2 : index
    %c0_98 = arith.constant 0 : index
    %143 = vector.load %arg14[%142, %c2_97, %c0_98] : memref<17x4x32xf32, #tpu.memory_space<vmem>>, vector<1x1x32xf32>
    %144 = vector.shape_cast %143 : vector<1x1x32xf32> to vector<1x32xf32>
    %145 = tpu.concatenate %141, %144 in 0 : vector<1x32xf32>, vector<1x32xf32> -> vector<2x32xf32>
    %146 = arith.index_cast %102 : i32 to index
    %c1_99 = arith.constant 1 : index
    %c0_100 = arith.constant 0 : index
    %147 = vector.load %arg13[%146, %c1_99, %c0_100] : memref<17x4x32xf32, #tpu.memory_space<vmem>>, vector<1x1x32xf32>
    %148 = vector.shape_cast %147 : vector<1x1x32xf32> to vector<1x32xf32>
    %149 = arith.index_cast %127 : i32 to index
    %c3_101 = arith.constant 3 : index
    %c0_102 = arith.constant 0 : index
    %150 = vector.load %arg13[%149, %c3_101, %c0_102] : memref<17x4x32xf32, #tpu.memory_space<vmem>>, vector<1x1x32xf32>
    %151 = vector.shape_cast %150 : vector<1x1x32xf32> to vector<1x32xf32>
    %152 = tpu.concatenate %148, %151 in 0 : vector<1x32xf32>, vector<1x32xf32> -> vector<2x32xf32>
    %153 = arith.index_cast %102 : i32 to index
    %c1_103 = arith.constant 1 : index
    %c0_104 = arith.constant 0 : index
    %154 = vector.load %arg14[%153, %c1_103, %c0_104] : memref<17x4x32xf32, #tpu.memory_space<vmem>>, vector<1x1x32xf32>
    %155 = vector.shape_cast %154 : vector<1x1x32xf32> to vector<1x32xf32>
    %156 = arith.index_cast %127 : i32 to index
    %c3_105 = arith.constant 3 : index
    %c0_106 = arith.constant 0 : index
    %157 = vector.load %arg14[%156, %c3_105, %c0_106] : memref<17x4x32xf32, #tpu.memory_space<vmem>>, vector<1x1x32xf32>
    %158 = vector.shape_cast %157 : vector<1x1x32xf32> to vector<1x32xf32>
    %159 = tpu.concatenate %155, %158 in 0 : vector<1x32xf32>, vector<1x32xf32> -> vector<2x32xf32>
    %160 = vector.extract_strided_slice %23 {offsets = [2, 0], sizes = [2, 128], strides = [1, 1]} : vector<16x128xf32> to vector<2x128xf32>
    %cst_107 = arith.constant dense<0.000000e+00> : vector<2x128xf32>
    %161 = tpu.matmul %138, %16, %cst_107 {dimension_numbers = #tpu.dot_dimension_numbers<[1], [0], [0], [1], [0, 0, 1, 1], [], []>} : vector<2x32xf32>, vector<32x128xf32>, vector<2x128xf32> -> vector<2x128xf32>
    %162 = arith.addf %160, %161 : vector<2x128xf32>
    %163 = arith.negf %162 : vector<2x128xf32>
    %164 = math.exp %163 : vector<2x128xf32>
    %cst_108 = arith.constant 1.000000e+00 : f32
    %165 = vector.broadcast %cst_108 : f32 to vector<2x128xf32>
    %166 = arith.addf %165, %164 : vector<2x128xf32>
    %167 = arith.divf %165, %166 : vector<2x128xf32>
    %168 = math.tanh %162 : vector<2x128xf32>
    %169 = vector.extract_strided_slice %167 {offsets = [0, 0], sizes = [2, 32], strides = [1, 1]} : vector<2x128xf32> to vector<2x32xf32>
    %170 = vector.extract_strided_slice %167 {offsets = [0, 32], sizes = [2, 32], strides = [1, 1]} : vector<2x128xf32> to vector<2x32xf32>
    %171 = vector.extract_strided_slice %168 {offsets = [0, 64], sizes = [2, 32], strides = [1, 1]} : vector<2x128xf32> to vector<2x32xf32>
    %172 = vector.extract_strided_slice %167 {offsets = [0, 96], sizes = [2, 32], strides = [1, 1]} : vector<2x128xf32> to vector<2x32xf32>
    %173 = arith.mulf %170, %145 : vector<2x32xf32>
    %174 = arith.mulf %169, %171 : vector<2x32xf32>
    %175 = arith.addf %173, %174 : vector<2x32xf32>
    %176 = math.tanh %175 : vector<2x32xf32>
    %177 = arith.mulf %172, %176 : vector<2x32xf32>
    %cst_109 = arith.constant dense<0.000000e+00> : vector<2x128xf32>
    %178 = tpu.matmul %177, %15, %cst_109 {dimension_numbers = #tpu.dot_dimension_numbers<[1], [0], [0], [1], [0, 0, 1, 1], [], []>} : vector<2x32xf32>, vector<32x128xf32>, vector<2x128xf32> -> vector<2x128xf32>
    %cst_110 = arith.constant dense<0.000000e+00> : vector<2x128xf32>
    %179 = tpu.matmul %152, %17, %cst_110 {dimension_numbers = #tpu.dot_dimension_numbers<[1], [0], [0], [1], [0, 0, 1, 1], [], []>} : vector<2x32xf32>, vector<32x128xf32>, vector<2x128xf32> -> vector<2x128xf32>
    %180 = arith.addf %178, %179 : vector<2x128xf32>
    %181 = vector.broadcast %19 : vector<1x128xf32> to vector<2x128xf32>
    %182 = arith.addf %180, %181 : vector<2x128xf32>
    %183 = arith.negf %182 : vector<2x128xf32>
    %184 = math.exp %183 : vector<2x128xf32>
    %cst_111 = arith.constant 1.000000e+00 : f32
    %185 = vector.broadcast %cst_111 : f32 to vector<2x128xf32>
    %186 = arith.addf %185, %184 : vector<2x128xf32>
    %187 = arith.divf %185, %186 : vector<2x128xf32>
    %188 = math.tanh %182 : vector<2x128xf32>
    %189 = vector.extract_strided_slice %187 {offsets = [0, 0], sizes = [2, 32], strides = [1, 1]} : vector<2x128xf32> to vector<2x32xf32>
    %190 = vector.extract_strided_slice %187 {offsets = [0, 32], sizes = [2, 32], strides = [1, 1]} : vector<2x128xf32> to vector<2x32xf32>
    %191 = vector.extract_strided_slice %188 {offsets = [0, 64], sizes = [2, 32], strides = [1, 1]} : vector<2x128xf32> to vector<2x32xf32>
    %192 = vector.extract_strided_slice %187 {offsets = [0, 96], sizes = [2, 32], strides = [1, 1]} : vector<2x128xf32> to vector<2x32xf32>
    %193 = arith.mulf %190, %159 : vector<2x32xf32>
    %194 = arith.mulf %189, %191 : vector<2x32xf32>
    %195 = arith.addf %193, %194 : vector<2x32xf32>
    %196 = math.tanh %195 : vector<2x32xf32>
    %197 = arith.mulf %192, %196 : vector<2x32xf32>
    %c1_i32_112 = arith.constant 1 : i32
    %198 = arith.addi %102, %c1_i32_112 : i32
    %c16_i32_113 = arith.constant 16 : i32
    %199 = arith.minsi %198, %c16_i32_113 : i32
    %200 = vector.extract_strided_slice %177 {offsets = [0, 0], sizes = [1, 32], strides = [1, 1]} : vector<2x32xf32> to vector<1x32xf32>
    %201 = vector.shape_cast %200 : vector<1x32xf32> to vector<1x1x32xf32>
    %202 = arith.index_cast %199 : i32 to index
    %c0_114 = arith.constant 0 : index
    %c0_115 = arith.constant 0 : index
    %203 = vector.load %arg13[%202, %c0_114, %c0_115] : memref<17x4x32xf32, #tpu.memory_space<vmem>>, vector<1x1x32xf32>
    tpu.vector_store %arg13[%202, %c0_114, %c0_115], %201 {strides = array<i32>} : memref<17x4x32xf32, #tpu.memory_space<vmem>>, vector<1x1x32xf32>,
    %204 = vector.extract_strided_slice %175 {offsets = [0, 0], sizes = [1, 32], strides = [1, 1]} : vector<2x32xf32> to vector<1x32xf32>
    %205 = vector.shape_cast %204 : vector<1x32xf32> to vector<1x1x32xf32>
    %206 = arith.index_cast %199 : i32 to index
    %c0_116 = arith.constant 0 : index
    %c0_117 = arith.constant 0 : index
    %207 = vector.load %arg14[%206, %c0_116, %c0_117] : memref<17x4x32xf32, #tpu.memory_space<vmem>>, vector<1x1x32xf32>
    tpu.vector_store %arg14[%206, %c0_116, %c0_117], %205 {strides = array<i32>} : memref<17x4x32xf32, #tpu.memory_space<vmem>>, vector<1x1x32xf32>,
    %208 = vector.extract_strided_slice %197 {offsets = [0, 0], sizes = [1, 32], strides = [1, 1]} : vector<2x32xf32> to vector<1x32xf32>
    %209 = vector.shape_cast %208 : vector<1x32xf32> to vector<1x1x32xf32>
    %210 = arith.index_cast %199 : i32 to index
    %c1_118 = arith.constant 1 : index
    %c0_119 = arith.constant 0 : index
    %211 = vector.load %arg13[%210, %c1_118, %c0_119] : memref<17x4x32xf32, #tpu.memory_space<vmem>>, vector<1x1x32xf32>
    tpu.vector_store %arg13[%210, %c1_118, %c0_119], %209 {strides = array<i32>} : memref<17x4x32xf32, #tpu.memory_space<vmem>>, vector<1x1x32xf32>,
    %212 = vector.extract_strided_slice %195 {offsets = [0, 0], sizes = [1, 32], strides = [1, 1]} : vector<2x32xf32> to vector<1x32xf32>
    %213 = vector.shape_cast %212 : vector<1x32xf32> to vector<1x1x32xf32>
    %214 = arith.index_cast %199 : i32 to index
    %c1_120 = arith.constant 1 : index
    %c0_121 = arith.constant 0 : index
    %215 = vector.load %arg14[%214, %c1_120, %c0_121] : memref<17x4x32xf32, #tpu.memory_space<vmem>>, vector<1x1x32xf32>
    tpu.vector_store %arg14[%214, %c1_120, %c0_121], %213 {strides = array<i32>} : memref<17x4x32xf32, #tpu.memory_space<vmem>>, vector<1x1x32xf32>,
    %c1_122 = arith.constant 1 : index
    %c0_123 = arith.constant 0 : index
    %216 = memref.load %arg0[%c1_122, %c0_123] : memref<8x2xi32, #tpu.memory_space<smem>>
    %217 = arith.addi %102, %216 : i32
    %c0_i32_124 = arith.constant 0 : i32
    %c16_i32_125 = arith.constant 16 : i32
    %218 = arith.maxsi %c0_i32_124, %217 : i32
    %219 = arith.minsi %c16_i32_125, %218 : i32
    %220 = arith.index_cast %219 : i32 to index
    %c1_126 = arith.constant 1 : index
    %c0_127 = arith.constant 0 : index
    %221 = vector.load %arg13[%220, %c1_126, %c0_127] : memref<17x4x32xf32, #tpu.memory_space<vmem>>, vector<1x1x32xf32>
    %222 = vector.shape_cast %221 : vector<1x1x32xf32> to vector<1x32xf32>
    %c1_128 = arith.constant 1 : index
    %c0_129 = arith.constant 0 : index
    %223 = vector.load %arg15[%c1_128, %c0_129] : memref<16x32xf32, #tpu.memory_space<vmem>>, vector<1x32xf32>
    tpu.vector_store %arg15[%c1_128, %c0_129], %222 {strides = array<i32>} : memref<16x32xf32, #tpu.memory_space<vmem>>, vector<1x32xf32>,
    %c1_i32_130 = arith.constant 1 : i32
    %224 = arith.addi %127, %c1_i32_130 : i32
    %c16_i32_131 = arith.constant 16 : i32
    %225 = arith.minsi %224, %c16_i32_131 : i32
    %226 = vector.extract_strided_slice %177 {offsets = [1, 0], sizes = [1, 32], strides = [1, 1]} : vector<2x32xf32> to vector<1x32xf32>
    %227 = vector.shape_cast %226 : vector<1x32xf32> to vector<1x1x32xf32>
    %228 = arith.index_cast %225 : i32 to index
    %c2_132 = arith.constant 2 : index
    %c0_133 = arith.constant 0 : index
    %229 = vector.load %arg13[%228, %c2_132, %c0_133] : memref<17x4x32xf32, #tpu.memory_space<vmem>>, vector<1x1x32xf32>
    tpu.vector_store %arg13[%228, %c2_132, %c0_133], %227 {strides = array<i32>} : memref<17x4x32xf32, #tpu.memory_space<vmem>>, vector<1x1x32xf32>,
    %230 = vector.extract_strided_slice %175 {offsets = [1, 0], sizes = [1, 32], strides = [1, 1]} : vector<2x32xf32> to vector<1x32xf32>
    %231 = vector.shape_cast %230 : vector<1x32xf32> to vector<1x1x32xf32>
    %232 = arith.index_cast %225 : i32 to index
    %c2_134 = arith.constant 2 : index
    %c0_135 = arith.constant 0 : index
    %233 = vector.load %arg14[%232, %c2_134, %c0_135] : memref<17x4x32xf32, #tpu.memory_space<vmem>>, vector<1x1x32xf32>
    tpu.vector_store %arg14[%232, %c2_134, %c0_135], %231 {strides = array<i32>} : memref<17x4x32xf32, #tpu.memory_space<vmem>>, vector<1x1x32xf32>,
    %234 = vector.extract_strided_slice %197 {offsets = [1, 0], sizes = [1, 32], strides = [1, 1]} : vector<2x32xf32> to vector<1x32xf32>
    %235 = vector.shape_cast %234 : vector<1x32xf32> to vector<1x1x32xf32>
    %236 = arith.index_cast %225 : i32 to index
    %c3_136 = arith.constant 3 : index
    %c0_137 = arith.constant 0 : index
    %237 = vector.load %arg13[%236, %c3_136, %c0_137] : memref<17x4x32xf32, #tpu.memory_space<vmem>>, vector<1x1x32xf32>
    tpu.vector_store %arg13[%236, %c3_136, %c0_137], %235 {strides = array<i32>} : memref<17x4x32xf32, #tpu.memory_space<vmem>>, vector<1x1x32xf32>,
    %238 = vector.extract_strided_slice %195 {offsets = [1, 0], sizes = [1, 32], strides = [1, 1]} : vector<2x32xf32> to vector<1x32xf32>
    %239 = vector.shape_cast %238 : vector<1x32xf32> to vector<1x1x32xf32>
    %240 = arith.index_cast %225 : i32 to index
    %c3_138 = arith.constant 3 : index
    %c0_139 = arith.constant 0 : index
    %241 = vector.load %arg14[%240, %c3_138, %c0_139] : memref<17x4x32xf32, #tpu.memory_space<vmem>>, vector<1x1x32xf32>
    tpu.vector_store %arg14[%240, %c3_138, %c0_139], %239 {strides = array<i32>} : memref<17x4x32xf32, #tpu.memory_space<vmem>>, vector<1x1x32xf32>,
    %c1_140 = arith.constant 1 : index
    %c1_141 = arith.constant 1 : index
    %242 = memref.load %arg0[%c1_140, %c1_141] : memref<8x2xi32, #tpu.memory_space<smem>>
    %243 = arith.addi %127, %242 : i32
    %c0_i32_142 = arith.constant 0 : i32
    %c16_i32_143 = arith.constant 16 : i32
    %244 = arith.maxsi %c0_i32_142, %243 : i32
    %245 = arith.minsi %c16_i32_143, %244 : i32
    %246 = arith.index_cast %245 : i32 to index
    %c3_144 = arith.constant 3 : index
    %c0_145 = arith.constant 0 : index
    %247 = vector.load %arg13[%246, %c3_144, %c0_145] : memref<17x4x32xf32, #tpu.memory_space<vmem>>, vector<1x1x32xf32>
    %248 = vector.shape_cast %247 : vector<1x1x32xf32> to vector<1x32xf32>
    %c9 = arith.constant 9 : index
    %c0_146 = arith.constant 0 : index
    %249 = vector.load %arg15[%c9, %c0_146] : memref<16x32xf32, #tpu.memory_space<vmem>>, vector<1x32xf32>
    tpu.vector_store %arg15[%c9, %c0_146], %248 {strides = array<i32>} : memref<16x32xf32, #tpu.memory_space<vmem>>, vector<1x32xf32>,
    %250 = arith.index_cast %219 : i32 to index
    %c0_147 = arith.constant 0 : index
    %c0_148 = arith.constant 0 : index
    %251 = vector.load %arg13[%250, %c0_147, %c0_148] : memref<17x4x32xf32, #tpu.memory_space<vmem>>, vector<1x1x32xf32>
    %252 = vector.shape_cast %251 : vector<1x1x32xf32> to vector<1x32xf32>
    %253 = arith.index_cast %245 : i32 to index
    %c2_149 = arith.constant 2 : index
    %c0_150 = arith.constant 0 : index
    %254 = vector.load %arg13[%253, %c2_149, %c0_150] : memref<17x4x32xf32, #tpu.memory_space<vmem>>, vector<1x1x32xf32>
    %255 = vector.shape_cast %254 : vector<1x1x32xf32> to vector<1x32xf32>
    %256 = tpu.concatenate %252, %255 in 0 : vector<1x32xf32>, vector<1x32xf32> -> vector<2x32xf32>
    %257 = arith.index_cast %219 : i32 to index
    %c0_151 = arith.constant 0 : index
    %c0_152 = arith.constant 0 : index
    %258 = vector.load %arg14[%257, %c0_151, %c0_152] : memref<17x4x32xf32, #tpu.memory_space<vmem>>, vector<1x1x32xf32>
    %259 = vector.shape_cast %258 : vector<1x1x32xf32> to vector<1x32xf32>
    %260 = arith.index_cast %245 : i32 to index
    %c2_153 = arith.constant 2 : index
    %c0_154 = arith.constant 0 : index
    %261 = vector.load %arg14[%260, %c2_153, %c0_154] : memref<17x4x32xf32, #tpu.memory_space<vmem>>, vector<1x1x32xf32>
    %262 = vector.shape_cast %261 : vector<1x1x32xf32> to vector<1x32xf32>
    %263 = tpu.concatenate %259, %262 in 0 : vector<1x32xf32>, vector<1x32xf32> -> vector<2x32xf32>
    %264 = arith.index_cast %219 : i32 to index
    %c1_155 = arith.constant 1 : index
    %c0_156 = arith.constant 0 : index
    %265 = vector.load %arg13[%264, %c1_155, %c0_156] : memref<17x4x32xf32, #tpu.memory_space<vmem>>, vector<1x1x32xf32>
    %266 = vector.shape_cast %265 : vector<1x1x32xf32> to vector<1x32xf32>
    %267 = arith.index_cast %245 : i32 to index
    %c3_157 = arith.constant 3 : index
    %c0_158 = arith.constant 0 : index
    %268 = vector.load %arg13[%267, %c3_157, %c0_158] : memref<17x4x32xf32, #tpu.memory_space<vmem>>, vector<1x1x32xf32>
    %269 = vector.shape_cast %268 : vector<1x1x32xf32> to vector<1x32xf32>
    %270 = tpu.concatenate %266, %269 in 0 : vector<1x32xf32>, vector<1x32xf32> -> vector<2x32xf32>
    %271 = arith.index_cast %219 : i32 to index
    %c1_159 = arith.constant 1 : index
    %c0_160 = arith.constant 0 : index
    %272 = vector.load %arg14[%271, %c1_159, %c0_160] : memref<17x4x32xf32, #tpu.memory_space<vmem>>, vector<1x1x32xf32>
    %273 = vector.shape_cast %272 : vector<1x1x32xf32> to vector<1x32xf32>
    %274 = arith.index_cast %245 : i32 to index
    %c3_161 = arith.constant 3 : index
    %c0_162 = arith.constant 0 : index
    %275 = vector.load %arg14[%274, %c3_161, %c0_162] : memref<17x4x32xf32, #tpu.memory_space<vmem>>, vector<1x1x32xf32>
    %276 = vector.shape_cast %275 : vector<1x1x32xf32> to vector<1x32xf32>
    %277 = tpu.concatenate %273, %276 in 0 : vector<1x32xf32>, vector<1x32xf32> -> vector<2x32xf32>
    %278 = vector.extract_strided_slice %23 {offsets = [4, 0], sizes = [2, 128], strides = [1, 1]} : vector<16x128xf32> to vector<2x128xf32>
    %cst_163 = arith.constant dense<0.000000e+00> : vector<2x128xf32>
    %279 = tpu.matmul %256, %16, %cst_163 {dimension_numbers = #tpu.dot_dimension_numbers<[1], [0], [0], [1], [0, 0, 1, 1], [], []>} : vector<2x32xf32>, vector<32x128xf32>, vector<2x128xf32> -> vector<2x128xf32>
    %280 = arith.addf %278, %279 : vector<2x128xf32>
    %281 = arith.negf %280 : vector<2x128xf32>
    %282 = math.exp %281 : vector<2x128xf32>
    %cst_164 = arith.constant 1.000000e+00 : f32
    %283 = vector.broadcast %cst_164 : f32 to vector<2x128xf32>
    %284 = arith.addf %283, %282 : vector<2x128xf32>
    %285 = arith.divf %283, %284 : vector<2x128xf32>
    %286 = math.tanh %280 : vector<2x128xf32>
    %287 = vector.extract_strided_slice %285 {offsets = [0, 0], sizes = [2, 32], strides = [1, 1]} : vector<2x128xf32> to vector<2x32xf32>
    %288 = vector.extract_strided_slice %285 {offsets = [0, 32], sizes = [2, 32], strides = [1, 1]} : vector<2x128xf32> to vector<2x32xf32>
    %289 = vector.extract_strided_slice %286 {offsets = [0, 64], sizes = [2, 32], strides = [1, 1]} : vector<2x128xf32> to vector<2x32xf32>
    %290 = vector.extract_strided_slice %285 {offsets = [0, 96], sizes = [2, 32], strides = [1, 1]} : vector<2x128xf32> to vector<2x32xf32>
    %291 = arith.mulf %288, %263 : vector<2x32xf32>
    %292 = arith.mulf %287, %289 : vector<2x32xf32>
    %293 = arith.addf %291, %292 : vector<2x32xf32>
    %294 = math.tanh %293 : vector<2x32xf32>
    %295 = arith.mulf %290, %294 : vector<2x32xf32>
    %cst_165 = arith.constant dense<0.000000e+00> : vector<2x128xf32>
    %296 = tpu.matmul %295, %15, %cst_165 {dimension_numbers = #tpu.dot_dimension_numbers<[1], [0], [0], [1], [0, 0, 1, 1], [], []>} : vector<2x32xf32>, vector<32x128xf32>, vector<2x128xf32> -> vector<2x128xf32>
    %cst_166 = arith.constant dense<0.000000e+00> : vector<2x128xf32>
    %297 = tpu.matmul %270, %17, %cst_166 {dimension_numbers = #tpu.dot_dimension_numbers<[1], [0], [0], [1], [0, 0, 1, 1], [], []>} : vector<2x32xf32>, vector<32x128xf32>, vector<2x128xf32> -> vector<2x128xf32>
    %298 = arith.addf %296, %297 : vector<2x128xf32>
    %299 = vector.broadcast %19 : vector<1x128xf32> to vector<2x128xf32>
    %300 = arith.addf %298, %299 : vector<2x128xf32>
    %301 = arith.negf %300 : vector<2x128xf32>
    %302 = math.exp %301 : vector<2x128xf32>
    %cst_167 = arith.constant 1.000000e+00 : f32
    %303 = vector.broadcast %cst_167 : f32 to vector<2x128xf32>
    %304 = arith.addf %303, %302 : vector<2x128xf32>
    %305 = arith.divf %303, %304 : vector<2x128xf32>
    %306 = math.tanh %300 : vector<2x128xf32>
    %307 = vector.extract_strided_slice %305 {offsets = [0, 0], sizes = [2, 32], strides = [1, 1]} : vector<2x128xf32> to vector<2x32xf32>
    %308 = vector.extract_strided_slice %305 {offsets = [0, 32], sizes = [2, 32], strides = [1, 1]} : vector<2x128xf32> to vector<2x32xf32>
    %309 = vector.extract_strided_slice %306 {offsets = [0, 64], sizes = [2, 32], strides = [1, 1]} : vector<2x128xf32> to vector<2x32xf32>
    %310 = vector.extract_strided_slice %305 {offsets = [0, 96], sizes = [2, 32], strides = [1, 1]} : vector<2x128xf32> to vector<2x32xf32>
    %311 = arith.mulf %308, %277 : vector<2x32xf32>
    %312 = arith.mulf %307, %309 : vector<2x32xf32>
    %313 = arith.addf %311, %312 : vector<2x32xf32>
    %314 = math.tanh %313 : vector<2x32xf32>
    %315 = arith.mulf %310, %314 : vector<2x32xf32>
    %c1_i32_168 = arith.constant 1 : i32
    %316 = arith.addi %219, %c1_i32_168 : i32
    %c16_i32_169 = arith.constant 16 : i32
    %317 = arith.minsi %316, %c16_i32_169 : i32
    %318 = vector.extract_strided_slice %295 {offsets = [0, 0], sizes = [1, 32], strides = [1, 1]} : vector<2x32xf32> to vector<1x32xf32>
    %319 = vector.shape_cast %318 : vector<1x32xf32> to vector<1x1x32xf32>
    %320 = arith.index_cast %317 : i32 to index
    %c0_170 = arith.constant 0 : index
    %c0_171 = arith.constant 0 : index
    %321 = vector.load %arg13[%320, %c0_170, %c0_171] : memref<17x4x32xf32, #tpu.memory_space<vmem>>, vector<1x1x32xf32>
    tpu.vector_store %arg13[%320, %c0_170, %c0_171], %319 {strides = array<i32>} : memref<17x4x32xf32, #tpu.memory_space<vmem>>, vector<1x1x32xf32>,
    %322 = vector.extract_strided_slice %293 {offsets = [0, 0], sizes = [1, 32], strides = [1, 1]} : vector<2x32xf32> to vector<1x32xf32>
    %323 = vector.shape_cast %322 : vector<1x32xf32> to vector<1x1x32xf32>
    %324 = arith.index_cast %317 : i32 to index
    %c0_172 = arith.constant 0 : index
    %c0_173 = arith.constant 0 : index
    %325 = vector.load %arg14[%324, %c0_172, %c0_173] : memref<17x4x32xf32, #tpu.memory_space<vmem>>, vector<1x1x32xf32>
    tpu.vector_store %arg14[%324, %c0_172, %c0_173], %323 {strides = array<i32>} : memref<17x4x32xf32, #tpu.memory_space<vmem>>, vector<1x1x32xf32>,
    %326 = vector.extract_strided_slice %315 {offsets = [0, 0], sizes = [1, 32], strides = [1, 1]} : vector<2x32xf32> to vector<1x32xf32>
    %327 = vector.shape_cast %326 : vector<1x32xf32> to vector<1x1x32xf32>
    %328 = arith.index_cast %317 : i32 to index
    %c1_174 = arith.constant 1 : index
    %c0_175 = arith.constant 0 : index
    %329 = vector.load %arg13[%328, %c1_174, %c0_175] : memref<17x4x32xf32, #tpu.memory_space<vmem>>, vector<1x1x32xf32>
    tpu.vector_store %arg13[%328, %c1_174, %c0_175], %327 {strides = array<i32>} : memref<17x4x32xf32, #tpu.memory_space<vmem>>, vector<1x1x32xf32>,
    %330 = vector.extract_strided_slice %313 {offsets = [0, 0], sizes = [1, 32], strides = [1, 1]} : vector<2x32xf32> to vector<1x32xf32>
    %331 = vector.shape_cast %330 : vector<1x32xf32> to vector<1x1x32xf32>
    %332 = arith.index_cast %317 : i32 to index
    %c1_176 = arith.constant 1 : index
    %c0_177 = arith.constant 0 : index
    %333 = vector.load %arg14[%332, %c1_176, %c0_177] : memref<17x4x32xf32, #tpu.memory_space<vmem>>, vector<1x1x32xf32>
    tpu.vector_store %arg14[%332, %c1_176, %c0_177], %331 {strides = array<i32>} : memref<17x4x32xf32, #tpu.memory_space<vmem>>, vector<1x1x32xf32>,
    %c2_178 = arith.constant 2 : index
    %c0_179 = arith.constant 0 : index
    %334 = memref.load %arg0[%c2_178, %c0_179] : memref<8x2xi32, #tpu.memory_space<smem>>
    %335 = arith.addi %219, %334 : i32
    %c0_i32_180 = arith.constant 0 : i32
    %c16_i32_181 = arith.constant 16 : i32
    %336 = arith.maxsi %c0_i32_180, %335 : i32
    %337 = arith.minsi %c16_i32_181, %336 : i32
    %338 = arith.index_cast %337 : i32 to index
    %c1_182 = arith.constant 1 : index
    %c0_183 = arith.constant 0 : index
    %339 = vector.load %arg13[%338, %c1_182, %c0_183] : memref<17x4x32xf32, #tpu.memory_space<vmem>>, vector<1x1x32xf32>
    %340 = vector.shape_cast %339 : vector<1x1x32xf32> to vector<1x32xf32>
    %c2_184 = arith.constant 2 : index
    %c0_185 = arith.constant 0 : index
    %341 = vector.load %arg15[%c2_184, %c0_185] : memref<16x32xf32, #tpu.memory_space<vmem>>, vector<1x32xf32>
    tpu.vector_store %arg15[%c2_184, %c0_185], %340 {strides = array<i32>} : memref<16x32xf32, #tpu.memory_space<vmem>>, vector<1x32xf32>,
    %c1_i32_186 = arith.constant 1 : i32
    %342 = arith.addi %245, %c1_i32_186 : i32
    %c16_i32_187 = arith.constant 16 : i32
    %343 = arith.minsi %342, %c16_i32_187 : i32
    %344 = vector.extract_strided_slice %295 {offsets = [1, 0], sizes = [1, 32], strides = [1, 1]} : vector<2x32xf32> to vector<1x32xf32>
    %345 = vector.shape_cast %344 : vector<1x32xf32> to vector<1x1x32xf32>
    %346 = arith.index_cast %343 : i32 to index
    %c2_188 = arith.constant 2 : index
    %c0_189 = arith.constant 0 : index
    %347 = vector.load %arg13[%346, %c2_188, %c0_189] : memref<17x4x32xf32, #tpu.memory_space<vmem>>, vector<1x1x32xf32>
    tpu.vector_store %arg13[%346, %c2_188, %c0_189], %345 {strides = array<i32>} : memref<17x4x32xf32, #tpu.memory_space<vmem>>, vector<1x1x32xf32>,
    %348 = vector.extract_strided_slice %293 {offsets = [1, 0], sizes = [1, 32], strides = [1, 1]} : vector<2x32xf32> to vector<1x32xf32>
    %349 = vector.shape_cast %348 : vector<1x32xf32> to vector<1x1x32xf32>
    %350 = arith.index_cast %343 : i32 to index
    %c2_190 = arith.constant 2 : index
    %c0_191 = arith.constant 0 : index
    %351 = vector.load %arg14[%350, %c2_190, %c0_191] : memref<17x4x32xf32, #tpu.memory_space<vmem>>, vector<1x1x32xf32>
    tpu.vector_store %arg14[%350, %c2_190, %c0_191], %349 {strides = array<i32>} : memref<17x4x32xf32, #tpu.memory_space<vmem>>, vector<1x1x32xf32>,
    %352 = vector.extract_strided_slice %315 {offsets = [1, 0], sizes = [1, 32], strides = [1, 1]} : vector<2x32xf32> to vector<1x32xf32>
    %353 = vector.shape_cast %352 : vector<1x32xf32> to vector<1x1x32xf32>
    %354 = arith.index_cast %343 : i32 to index
    %c3_192 = arith.constant 3 : index
    %c0_193 = arith.constant 0 : index
    %355 = vector.load %arg13[%354, %c3_192, %c0_193] : memref<17x4x32xf32, #tpu.memory_space<vmem>>, vector<1x1x32xf32>
    tpu.vector_store %arg13[%354, %c3_192, %c0_193], %353 {strides = array<i32>} : memref<17x4x32xf32, #tpu.memory_space<vmem>>, vector<1x1x32xf32>,
    %356 = vector.extract_strided_slice %313 {offsets = [1, 0], sizes = [1, 32], strides = [1, 1]} : vector<2x32xf32> to vector<1x32xf32>
    %357 = vector.shape_cast %356 : vector<1x32xf32> to vector<1x1x32xf32>
    %358 = arith.index_cast %343 : i32 to index
    %c3_194 = arith.constant 3 : index
    %c0_195 = arith.constant 0 : index
    %359 = vector.load %arg14[%358, %c3_194, %c0_195] : memref<17x4x32xf32, #tpu.memory_space<vmem>>, vector<1x1x32xf32>
    tpu.vector_store %arg14[%358, %c3_194, %c0_195], %357 {strides = array<i32>} : memref<17x4x32xf32, #tpu.memory_space<vmem>>, vector<1x1x32xf32>,
    %c2_196 = arith.constant 2 : index
    %c1_197 = arith.constant 1 : index
    %360 = memref.load %arg0[%c2_196, %c1_197] : memref<8x2xi32, #tpu.memory_space<smem>>
    %361 = arith.addi %245, %360 : i32
    %c0_i32_198 = arith.constant 0 : i32
    %c16_i32_199 = arith.constant 16 : i32
    %362 = arith.maxsi %c0_i32_198, %361 : i32
    %363 = arith.minsi %c16_i32_199, %362 : i32
    %364 = arith.index_cast %363 : i32 to index
    %c3_200 = arith.constant 3 : index
    %c0_201 = arith.constant 0 : index
    %365 = vector.load %arg13[%364, %c3_200, %c0_201] : memref<17x4x32xf32, #tpu.memory_space<vmem>>, vector<1x1x32xf32>
    %366 = vector.shape_cast %365 : vector<1x1x32xf32> to vector<1x32xf32>
    %c10 = arith.constant 10 : index
    %c0_202 = arith.constant 0 : index
    %367 = vector.load %arg15[%c10, %c0_202] : memref<16x32xf32, #tpu.memory_space<vmem>>, vector<1x32xf32>
    tpu.vector_store %arg15[%c10, %c0_202], %366 {strides = array<i32>} : memref<16x32xf32, #tpu.memory_space<vmem>>, vector<1x32xf32>,
    %368 = arith.index_cast %337 : i32 to index
    %c0_203 = arith.constant 0 : index
    %c0_204 = arith.constant 0 : index
    %369 = vector.load %arg13[%368, %c0_203, %c0_204] : memref<17x4x32xf32, #tpu.memory_space<vmem>>, vector<1x1x32xf32>
    %370 = vector.shape_cast %369 : vector<1x1x32xf32> to vector<1x32xf32>
    %371 = arith.index_cast %363 : i32 to index
    %c2_205 = arith.constant 2 : index
    %c0_206 = arith.constant 0 : index
    %372 = vector.load %arg13[%371, %c2_205, %c0_206] : memref<17x4x32xf32, #tpu.memory_space<vmem>>, vector<1x1x32xf32>
    %373 = vector.shape_cast %372 : vector<1x1x32xf32> to vector<1x32xf32>
    %374 = tpu.concatenate %370, %373 in 0 : vector<1x32xf32>, vector<1x32xf32> -> vector<2x32xf32>
    %375 = arith.index_cast %337 : i32 to index
    %c0_207 = arith.constant 0 : index
    %c0_208 = arith.constant 0 : index
    %376 = vector.load %arg14[%375, %c0_207, %c0_208] : memref<17x4x32xf32, #tpu.memory_space<vmem>>, vector<1x1x32xf32>
    %377 = vector.shape_cast %376 : vector<1x1x32xf32> to vector<1x32xf32>
    %378 = arith.index_cast %363 : i32 to index
    %c2_209 = arith.constant 2 : index
    %c0_210 = arith.constant 0 : index
    %379 = vector.load %arg14[%378, %c2_209, %c0_210] : memref<17x4x32xf32, #tpu.memory_space<vmem>>, vector<1x1x32xf32>
    %380 = vector.shape_cast %379 : vector<1x1x32xf32> to vector<1x32xf32>
    %381 = tpu.concatenate %377, %380 in 0 : vector<1x32xf32>, vector<1x32xf32> -> vector<2x32xf32>
    %382 = arith.index_cast %337 : i32 to index
    %c1_211 = arith.constant 1 : index
    %c0_212 = arith.constant 0 : index
    %383 = vector.load %arg13[%382, %c1_211, %c0_212] : memref<17x4x32xf32, #tpu.memory_space<vmem>>, vector<1x1x32xf32>
    %384 = vector.shape_cast %383 : vector<1x1x32xf32> to vector<1x32xf32>
    %385 = arith.index_cast %363 : i32 to index
    %c3_213 = arith.constant 3 : index
    %c0_214 = arith.constant 0 : index
    %386 = vector.load %arg13[%385, %c3_213, %c0_214] : memref<17x4x32xf32, #tpu.memory_space<vmem>>, vector<1x1x32xf32>
    %387 = vector.shape_cast %386 : vector<1x1x32xf32> to vector<1x32xf32>
    %388 = tpu.concatenate %384, %387 in 0 : vector<1x32xf32>, vector<1x32xf32> -> vector<2x32xf32>
    %389 = arith.index_cast %337 : i32 to index
    %c1_215 = arith.constant 1 : index
    %c0_216 = arith.constant 0 : index
    %390 = vector.load %arg14[%389, %c1_215, %c0_216] : memref<17x4x32xf32, #tpu.memory_space<vmem>>, vector<1x1x32xf32>
    %391 = vector.shape_cast %390 : vector<1x1x32xf32> to vector<1x32xf32>
    %392 = arith.index_cast %363 : i32 to index
    %c3_217 = arith.constant 3 : index
    %c0_218 = arith.constant 0 : index
    %393 = vector.load %arg14[%392, %c3_217, %c0_218] : memref<17x4x32xf32, #tpu.memory_space<vmem>>, vector<1x1x32xf32>
    %394 = vector.shape_cast %393 : vector<1x1x32xf32> to vector<1x32xf32>
    %395 = tpu.concatenate %391, %394 in 0 : vector<1x32xf32>, vector<1x32xf32> -> vector<2x32xf32>
    %396 = vector.extract_strided_slice %23 {offsets = [6, 0], sizes = [2, 128], strides = [1, 1]} : vector<16x128xf32> to vector<2x128xf32>
    %cst_219 = arith.constant dense<0.000000e+00> : vector<2x128xf32>
    %397 = tpu.matmul %374, %16, %cst_219 {dimension_numbers = #tpu.dot_dimension_numbers<[1], [0], [0], [1], [0, 0, 1, 1], [], []>} : vector<2x32xf32>, vector<32x128xf32>, vector<2x128xf32> -> vector<2x128xf32>
    %398 = arith.addf %396, %397 : vector<2x128xf32>
    %399 = arith.negf %398 : vector<2x128xf32>
    %400 = math.exp %399 : vector<2x128xf32>
    %cst_220 = arith.constant 1.000000e+00 : f32
    %401 = vector.broadcast %cst_220 : f32 to vector<2x128xf32>
    %402 = arith.addf %401, %400 : vector<2x128xf32>
    %403 = arith.divf %401, %402 : vector<2x128xf32>
    %404 = math.tanh %398 : vector<2x128xf32>
    %405 = vector.extract_strided_slice %403 {offsets = [0, 0], sizes = [2, 32], strides = [1, 1]} : vector<2x128xf32> to vector<2x32xf32>
    %406 = vector.extract_strided_slice %403 {offsets = [0, 32], sizes = [2, 32], strides = [1, 1]} : vector<2x128xf32> to vector<2x32xf32>
    %407 = vector.extract_strided_slice %404 {offsets = [0, 64], sizes = [2, 32], strides = [1, 1]} : vector<2x128xf32> to vector<2x32xf32>
    %408 = vector.extract_strided_slice %403 {offsets = [0, 96], sizes = [2, 32], strides = [1, 1]} : vector<2x128xf32> to vector<2x32xf32>
    %409 = arith.mulf %406, %381 : vector<2x32xf32>
    %410 = arith.mulf %405, %407 : vector<2x32xf32>
    %411 = arith.addf %409, %410 : vector<2x32xf32>
    %412 = math.tanh %411 : vector<2x32xf32>
    %413 = arith.mulf %408, %412 : vector<2x32xf32>
    %cst_221 = arith.constant dense<0.000000e+00> : vector<2x128xf32>
    %414 = tpu.matmul %413, %15, %cst_221 {dimension_numbers = #tpu.dot_dimension_numbers<[1], [0], [0], [1], [0, 0, 1, 1], [], []>} : vector<2x32xf32>, vector<32x128xf32>, vector<2x128xf32> -> vector<2x128xf32>
    %cst_222 = arith.constant dense<0.000000e+00> : vector<2x128xf32>
    %415 = tpu.matmul %388, %17, %cst_222 {dimension_numbers = #tpu.dot_dimension_numbers<[1], [0], [0], [1], [0, 0, 1, 1], [], []>} : vector<2x32xf32>, vector<32x128xf32>, vector<2x128xf32> -> vector<2x128xf32>
    %416 = arith.addf %414, %415 : vector<2x128xf32>
    %417 = vector.broadcast %19 : vector<1x128xf32> to vector<2x128xf32>
    %418 = arith.addf %416, %417 : vector<2x128xf32>
    %419 = arith.negf %418 : vector<2x128xf32>
    %420 = math.exp %419 : vector<2x128xf32>
    %cst_223 = arith.constant 1.000000e+00 : f32
    %421 = vector.broadcast %cst_223 : f32 to vector<2x128xf32>
    %422 = arith.addf %421, %420 : vector<2x128xf32>
    %423 = arith.divf %421, %422 : vector<2x128xf32>
    %424 = math.tanh %418 : vector<2x128xf32>
    %425 = vector.extract_strided_slice %423 {offsets = [0, 0], sizes = [2, 32], strides = [1, 1]} : vector<2x128xf32> to vector<2x32xf32>
    %426 = vector.extract_strided_slice %423 {offsets = [0, 32], sizes = [2, 32], strides = [1, 1]} : vector<2x128xf32> to vector<2x32xf32>
    %427 = vector.extract_strided_slice %424 {offsets = [0, 64], sizes = [2, 32], strides = [1, 1]} : vector<2x128xf32> to vector<2x32xf32>
    %428 = vector.extract_strided_slice %423 {offsets = [0, 96], sizes = [2, 32], strides = [1, 1]} : vector<2x128xf32> to vector<2x32xf32>
    %429 = arith.mulf %426, %395 : vector<2x32xf32>
    %430 = arith.mulf %425, %427 : vector<2x32xf32>
    %431 = arith.addf %429, %430 : vector<2x32xf32>
    %432 = math.tanh %431 : vector<2x32xf32>
    %433 = arith.mulf %428, %432 : vector<2x32xf32>
    %c1_i32_224 = arith.constant 1 : i32
    %434 = arith.addi %337, %c1_i32_224 : i32
    %c16_i32_225 = arith.constant 16 : i32
    %435 = arith.minsi %434, %c16_i32_225 : i32
    %436 = vector.extract_strided_slice %413 {offsets = [0, 0], sizes = [1, 32], strides = [1, 1]} : vector<2x32xf32> to vector<1x32xf32>
    %437 = vector.shape_cast %436 : vector<1x32xf32> to vector<1x1x32xf32>
    %438 = arith.index_cast %435 : i32 to index
    %c0_226 = arith.constant 0 : index
    %c0_227 = arith.constant 0 : index
    %439 = vector.load %arg13[%438, %c0_226, %c0_227] : memref<17x4x32xf32, #tpu.memory_space<vmem>>, vector<1x1x32xf32>
    tpu.vector_store %arg13[%438, %c0_226, %c0_227], %437 {strides = array<i32>} : memref<17x4x32xf32, #tpu.memory_space<vmem>>, vector<1x1x32xf32>,
    %440 = vector.extract_strided_slice %411 {offsets = [0, 0], sizes = [1, 32], strides = [1, 1]} : vector<2x32xf32> to vector<1x32xf32>
    %441 = vector.shape_cast %440 : vector<1x32xf32> to vector<1x1x32xf32>
    %442 = arith.index_cast %435 : i32 to index
    %c0_228 = arith.constant 0 : index
    %c0_229 = arith.constant 0 : index
    %443 = vector.load %arg14[%442, %c0_228, %c0_229] : memref<17x4x32xf32, #tpu.memory_space<vmem>>, vector<1x1x32xf32>
    tpu.vector_store %arg14[%442, %c0_228, %c0_229], %441 {strides = array<i32>} : memref<17x4x32xf32, #tpu.memory_space<vmem>>, vector<1x1x32xf32>,
    %444 = vector.extract_strided_slice %433 {offsets = [0, 0], sizes = [1, 32], strides = [1, 1]} : vector<2x32xf32> to vector<1x32xf32>
    %445 = vector.shape_cast %444 : vector<1x32xf32> to vector<1x1x32xf32>
    %446 = arith.index_cast %435 : i32 to index
    %c1_230 = arith.constant 1 : index
    %c0_231 = arith.constant 0 : index
    %447 = vector.load %arg13[%446, %c1_230, %c0_231] : memref<17x4x32xf32, #tpu.memory_space<vmem>>, vector<1x1x32xf32>
    tpu.vector_store %arg13[%446, %c1_230, %c0_231], %445 {strides = array<i32>} : memref<17x4x32xf32, #tpu.memory_space<vmem>>, vector<1x1x32xf32>,
    %448 = vector.extract_strided_slice %431 {offsets = [0, 0], sizes = [1, 32], strides = [1, 1]} : vector<2x32xf32> to vector<1x32xf32>
    %449 = vector.shape_cast %448 : vector<1x32xf32> to vector<1x1x32xf32>
    %450 = arith.index_cast %435 : i32 to index
    %c1_232 = arith.constant 1 : index
    %c0_233 = arith.constant 0 : index
    %451 = vector.load %arg14[%450, %c1_232, %c0_233] : memref<17x4x32xf32, #tpu.memory_space<vmem>>, vector<1x1x32xf32>
    tpu.vector_store %arg14[%450, %c1_232, %c0_233], %449 {strides = array<i32>} : memref<17x4x32xf32, #tpu.memory_space<vmem>>, vector<1x1x32xf32>,
    %c3_234 = arith.constant 3 : index
    %c0_235 = arith.constant 0 : index
    %452 = memref.load %arg0[%c3_234, %c0_235] : memref<8x2xi32, #tpu.memory_space<smem>>
    %453 = arith.addi %337, %452 : i32
    %c0_i32_236 = arith.constant 0 : i32
    %c16_i32_237 = arith.constant 16 : i32
    %454 = arith.maxsi %c0_i32_236, %453 : i32
    %455 = arith.minsi %c16_i32_237, %454 : i32
    %456 = arith.index_cast %455 : i32 to index
    %c1_238 = arith.constant 1 : index
    %c0_239 = arith.constant 0 : index
    %457 = vector.load %arg13[%456, %c1_238, %c0_239] : memref<17x4x32xf32, #tpu.memory_space<vmem>>, vector<1x1x32xf32>
    %458 = vector.shape_cast %457 : vector<1x1x32xf32> to vector<1x32xf32>
    %c3_240 = arith.constant 3 : index
    %c0_241 = arith.constant 0 : index
    %459 = vector.load %arg15[%c3_240, %c0_241] : memref<16x32xf32, #tpu.memory_space<vmem>>, vector<1x32xf32>
    tpu.vector_store %arg15[%c3_240, %c0_241], %458 {strides = array<i32>} : memref<16x32xf32, #tpu.memory_space<vmem>>, vector<1x32xf32>,
    %c1_i32_242 = arith.constant 1 : i32
    %460 = arith.addi %363, %c1_i32_242 : i32
    %c16_i32_243 = arith.constant 16 : i32
    %461 = arith.minsi %460, %c16_i32_243 : i32
    %462 = vector.extract_strided_slice %413 {offsets = [1, 0], sizes = [1, 32], strides = [1, 1]} : vector<2x32xf32> to vector<1x32xf32>
    %463 = vector.shape_cast %462 : vector<1x32xf32> to vector<1x1x32xf32>
    %464 = arith.index_cast %461 : i32 to index
    %c2_244 = arith.constant 2 : index
    %c0_245 = arith.constant 0 : index
    %465 = vector.load %arg13[%464, %c2_244, %c0_245] : memref<17x4x32xf32, #tpu.memory_space<vmem>>, vector<1x1x32xf32>
    tpu.vector_store %arg13[%464, %c2_244, %c0_245], %463 {strides = array<i32>} : memref<17x4x32xf32, #tpu.memory_space<vmem>>, vector<1x1x32xf32>,
    %466 = vector.extract_strided_slice %411 {offsets = [1, 0], sizes = [1, 32], strides = [1, 1]} : vector<2x32xf32> to vector<1x32xf32>
    %467 = vector.shape_cast %466 : vector<1x32xf32> to vector<1x1x32xf32>
    %468 = arith.index_cast %461 : i32 to index
    %c2_246 = arith.constant 2 : index
    %c0_247 = arith.constant 0 : index
    %469 = vector.load %arg14[%468, %c2_246, %c0_247] : memref<17x4x32xf32, #tpu.memory_space<vmem>>, vector<1x1x32xf32>
    tpu.vector_store %arg14[%468, %c2_246, %c0_247], %467 {strides = array<i32>} : memref<17x4x32xf32, #tpu.memory_space<vmem>>, vector<1x1x32xf32>,
    %470 = vector.extract_strided_slice %433 {offsets = [1, 0], sizes = [1, 32], strides = [1, 1]} : vector<2x32xf32> to vector<1x32xf32>
    %471 = vector.shape_cast %470 : vector<1x32xf32> to vector<1x1x32xf32>
    %472 = arith.index_cast %461 : i32 to index
    %c3_248 = arith.constant 3 : index
    %c0_249 = arith.constant 0 : index
    %473 = vector.load %arg13[%472, %c3_248, %c0_249] : memref<17x4x32xf32, #tpu.memory_space<vmem>>, vector<1x1x32xf32>
    tpu.vector_store %arg13[%472, %c3_248, %c0_249], %471 {strides = array<i32>} : memref<17x4x32xf32, #tpu.memory_space<vmem>>, vector<1x1x32xf32>,
    %474 = vector.extract_strided_slice %431 {offsets = [1, 0], sizes = [1, 32], strides = [1, 1]} : vector<2x32xf32> to vector<1x32xf32>
    %475 = vector.shape_cast %474 : vector<1x32xf32> to vector<1x1x32xf32>
    %476 = arith.index_cast %461 : i32 to index
    %c3_250 = arith.constant 3 : index
    %c0_251 = arith.constant 0 : index
    %477 = vector.load %arg14[%476, %c3_250, %c0_251] : memref<17x4x32xf32, #tpu.memory_space<vmem>>, vector<1x1x32xf32>
    tpu.vector_store %arg14[%476, %c3_250, %c0_251], %475 {strides = array<i32>} : memref<17x4x32xf32, #tpu.memory_space<vmem>>, vector<1x1x32xf32>,
    %c3_252 = arith.constant 3 : index
    %c1_253 = arith.constant 1 : index
    %478 = memref.load %arg0[%c3_252, %c1_253] : memref<8x2xi32, #tpu.memory_space<smem>>
    %479 = arith.addi %363, %478 : i32
    %c0_i32_254 = arith.constant 0 : i32
    %c16_i32_255 = arith.constant 16 : i32
    %480 = arith.maxsi %c0_i32_254, %479 : i32
    %481 = arith.minsi %c16_i32_255, %480 : i32
    %482 = arith.index_cast %481 : i32 to index
    %c3_256 = arith.constant 3 : index
    %c0_257 = arith.constant 0 : index
    %483 = vector.load %arg13[%482, %c3_256, %c0_257] : memref<17x4x32xf32, #tpu.memory_space<vmem>>, vector<1x1x32xf32>
    %484 = vector.shape_cast %483 : vector<1x1x32xf32> to vector<1x32xf32>
    %c11 = arith.constant 11 : index
    %c0_258 = arith.constant 0 : index
    %485 = vector.load %arg15[%c11, %c0_258] : memref<16x32xf32, #tpu.memory_space<vmem>>, vector<1x32xf32>
    tpu.vector_store %arg15[%c11, %c0_258], %484 {strides = array<i32>} : memref<16x32xf32, #tpu.memory_space<vmem>>, vector<1x32xf32>,
    %486 = arith.index_cast %455 : i32 to index
    %c0_259 = arith.constant 0 : index
    %c0_260 = arith.constant 0 : index
    %487 = vector.load %arg13[%486, %c0_259, %c0_260] : memref<17x4x32xf32, #tpu.memory_space<vmem>>, vector<1x1x32xf32>
    %488 = vector.shape_cast %487 : vector<1x1x32xf32> to vector<1x32xf32>
    %489 = arith.index_cast %481 : i32 to index
    %c2_261 = arith.constant 2 : index
    %c0_262 = arith.constant 0 : index
    %490 = vector.load %arg13[%489, %c2_261, %c0_262] : memref<17x4x32xf32, #tpu.memory_space<vmem>>, vector<1x1x32xf32>
    %491 = vector.shape_cast %490 : vector<1x1x32xf32> to vector<1x32xf32>
    %492 = tpu.concatenate %488, %491 in 0 : vector<1x32xf32>, vector<1x32xf32> -> vector<2x32xf32>
    %493 = arith.index_cast %455 : i32 to index
    %c0_263 = arith.constant 0 : index
    %c0_264 = arith.constant 0 : index
    %494 = vector.load %arg14[%493, %c0_263, %c0_264] : memref<17x4x32xf32, #tpu.memory_space<vmem>>, vector<1x1x32xf32>
    %495 = vector.shape_cast %494 : vector<1x1x32xf32> to vector<1x32xf32>
    %496 = arith.index_cast %481 : i32 to index
    %c2_265 = arith.constant 2 : index
    %c0_266 = arith.constant 0 : index
    %497 = vector.load %arg14[%496, %c2_265, %c0_266] : memref<17x4x32xf32, #tpu.memory_space<vmem>>, vector<1x1x32xf32>
    %498 = vector.shape_cast %497 : vector<1x1x32xf32> to vector<1x32xf32>
    %499 = tpu.concatenate %495, %498 in 0 : vector<1x32xf32>, vector<1x32xf32> -> vector<2x32xf32>
    %500 = arith.index_cast %455 : i32 to index
    %c1_267 = arith.constant 1 : index
    %c0_268 = arith.constant 0 : index
    %501 = vector.load %arg13[%500, %c1_267, %c0_268] : memref<17x4x32xf32, #tpu.memory_space<vmem>>, vector<1x1x32xf32>
    %502 = vector.shape_cast %501 : vector<1x1x32xf32> to vector<1x32xf32>
    %503 = arith.index_cast %481 : i32 to index
    %c3_269 = arith.constant 3 : index
    %c0_270 = arith.constant 0 : index
    %504 = vector.load %arg13[%503, %c3_269, %c0_270] : memref<17x4x32xf32, #tpu.memory_space<vmem>>, vector<1x1x32xf32>
    %505 = vector.shape_cast %504 : vector<1x1x32xf32> to vector<1x32xf32>
    %506 = tpu.concatenate %502, %505 in 0 : vector<1x32xf32>, vector<1x32xf32> -> vector<2x32xf32>
    %507 = arith.index_cast %455 : i32 to index
    %c1_271 = arith.constant 1 : index
    %c0_272 = arith.constant 0 : index
    %508 = vector.load %arg14[%507, %c1_271, %c0_272] : memref<17x4x32xf32, #tpu.memory_space<vmem>>, vector<1x1x32xf32>
    %509 = vector.shape_cast %508 : vector<1x1x32xf32> to vector<1x32xf32>
    %510 = arith.index_cast %481 : i32 to index
    %c3_273 = arith.constant 3 : index
    %c0_274 = arith.constant 0 : index
    %511 = vector.load %arg14[%510, %c3_273, %c0_274] : memref<17x4x32xf32, #tpu.memory_space<vmem>>, vector<1x1x32xf32>
    %512 = vector.shape_cast %511 : vector<1x1x32xf32> to vector<1x32xf32>
    %513 = tpu.concatenate %509, %512 in 0 : vector<1x32xf32>, vector<1x32xf32> -> vector<2x32xf32>
    %514 = vector.extract_strided_slice %23 {offsets = [8, 0], sizes = [2, 128], strides = [1, 1]} : vector<16x128xf32> to vector<2x128xf32>
    %cst_275 = arith.constant dense<0.000000e+00> : vector<2x128xf32>
    %515 = tpu.matmul %492, %16, %cst_275 {dimension_numbers = #tpu.dot_dimension_numbers<[1], [0], [0], [1], [0, 0, 1, 1], [], []>} : vector<2x32xf32>, vector<32x128xf32>, vector<2x128xf32> -> vector<2x128xf32>
    %516 = arith.addf %514, %515 : vector<2x128xf32>
    %517 = arith.negf %516 : vector<2x128xf32>
    %518 = math.exp %517 : vector<2x128xf32>
    %cst_276 = arith.constant 1.000000e+00 : f32
    %519 = vector.broadcast %cst_276 : f32 to vector<2x128xf32>
    %520 = arith.addf %519, %518 : vector<2x128xf32>
    %521 = arith.divf %519, %520 : vector<2x128xf32>
    %522 = math.tanh %516 : vector<2x128xf32>
    %523 = vector.extract_strided_slice %521 {offsets = [0, 0], sizes = [2, 32], strides = [1, 1]} : vector<2x128xf32> to vector<2x32xf32>
    %524 = vector.extract_strided_slice %521 {offsets = [0, 32], sizes = [2, 32], strides = [1, 1]} : vector<2x128xf32> to vector<2x32xf32>
    %525 = vector.extract_strided_slice %522 {offsets = [0, 64], sizes = [2, 32], strides = [1, 1]} : vector<2x128xf32> to vector<2x32xf32>
    %526 = vector.extract_strided_slice %521 {offsets = [0, 96], sizes = [2, 32], strides = [1, 1]} : vector<2x128xf32> to vector<2x32xf32>
    %527 = arith.mulf %524, %499 : vector<2x32xf32>
    %528 = arith.mulf %523, %525 : vector<2x32xf32>
    %529 = arith.addf %527, %528 : vector<2x32xf32>
    %530 = math.tanh %529 : vector<2x32xf32>
    %531 = arith.mulf %526, %530 : vector<2x32xf32>
    %cst_277 = arith.constant dense<0.000000e+00> : vector<2x128xf32>
    %532 = tpu.matmul %531, %15, %cst_277 {dimension_numbers = #tpu.dot_dimension_numbers<[1], [0], [0], [1], [0, 0, 1, 1], [], []>} : vector<2x32xf32>, vector<32x128xf32>, vector<2x128xf32> -> vector<2x128xf32>
    %cst_278 = arith.constant dense<0.000000e+00> : vector<2x128xf32>
    %533 = tpu.matmul %506, %17, %cst_278 {dimension_numbers = #tpu.dot_dimension_numbers<[1], [0], [0], [1], [0, 0, 1, 1], [], []>} : vector<2x32xf32>, vector<32x128xf32>, vector<2x128xf32> -> vector<2x128xf32>
    %534 = arith.addf %532, %533 : vector<2x128xf32>
    %535 = vector.broadcast %19 : vector<1x128xf32> to vector<2x128xf32>
    %536 = arith.addf %534, %535 : vector<2x128xf32>
    %537 = arith.negf %536 : vector<2x128xf32>
    %538 = math.exp %537 : vector<2x128xf32>
    %cst_279 = arith.constant 1.000000e+00 : f32
    %539 = vector.broadcast %cst_279 : f32 to vector<2x128xf32>
    %540 = arith.addf %539, %538 : vector<2x128xf32>
    %541 = arith.divf %539, %540 : vector<2x128xf32>
    %542 = math.tanh %536 : vector<2x128xf32>
    %543 = vector.extract_strided_slice %541 {offsets = [0, 0], sizes = [2, 32], strides = [1, 1]} : vector<2x128xf32> to vector<2x32xf32>
    %544 = vector.extract_strided_slice %541 {offsets = [0, 32], sizes = [2, 32], strides = [1, 1]} : vector<2x128xf32> to vector<2x32xf32>
    %545 = vector.extract_strided_slice %542 {offsets = [0, 64], sizes = [2, 32], strides = [1, 1]} : vector<2x128xf32> to vector<2x32xf32>
    %546 = vector.extract_strided_slice %541 {offsets = [0, 96], sizes = [2, 32], strides = [1, 1]} : vector<2x128xf32> to vector<2x32xf32>
    %547 = arith.mulf %544, %513 : vector<2x32xf32>
    %548 = arith.mulf %543, %545 : vector<2x32xf32>
    %549 = arith.addf %547, %548 : vector<2x32xf32>
    %550 = math.tanh %549 : vector<2x32xf32>
    %551 = arith.mulf %546, %550 : vector<2x32xf32>
    %c1_i32_280 = arith.constant 1 : i32
    %552 = arith.addi %455, %c1_i32_280 : i32
    %c16_i32_281 = arith.constant 16 : i32
    %553 = arith.minsi %552, %c16_i32_281 : i32
    %554 = vector.extract_strided_slice %531 {offsets = [0, 0], sizes = [1, 32], strides = [1, 1]} : vector<2x32xf32> to vector<1x32xf32>
    %555 = vector.shape_cast %554 : vector<1x32xf32> to vector<1x1x32xf32>
    %556 = arith.index_cast %553 : i32 to index
    %c0_282 = arith.constant 0 : index
    %c0_283 = arith.constant 0 : index
    %557 = vector.load %arg13[%556, %c0_282, %c0_283] : memref<17x4x32xf32, #tpu.memory_space<vmem>>, vector<1x1x32xf32>
    tpu.vector_store %arg13[%556, %c0_282, %c0_283], %555 {strides = array<i32>} : memref<17x4x32xf32, #tpu.memory_space<vmem>>, vector<1x1x32xf32>,
    %558 = vector.extract_strided_slice %529 {offsets = [0, 0], sizes = [1, 32], strides = [1, 1]} : vector<2x32xf32> to vector<1x32xf32>
    %559 = vector.shape_cast %558 : vector<1x32xf32> to vector<1x1x32xf32>
    %560 = arith.index_cast %553 : i32 to index
    %c0_284 = arith.constant 0 : index
    %c0_285 = arith.constant 0 : index
    %561 = vector.load %arg14[%560, %c0_284, %c0_285] : memref<17x4x32xf32, #tpu.memory_space<vmem>>, vector<1x1x32xf32>
    tpu.vector_store %arg14[%560, %c0_284, %c0_285], %559 {strides = array<i32>} : memref<17x4x32xf32, #tpu.memory_space<vmem>>, vector<1x1x32xf32>,
    %562 = vector.extract_strided_slice %551 {offsets = [0, 0], sizes = [1, 32], strides = [1, 1]} : vector<2x32xf32> to vector<1x32xf32>
    %563 = vector.shape_cast %562 : vector<1x32xf32> to vector<1x1x32xf32>
    %564 = arith.index_cast %553 : i32 to index
    %c1_286 = arith.constant 1 : index
    %c0_287 = arith.constant 0 : index
    %565 = vector.load %arg13[%564, %c1_286, %c0_287] : memref<17x4x32xf32, #tpu.memory_space<vmem>>, vector<1x1x32xf32>
    tpu.vector_store %arg13[%564, %c1_286, %c0_287], %563 {strides = array<i32>} : memref<17x4x32xf32, #tpu.memory_space<vmem>>, vector<1x1x32xf32>,
    %566 = vector.extract_strided_slice %549 {offsets = [0, 0], sizes = [1, 32], strides = [1, 1]} : vector<2x32xf32> to vector<1x32xf32>
    %567 = vector.shape_cast %566 : vector<1x32xf32> to vector<1x1x32xf32>
    %568 = arith.index_cast %553 : i32 to index
    %c1_288 = arith.constant 1 : index
    %c0_289 = arith.constant 0 : index
    %569 = vector.load %arg14[%568, %c1_288, %c0_289] : memref<17x4x32xf32, #tpu.memory_space<vmem>>, vector<1x1x32xf32>
    tpu.vector_store %arg14[%568, %c1_288, %c0_289], %567 {strides = array<i32>} : memref<17x4x32xf32, #tpu.memory_space<vmem>>, vector<1x1x32xf32>,
    %c4 = arith.constant 4 : index
    %c0_290 = arith.constant 0 : index
    %570 = memref.load %arg0[%c4, %c0_290] : memref<8x2xi32, #tpu.memory_space<smem>>
    %571 = arith.addi %455, %570 : i32
    %c0_i32_291 = arith.constant 0 : i32
    %c16_i32_292 = arith.constant 16 : i32
    %572 = arith.maxsi %c0_i32_291, %571 : i32
    %573 = arith.minsi %c16_i32_292, %572 : i32
    %574 = arith.index_cast %573 : i32 to index
    %c1_293 = arith.constant 1 : index
    %c0_294 = arith.constant 0 : index
    %575 = vector.load %arg13[%574, %c1_293, %c0_294] : memref<17x4x32xf32, #tpu.memory_space<vmem>>, vector<1x1x32xf32>
    %576 = vector.shape_cast %575 : vector<1x1x32xf32> to vector<1x32xf32>
    %c4_295 = arith.constant 4 : index
    %c0_296 = arith.constant 0 : index
    %577 = vector.load %arg15[%c4_295, %c0_296] : memref<16x32xf32, #tpu.memory_space<vmem>>, vector<1x32xf32>
    tpu.vector_store %arg15[%c4_295, %c0_296], %576 {strides = array<i32>} : memref<16x32xf32, #tpu.memory_space<vmem>>, vector<1x32xf32>,
    %c1_i32_297 = arith.constant 1 : i32
    %578 = arith.addi %481, %c1_i32_297 : i32
    %c16_i32_298 = arith.constant 16 : i32
    %579 = arith.minsi %578, %c16_i32_298 : i32
    %580 = vector.extract_strided_slice %531 {offsets = [1, 0], sizes = [1, 32], strides = [1, 1]} : vector<2x32xf32> to vector<1x32xf32>
    %581 = vector.shape_cast %580 : vector<1x32xf32> to vector<1x1x32xf32>
    %582 = arith.index_cast %579 : i32 to index
    %c2_299 = arith.constant 2 : index
    %c0_300 = arith.constant 0 : index
    %583 = vector.load %arg13[%582, %c2_299, %c0_300] : memref<17x4x32xf32, #tpu.memory_space<vmem>>, vector<1x1x32xf32>
    tpu.vector_store %arg13[%582, %c2_299, %c0_300], %581 {strides = array<i32>} : memref<17x4x32xf32, #tpu.memory_space<vmem>>, vector<1x1x32xf32>,
    %584 = vector.extract_strided_slice %529 {offsets = [1, 0], sizes = [1, 32], strides = [1, 1]} : vector<2x32xf32> to vector<1x32xf32>
    %585 = vector.shape_cast %584 : vector<1x32xf32> to vector<1x1x32xf32>
    %586 = arith.index_cast %579 : i32 to index
    %c2_301 = arith.constant 2 : index
    %c0_302 = arith.constant 0 : index
    %587 = vector.load %arg14[%586, %c2_301, %c0_302] : memref<17x4x32xf32, #tpu.memory_space<vmem>>, vector<1x1x32xf32>
    tpu.vector_store %arg14[%586, %c2_301, %c0_302], %585 {strides = array<i32>} : memref<17x4x32xf32, #tpu.memory_space<vmem>>, vector<1x1x32xf32>,
    %588 = vector.extract_strided_slice %551 {offsets = [1, 0], sizes = [1, 32], strides = [1, 1]} : vector<2x32xf32> to vector<1x32xf32>
    %589 = vector.shape_cast %588 : vector<1x32xf32> to vector<1x1x32xf32>
    %590 = arith.index_cast %579 : i32 to index
    %c3_303 = arith.constant 3 : index
    %c0_304 = arith.constant 0 : index
    %591 = vector.load %arg13[%590, %c3_303, %c0_304] : memref<17x4x32xf32, #tpu.memory_space<vmem>>, vector<1x1x32xf32>
    tpu.vector_store %arg13[%590, %c3_303, %c0_304], %589 {strides = array<i32>} : memref<17x4x32xf32, #tpu.memory_space<vmem>>, vector<1x1x32xf32>,
    %592 = vector.extract_strided_slice %549 {offsets = [1, 0], sizes = [1, 32], strides = [1, 1]} : vector<2x32xf32> to vector<1x32xf32>
    %593 = vector.shape_cast %592 : vector<1x32xf32> to vector<1x1x32xf32>
    %594 = arith.index_cast %579 : i32 to index
    %c3_305 = arith.constant 3 : index
    %c0_306 = arith.constant 0 : index
    %595 = vector.load %arg14[%594, %c3_305, %c0_306] : memref<17x4x32xf32, #tpu.memory_space<vmem>>, vector<1x1x32xf32>
    tpu.vector_store %arg14[%594, %c3_305, %c0_306], %593 {strides = array<i32>} : memref<17x4x32xf32, #tpu.memory_space<vmem>>, vector<1x1x32xf32>,
    %c4_307 = arith.constant 4 : index
    %c1_308 = arith.constant 1 : index
    %596 = memref.load %arg0[%c4_307, %c1_308] : memref<8x2xi32, #tpu.memory_space<smem>>
    %597 = arith.addi %481, %596 : i32
    %c0_i32_309 = arith.constant 0 : i32
    %c16_i32_310 = arith.constant 16 : i32
    %598 = arith.maxsi %c0_i32_309, %597 : i32
    %599 = arith.minsi %c16_i32_310, %598 : i32
    %600 = arith.index_cast %599 : i32 to index
    %c3_311 = arith.constant 3 : index
    %c0_312 = arith.constant 0 : index
    %601 = vector.load %arg13[%600, %c3_311, %c0_312] : memref<17x4x32xf32, #tpu.memory_space<vmem>>, vector<1x1x32xf32>
    %602 = vector.shape_cast %601 : vector<1x1x32xf32> to vector<1x32xf32>
    %c12 = arith.constant 12 : index
    %c0_313 = arith.constant 0 : index
    %603 = vector.load %arg15[%c12, %c0_313] : memref<16x32xf32, #tpu.memory_space<vmem>>, vector<1x32xf32>
    tpu.vector_store %arg15[%c12, %c0_313], %602 {strides = array<i32>} : memref<16x32xf32, #tpu.memory_space<vmem>>, vector<1x32xf32>,
    %604 = arith.index_cast %573 : i32 to index
    %c0_314 = arith.constant 0 : index
    %c0_315 = arith.constant 0 : index
    %605 = vector.load %arg13[%604, %c0_314, %c0_315] : memref<17x4x32xf32, #tpu.memory_space<vmem>>, vector<1x1x32xf32>
    %606 = vector.shape_cast %605 : vector<1x1x32xf32> to vector<1x32xf32>
    %607 = arith.index_cast %599 : i32 to index
    %c2_316 = arith.constant 2 : index
    %c0_317 = arith.constant 0 : index
    %608 = vector.load %arg13[%607, %c2_316, %c0_317] : memref<17x4x32xf32, #tpu.memory_space<vmem>>, vector<1x1x32xf32>
    %609 = vector.shape_cast %608 : vector<1x1x32xf32> to vector<1x32xf32>
    %610 = tpu.concatenate %606, %609 in 0 : vector<1x32xf32>, vector<1x32xf32> -> vector<2x32xf32>
    %611 = arith.index_cast %573 : i32 to index
    %c0_318 = arith.constant 0 : index
    %c0_319 = arith.constant 0 : index
    %612 = vector.load %arg14[%611, %c0_318, %c0_319] : memref<17x4x32xf32, #tpu.memory_space<vmem>>, vector<1x1x32xf32>
    %613 = vector.shape_cast %612 : vector<1x1x32xf32> to vector<1x32xf32>
    %614 = arith.index_cast %599 : i32 to index
    %c2_320 = arith.constant 2 : index
    %c0_321 = arith.constant 0 : index
    %615 = vector.load %arg14[%614, %c2_320, %c0_321] : memref<17x4x32xf32, #tpu.memory_space<vmem>>, vector<1x1x32xf32>
    %616 = vector.shape_cast %615 : vector<1x1x32xf32> to vector<1x32xf32>
    %617 = tpu.concatenate %613, %616 in 0 : vector<1x32xf32>, vector<1x32xf32> -> vector<2x32xf32>
    %618 = arith.index_cast %573 : i32 to index
    %c1_322 = arith.constant 1 : index
    %c0_323 = arith.constant 0 : index
    %619 = vector.load %arg13[%618, %c1_322, %c0_323] : memref<17x4x32xf32, #tpu.memory_space<vmem>>, vector<1x1x32xf32>
    %620 = vector.shape_cast %619 : vector<1x1x32xf32> to vector<1x32xf32>
    %621 = arith.index_cast %599 : i32 to index
    %c3_324 = arith.constant 3 : index
    %c0_325 = arith.constant 0 : index
    %622 = vector.load %arg13[%621, %c3_324, %c0_325] : memref<17x4x32xf32, #tpu.memory_space<vmem>>, vector<1x1x32xf32>
    %623 = vector.shape_cast %622 : vector<1x1x32xf32> to vector<1x32xf32>
    %624 = tpu.concatenate %620, %623 in 0 : vector<1x32xf32>, vector<1x32xf32> -> vector<2x32xf32>
    %625 = arith.index_cast %573 : i32 to index
    %c1_326 = arith.constant 1 : index
    %c0_327 = arith.constant 0 : index
    %626 = vector.load %arg14[%625, %c1_326, %c0_327] : memref<17x4x32xf32, #tpu.memory_space<vmem>>, vector<1x1x32xf32>
    %627 = vector.shape_cast %626 : vector<1x1x32xf32> to vector<1x32xf32>
    %628 = arith.index_cast %599 : i32 to index
    %c3_328 = arith.constant 3 : index
    %c0_329 = arith.constant 0 : index
    %629 = vector.load %arg14[%628, %c3_328, %c0_329] : memref<17x4x32xf32, #tpu.memory_space<vmem>>, vector<1x1x32xf32>
    %630 = vector.shape_cast %629 : vector<1x1x32xf32> to vector<1x32xf32>
    %631 = tpu.concatenate %627, %630 in 0 : vector<1x32xf32>, vector<1x32xf32> -> vector<2x32xf32>
    %632 = vector.extract_strided_slice %23 {offsets = [10, 0], sizes = [2, 128], strides = [1, 1]} : vector<16x128xf32> to vector<2x128xf32>
    %cst_330 = arith.constant dense<0.000000e+00> : vector<2x128xf32>
    %633 = tpu.matmul %610, %16, %cst_330 {dimension_numbers = #tpu.dot_dimension_numbers<[1], [0], [0], [1], [0, 0, 1, 1], [], []>} : vector<2x32xf32>, vector<32x128xf32>, vector<2x128xf32> -> vector<2x128xf32>
    %634 = arith.addf %632, %633 : vector<2x128xf32>
    %635 = arith.negf %634 : vector<2x128xf32>
    %636 = math.exp %635 : vector<2x128xf32>
    %cst_331 = arith.constant 1.000000e+00 : f32
    %637 = vector.broadcast %cst_331 : f32 to vector<2x128xf32>
    %638 = arith.addf %637, %636 : vector<2x128xf32>
    %639 = arith.divf %637, %638 : vector<2x128xf32>
    %640 = math.tanh %634 : vector<2x128xf32>
    %641 = vector.extract_strided_slice %639 {offsets = [0, 0], sizes = [2, 32], strides = [1, 1]} : vector<2x128xf32> to vector<2x32xf32>
    %642 = vector.extract_strided_slice %639 {offsets = [0, 32], sizes = [2, 32], strides = [1, 1]} : vector<2x128xf32> to vector<2x32xf32>
    %643 = vector.extract_strided_slice %640 {offsets = [0, 64], sizes = [2, 32], strides = [1, 1]} : vector<2x128xf32> to vector<2x32xf32>
    %644 = vector.extract_strided_slice %639 {offsets = [0, 96], sizes = [2, 32], strides = [1, 1]} : vector<2x128xf32> to vector<2x32xf32>
    %645 = arith.mulf %642, %617 : vector<2x32xf32>
    %646 = arith.mulf %641, %643 : vector<2x32xf32>
    %647 = arith.addf %645, %646 : vector<2x32xf32>
    %648 = math.tanh %647 : vector<2x32xf32>
    %649 = arith.mulf %644, %648 : vector<2x32xf32>
    %cst_332 = arith.constant dense<0.000000e+00> : vector<2x128xf32>
    %650 = tpu.matmul %649, %15, %cst_332 {dimension_numbers = #tpu.dot_dimension_numbers<[1], [0], [0], [1], [0, 0, 1, 1], [], []>} : vector<2x32xf32>, vector<32x128xf32>, vector<2x128xf32> -> vector<2x128xf32>
    %cst_333 = arith.constant dense<0.000000e+00> : vector<2x128xf32>
    %651 = tpu.matmul %624, %17, %cst_333 {dimension_numbers = #tpu.dot_dimension_numbers<[1], [0], [0], [1], [0, 0, 1, 1], [], []>} : vector<2x32xf32>, vector<32x128xf32>, vector<2x128xf32> -> vector<2x128xf32>
    %652 = arith.addf %650, %651 : vector<2x128xf32>
    %653 = vector.broadcast %19 : vector<1x128xf32> to vector<2x128xf32>
    %654 = arith.addf %652, %653 : vector<2x128xf32>
    %655 = arith.negf %654 : vector<2x128xf32>
    %656 = math.exp %655 : vector<2x128xf32>
    %cst_334 = arith.constant 1.000000e+00 : f32
    %657 = vector.broadcast %cst_334 : f32 to vector<2x128xf32>
    %658 = arith.addf %657, %656 : vector<2x128xf32>
    %659 = arith.divf %657, %658 : vector<2x128xf32>
    %660 = math.tanh %654 : vector<2x128xf32>
    %661 = vector.extract_strided_slice %659 {offsets = [0, 0], sizes = [2, 32], strides = [1, 1]} : vector<2x128xf32> to vector<2x32xf32>
    %662 = vector.extract_strided_slice %659 {offsets = [0, 32], sizes = [2, 32], strides = [1, 1]} : vector<2x128xf32> to vector<2x32xf32>
    %663 = vector.extract_strided_slice %660 {offsets = [0, 64], sizes = [2, 32], strides = [1, 1]} : vector<2x128xf32> to vector<2x32xf32>
    %664 = vector.extract_strided_slice %659 {offsets = [0, 96], sizes = [2, 32], strides = [1, 1]} : vector<2x128xf32> to vector<2x32xf32>
    %665 = arith.mulf %662, %631 : vector<2x32xf32>
    %666 = arith.mulf %661, %663 : vector<2x32xf32>
    %667 = arith.addf %665, %666 : vector<2x32xf32>
    %668 = math.tanh %667 : vector<2x32xf32>
    %669 = arith.mulf %664, %668 : vector<2x32xf32>
    %c1_i32_335 = arith.constant 1 : i32
    %670 = arith.addi %573, %c1_i32_335 : i32
    %c16_i32_336 = arith.constant 16 : i32
    %671 = arith.minsi %670, %c16_i32_336 : i32
    %672 = vector.extract_strided_slice %649 {offsets = [0, 0], sizes = [1, 32], strides = [1, 1]} : vector<2x32xf32> to vector<1x32xf32>
    %673 = vector.shape_cast %672 : vector<1x32xf32> to vector<1x1x32xf32>
    %674 = arith.index_cast %671 : i32 to index
    %c0_337 = arith.constant 0 : index
    %c0_338 = arith.constant 0 : index
    %675 = vector.load %arg13[%674, %c0_337, %c0_338] : memref<17x4x32xf32, #tpu.memory_space<vmem>>, vector<1x1x32xf32>
    tpu.vector_store %arg13[%674, %c0_337, %c0_338], %673 {strides = array<i32>} : memref<17x4x32xf32, #tpu.memory_space<vmem>>, vector<1x1x32xf32>,
    %676 = vector.extract_strided_slice %647 {offsets = [0, 0], sizes = [1, 32], strides = [1, 1]} : vector<2x32xf32> to vector<1x32xf32>
    %677 = vector.shape_cast %676 : vector<1x32xf32> to vector<1x1x32xf32>
    %678 = arith.index_cast %671 : i32 to index
    %c0_339 = arith.constant 0 : index
    %c0_340 = arith.constant 0 : index
    %679 = vector.load %arg14[%678, %c0_339, %c0_340] : memref<17x4x32xf32, #tpu.memory_space<vmem>>, vector<1x1x32xf32>
    tpu.vector_store %arg14[%678, %c0_339, %c0_340], %677 {strides = array<i32>} : memref<17x4x32xf32, #tpu.memory_space<vmem>>, vector<1x1x32xf32>,
    %680 = vector.extract_strided_slice %669 {offsets = [0, 0], sizes = [1, 32], strides = [1, 1]} : vector<2x32xf32> to vector<1x32xf32>
    %681 = vector.shape_cast %680 : vector<1x32xf32> to vector<1x1x32xf32>
    %682 = arith.index_cast %671 : i32 to index
    %c1_341 = arith.constant 1 : index
    %c0_342 = arith.constant 0 : index
    %683 = vector.load %arg13[%682, %c1_341, %c0_342] : memref<17x4x32xf32, #tpu.memory_space<vmem>>, vector<1x1x32xf32>
    tpu.vector_store %arg13[%682, %c1_341, %c0_342], %681 {strides = array<i32>} : memref<17x4x32xf32, #tpu.memory_space<vmem>>, vector<1x1x32xf32>,
    %684 = vector.extract_strided_slice %667 {offsets = [0, 0], sizes = [1, 32], strides = [1, 1]} : vector<2x32xf32> to vector<1x32xf32>
    %685 = vector.shape_cast %684 : vector<1x32xf32> to vector<1x1x32xf32>
    %686 = arith.index_cast %671 : i32 to index
    %c1_343 = arith.constant 1 : index
    %c0_344 = arith.constant 0 : index
    %687 = vector.load %arg14[%686, %c1_343, %c0_344] : memref<17x4x32xf32, #tpu.memory_space<vmem>>, vector<1x1x32xf32>
    tpu.vector_store %arg14[%686, %c1_343, %c0_344], %685 {strides = array<i32>} : memref<17x4x32xf32, #tpu.memory_space<vmem>>, vector<1x1x32xf32>,
    %c5 = arith.constant 5 : index
    %c0_345 = arith.constant 0 : index
    %688 = memref.load %arg0[%c5, %c0_345] : memref<8x2xi32, #tpu.memory_space<smem>>
    %689 = arith.addi %573, %688 : i32
    %c0_i32_346 = arith.constant 0 : i32
    %c16_i32_347 = arith.constant 16 : i32
    %690 = arith.maxsi %c0_i32_346, %689 : i32
    %691 = arith.minsi %c16_i32_347, %690 : i32
    %692 = arith.index_cast %691 : i32 to index
    %c1_348 = arith.constant 1 : index
    %c0_349 = arith.constant 0 : index
    %693 = vector.load %arg13[%692, %c1_348, %c0_349] : memref<17x4x32xf32, #tpu.memory_space<vmem>>, vector<1x1x32xf32>
    %694 = vector.shape_cast %693 : vector<1x1x32xf32> to vector<1x32xf32>
    %c5_350 = arith.constant 5 : index
    %c0_351 = arith.constant 0 : index
    %695 = vector.load %arg15[%c5_350, %c0_351] : memref<16x32xf32, #tpu.memory_space<vmem>>, vector<1x32xf32>
    tpu.vector_store %arg15[%c5_350, %c0_351], %694 {strides = array<i32>} : memref<16x32xf32, #tpu.memory_space<vmem>>, vector<1x32xf32>,
    %c1_i32_352 = arith.constant 1 : i32
    %696 = arith.addi %599, %c1_i32_352 : i32
    %c16_i32_353 = arith.constant 16 : i32
    %697 = arith.minsi %696, %c16_i32_353 : i32
    %698 = vector.extract_strided_slice %649 {offsets = [1, 0], sizes = [1, 32], strides = [1, 1]} : vector<2x32xf32> to vector<1x32xf32>
    %699 = vector.shape_cast %698 : vector<1x32xf32> to vector<1x1x32xf32>
    %700 = arith.index_cast %697 : i32 to index
    %c2_354 = arith.constant 2 : index
    %c0_355 = arith.constant 0 : index
    %701 = vector.load %arg13[%700, %c2_354, %c0_355] : memref<17x4x32xf32, #tpu.memory_space<vmem>>, vector<1x1x32xf32>
    tpu.vector_store %arg13[%700, %c2_354, %c0_355], %699 {strides = array<i32>} : memref<17x4x32xf32, #tpu.memory_space<vmem>>, vector<1x1x32xf32>,
    %702 = vector.extract_strided_slice %647 {offsets = [1, 0], sizes = [1, 32], strides = [1, 1]} : vector<2x32xf32> to vector<1x32xf32>
    %703 = vector.shape_cast %702 : vector<1x32xf32> to vector<1x1x32xf32>
    %704 = arith.index_cast %697 : i32 to index
    %c2_356 = arith.constant 2 : index
    %c0_357 = arith.constant 0 : index
    %705 = vector.load %arg14[%704, %c2_356, %c0_357] : memref<17x4x32xf32, #tpu.memory_space<vmem>>, vector<1x1x32xf32>
    tpu.vector_store %arg14[%704, %c2_356, %c0_357], %703 {strides = array<i32>} : memref<17x4x32xf32, #tpu.memory_space<vmem>>, vector<1x1x32xf32>,
    %706 = vector.extract_strided_slice %669 {offsets = [1, 0], sizes = [1, 32], strides = [1, 1]} : vector<2x32xf32> to vector<1x32xf32>
    %707 = vector.shape_cast %706 : vector<1x32xf32> to vector<1x1x32xf32>
    %708 = arith.index_cast %697 : i32 to index
    %c3_358 = arith.constant 3 : index
    %c0_359 = arith.constant 0 : index
    %709 = vector.load %arg13[%708, %c3_358, %c0_359] : memref<17x4x32xf32, #tpu.memory_space<vmem>>, vector<1x1x32xf32>
    tpu.vector_store %arg13[%708, %c3_358, %c0_359], %707 {strides = array<i32>} : memref<17x4x32xf32, #tpu.memory_space<vmem>>, vector<1x1x32xf32>,
    %710 = vector.extract_strided_slice %667 {offsets = [1, 0], sizes = [1, 32], strides = [1, 1]} : vector<2x32xf32> to vector<1x32xf32>
    %711 = vector.shape_cast %710 : vector<1x32xf32> to vector<1x1x32xf32>
    %712 = arith.index_cast %697 : i32 to index
    %c3_360 = arith.constant 3 : index
    %c0_361 = arith.constant 0 : index
    %713 = vector.load %arg14[%712, %c3_360, %c0_361] : memref<17x4x32xf32, #tpu.memory_space<vmem>>, vector<1x1x32xf32>
    tpu.vector_store %arg14[%712, %c3_360, %c0_361], %711 {strides = array<i32>} : memref<17x4x32xf32, #tpu.memory_space<vmem>>, vector<1x1x32xf32>,
    %c5_362 = arith.constant 5 : index
    %c1_363 = arith.constant 1 : index
    %714 = memref.load %arg0[%c5_362, %c1_363] : memref<8x2xi32, #tpu.memory_space<smem>>
    %715 = arith.addi %599, %714 : i32
    %c0_i32_364 = arith.constant 0 : i32
    %c16_i32_365 = arith.constant 16 : i32
    %716 = arith.maxsi %c0_i32_364, %715 : i32
    %717 = arith.minsi %c16_i32_365, %716 : i32
    %718 = arith.index_cast %717 : i32 to index
    %c3_366 = arith.constant 3 : index
    %c0_367 = arith.constant 0 : index
    %719 = vector.load %arg13[%718, %c3_366, %c0_367] : memref<17x4x32xf32, #tpu.memory_space<vmem>>, vector<1x1x32xf32>
    %720 = vector.shape_cast %719 : vector<1x1x32xf32> to vector<1x32xf32>
    %c13 = arith.constant 13 : index
    %c0_368 = arith.constant 0 : index
    %721 = vector.load %arg15[%c13, %c0_368] : memref<16x32xf32, #tpu.memory_space<vmem>>, vector<1x32xf32>
    tpu.vector_store %arg15[%c13, %c0_368], %720 {strides = array<i32>} : memref<16x32xf32, #tpu.memory_space<vmem>>, vector<1x32xf32>,
    %722 = arith.index_cast %691 : i32 to index
    %c0_369 = arith.constant 0 : index
    %c0_370 = arith.constant 0 : index
    %723 = vector.load %arg13[%722, %c0_369, %c0_370] : memref<17x4x32xf32, #tpu.memory_space<vmem>>, vector<1x1x32xf32>
    %724 = vector.shape_cast %723 : vector<1x1x32xf32> to vector<1x32xf32>
    %725 = arith.index_cast %717 : i32 to index
    %c2_371 = arith.constant 2 : index
    %c0_372 = arith.constant 0 : index
    %726 = vector.load %arg13[%725, %c2_371, %c0_372] : memref<17x4x32xf32, #tpu.memory_space<vmem>>, vector<1x1x32xf32>
    %727 = vector.shape_cast %726 : vector<1x1x32xf32> to vector<1x32xf32>
    %728 = tpu.concatenate %724, %727 in 0 : vector<1x32xf32>, vector<1x32xf32> -> vector<2x32xf32>
    %729 = arith.index_cast %691 : i32 to index
    %c0_373 = arith.constant 0 : index
    %c0_374 = arith.constant 0 : index
    %730 = vector.load %arg14[%729, %c0_373, %c0_374] : memref<17x4x32xf32, #tpu.memory_space<vmem>>, vector<1x1x32xf32>
    %731 = vector.shape_cast %730 : vector<1x1x32xf32> to vector<1x32xf32>
    %732 = arith.index_cast %717 : i32 to index
    %c2_375 = arith.constant 2 : index
    %c0_376 = arith.constant 0 : index
    %733 = vector.load %arg14[%732, %c2_375, %c0_376] : memref<17x4x32xf32, #tpu.memory_space<vmem>>, vector<1x1x32xf32>
    %734 = vector.shape_cast %733 : vector<1x1x32xf32> to vector<1x32xf32>
    %735 = tpu.concatenate %731, %734 in 0 : vector<1x32xf32>, vector<1x32xf32> -> vector<2x32xf32>
    %736 = arith.index_cast %691 : i32 to index
    %c1_377 = arith.constant 1 : index
    %c0_378 = arith.constant 0 : index
    %737 = vector.load %arg13[%736, %c1_377, %c0_378] : memref<17x4x32xf32, #tpu.memory_space<vmem>>, vector<1x1x32xf32>
    %738 = vector.shape_cast %737 : vector<1x1x32xf32> to vector<1x32xf32>
    %739 = arith.index_cast %717 : i32 to index
    %c3_379 = arith.constant 3 : index
    %c0_380 = arith.constant 0 : index
    %740 = vector.load %arg13[%739, %c3_379, %c0_380] : memref<17x4x32xf32, #tpu.memory_space<vmem>>, vector<1x1x32xf32>
    %741 = vector.shape_cast %740 : vector<1x1x32xf32> to vector<1x32xf32>
    %742 = tpu.concatenate %738, %741 in 0 : vector<1x32xf32>, vector<1x32xf32> -> vector<2x32xf32>
    %743 = arith.index_cast %691 : i32 to index
    %c1_381 = arith.constant 1 : index
    %c0_382 = arith.constant 0 : index
    %744 = vector.load %arg14[%743, %c1_381, %c0_382] : memref<17x4x32xf32, #tpu.memory_space<vmem>>, vector<1x1x32xf32>
    %745 = vector.shape_cast %744 : vector<1x1x32xf32> to vector<1x32xf32>
    %746 = arith.index_cast %717 : i32 to index
    %c3_383 = arith.constant 3 : index
    %c0_384 = arith.constant 0 : index
    %747 = vector.load %arg14[%746, %c3_383, %c0_384] : memref<17x4x32xf32, #tpu.memory_space<vmem>>, vector<1x1x32xf32>
    %748 = vector.shape_cast %747 : vector<1x1x32xf32> to vector<1x32xf32>
    %749 = tpu.concatenate %745, %748 in 0 : vector<1x32xf32>, vector<1x32xf32> -> vector<2x32xf32>
    %750 = vector.extract_strided_slice %23 {offsets = [12, 0], sizes = [2, 128], strides = [1, 1]} : vector<16x128xf32> to vector<2x128xf32>
    %cst_385 = arith.constant dense<0.000000e+00> : vector<2x128xf32>
    %751 = tpu.matmul %728, %16, %cst_385 {dimension_numbers = #tpu.dot_dimension_numbers<[1], [0], [0], [1], [0, 0, 1, 1], [], []>} : vector<2x32xf32>, vector<32x128xf32>, vector<2x128xf32> -> vector<2x128xf32>
    %752 = arith.addf %750, %751 : vector<2x128xf32>
    %753 = arith.negf %752 : vector<2x128xf32>
    %754 = math.exp %753 : vector<2x128xf32>
    %cst_386 = arith.constant 1.000000e+00 : f32
    %755 = vector.broadcast %cst_386 : f32 to vector<2x128xf32>
    %756 = arith.addf %755, %754 : vector<2x128xf32>
    %757 = arith.divf %755, %756 : vector<2x128xf32>
    %758 = math.tanh %752 : vector<2x128xf32>
    %759 = vector.extract_strided_slice %757 {offsets = [0, 0], sizes = [2, 32], strides = [1, 1]} : vector<2x128xf32> to vector<2x32xf32>
    %760 = vector.extract_strided_slice %757 {offsets = [0, 32], sizes = [2, 32], strides = [1, 1]} : vector<2x128xf32> to vector<2x32xf32>
    %761 = vector.extract_strided_slice %758 {offsets = [0, 64], sizes = [2, 32], strides = [1, 1]} : vector<2x128xf32> to vector<2x32xf32>
    %762 = vector.extract_strided_slice %757 {offsets = [0, 96], sizes = [2, 32], strides = [1, 1]} : vector<2x128xf32> to vector<2x32xf32>
    %763 = arith.mulf %760, %735 : vector<2x32xf32>
    %764 = arith.mulf %759, %761 : vector<2x32xf32>
    %765 = arith.addf %763, %764 : vector<2x32xf32>
    %766 = math.tanh %765 : vector<2x32xf32>
    %767 = arith.mulf %762, %766 : vector<2x32xf32>
    %cst_387 = arith.constant dense<0.000000e+00> : vector<2x128xf32>
    %768 = tpu.matmul %767, %15, %cst_387 {dimension_numbers = #tpu.dot_dimension_numbers<[1], [0], [0], [1], [0, 0, 1, 1], [], []>} : vector<2x32xf32>, vector<32x128xf32>, vector<2x128xf32> -> vector<2x128xf32>
    %cst_388 = arith.constant dense<0.000000e+00> : vector<2x128xf32>
    %769 = tpu.matmul %742, %17, %cst_388 {dimension_numbers = #tpu.dot_dimension_numbers<[1], [0], [0], [1], [0, 0, 1, 1], [], []>} : vector<2x32xf32>, vector<32x128xf32>, vector<2x128xf32> -> vector<2x128xf32>
    %770 = arith.addf %768, %769 : vector<2x128xf32>
    %771 = vector.broadcast %19 : vector<1x128xf32> to vector<2x128xf32>
    %772 = arith.addf %770, %771 : vector<2x128xf32>
    %773 = arith.negf %772 : vector<2x128xf32>
    %774 = math.exp %773 : vector<2x128xf32>
    %cst_389 = arith.constant 1.000000e+00 : f32
    %775 = vector.broadcast %cst_389 : f32 to vector<2x128xf32>
    %776 = arith.addf %775, %774 : vector<2x128xf32>
    %777 = arith.divf %775, %776 : vector<2x128xf32>
    %778 = math.tanh %772 : vector<2x128xf32>
    %779 = vector.extract_strided_slice %777 {offsets = [0, 0], sizes = [2, 32], strides = [1, 1]} : vector<2x128xf32> to vector<2x32xf32>
    %780 = vector.extract_strided_slice %777 {offsets = [0, 32], sizes = [2, 32], strides = [1, 1]} : vector<2x128xf32> to vector<2x32xf32>
    %781 = vector.extract_strided_slice %778 {offsets = [0, 64], sizes = [2, 32], strides = [1, 1]} : vector<2x128xf32> to vector<2x32xf32>
    %782 = vector.extract_strided_slice %777 {offsets = [0, 96], sizes = [2, 32], strides = [1, 1]} : vector<2x128xf32> to vector<2x32xf32>
    %783 = arith.mulf %780, %749 : vector<2x32xf32>
    %784 = arith.mulf %779, %781 : vector<2x32xf32>
    %785 = arith.addf %783, %784 : vector<2x32xf32>
    %786 = math.tanh %785 : vector<2x32xf32>
    %787 = arith.mulf %782, %786 : vector<2x32xf32>
    %c1_i32_390 = arith.constant 1 : i32
    %788 = arith.addi %691, %c1_i32_390 : i32
    %c16_i32_391 = arith.constant 16 : i32
    %789 = arith.minsi %788, %c16_i32_391 : i32
    %790 = vector.extract_strided_slice %767 {offsets = [0, 0], sizes = [1, 32], strides = [1, 1]} : vector<2x32xf32> to vector<1x32xf32>
    %791 = vector.shape_cast %790 : vector<1x32xf32> to vector<1x1x32xf32>
    %792 = arith.index_cast %789 : i32 to index
    %c0_392 = arith.constant 0 : index
    %c0_393 = arith.constant 0 : index
    %793 = vector.load %arg13[%792, %c0_392, %c0_393] : memref<17x4x32xf32, #tpu.memory_space<vmem>>, vector<1x1x32xf32>
    tpu.vector_store %arg13[%792, %c0_392, %c0_393], %791 {strides = array<i32>} : memref<17x4x32xf32, #tpu.memory_space<vmem>>, vector<1x1x32xf32>,
    %794 = vector.extract_strided_slice %765 {offsets = [0, 0], sizes = [1, 32], strides = [1, 1]} : vector<2x32xf32> to vector<1x32xf32>
    %795 = vector.shape_cast %794 : vector<1x32xf32> to vector<1x1x32xf32>
    %796 = arith.index_cast %789 : i32 to index
    %c0_394 = arith.constant 0 : index
    %c0_395 = arith.constant 0 : index
    %797 = vector.load %arg14[%796, %c0_394, %c0_395] : memref<17x4x32xf32, #tpu.memory_space<vmem>>, vector<1x1x32xf32>
    tpu.vector_store %arg14[%796, %c0_394, %c0_395], %795 {strides = array<i32>} : memref<17x4x32xf32, #tpu.memory_space<vmem>>, vector<1x1x32xf32>,
    %798 = vector.extract_strided_slice %787 {offsets = [0, 0], sizes = [1, 32], strides = [1, 1]} : vector<2x32xf32> to vector<1x32xf32>
    %799 = vector.shape_cast %798 : vector<1x32xf32> to vector<1x1x32xf32>
    %800 = arith.index_cast %789 : i32 to index
    %c1_396 = arith.constant 1 : index
    %c0_397 = arith.constant 0 : index
    %801 = vector.load %arg13[%800, %c1_396, %c0_397] : memref<17x4x32xf32, #tpu.memory_space<vmem>>, vector<1x1x32xf32>
    tpu.vector_store %arg13[%800, %c1_396, %c0_397], %799 {strides = array<i32>} : memref<17x4x32xf32, #tpu.memory_space<vmem>>, vector<1x1x32xf32>,
    %802 = vector.extract_strided_slice %785 {offsets = [0, 0], sizes = [1, 32], strides = [1, 1]} : vector<2x32xf32> to vector<1x32xf32>
    %803 = vector.shape_cast %802 : vector<1x32xf32> to vector<1x1x32xf32>
    %804 = arith.index_cast %789 : i32 to index
    %c1_398 = arith.constant 1 : index
    %c0_399 = arith.constant 0 : index
    %805 = vector.load %arg14[%804, %c1_398, %c0_399] : memref<17x4x32xf32, #tpu.memory_space<vmem>>, vector<1x1x32xf32>
    tpu.vector_store %arg14[%804, %c1_398, %c0_399], %803 {strides = array<i32>} : memref<17x4x32xf32, #tpu.memory_space<vmem>>, vector<1x1x32xf32>,
    %c6 = arith.constant 6 : index
    %c0_400 = arith.constant 0 : index
    %806 = memref.load %arg0[%c6, %c0_400] : memref<8x2xi32, #tpu.memory_space<smem>>
    %807 = arith.addi %691, %806 : i32
    %c0_i32_401 = arith.constant 0 : i32
    %c16_i32_402 = arith.constant 16 : i32
    %808 = arith.maxsi %c0_i32_401, %807 : i32
    %809 = arith.minsi %c16_i32_402, %808 : i32
    %810 = arith.index_cast %809 : i32 to index
    %c1_403 = arith.constant 1 : index
    %c0_404 = arith.constant 0 : index
    %811 = vector.load %arg13[%810, %c1_403, %c0_404] : memref<17x4x32xf32, #tpu.memory_space<vmem>>, vector<1x1x32xf32>
    %812 = vector.shape_cast %811 : vector<1x1x32xf32> to vector<1x32xf32>
    %c6_405 = arith.constant 6 : index
    %c0_406 = arith.constant 0 : index
    %813 = vector.load %arg15[%c6_405, %c0_406] : memref<16x32xf32, #tpu.memory_space<vmem>>, vector<1x32xf32>
    tpu.vector_store %arg15[%c6_405, %c0_406], %812 {strides = array<i32>} : memref<16x32xf32, #tpu.memory_space<vmem>>, vector<1x32xf32>,
    %c1_i32_407 = arith.constant 1 : i32
    %814 = arith.addi %717, %c1_i32_407 : i32
    %c16_i32_408 = arith.constant 16 : i32
    %815 = arith.minsi %814, %c16_i32_408 : i32
    %816 = vector.extract_strided_slice %767 {offsets = [1, 0], sizes = [1, 32], strides = [1, 1]} : vector<2x32xf32> to vector<1x32xf32>
    %817 = vector.shape_cast %816 : vector<1x32xf32> to vector<1x1x32xf32>
    %818 = arith.index_cast %815 : i32 to index
    %c2_409 = arith.constant 2 : index
    %c0_410 = arith.constant 0 : index
    %819 = vector.load %arg13[%818, %c2_409, %c0_410] : memref<17x4x32xf32, #tpu.memory_space<vmem>>, vector<1x1x32xf32>
    tpu.vector_store %arg13[%818, %c2_409, %c0_410], %817 {strides = array<i32>} : memref<17x4x32xf32, #tpu.memory_space<vmem>>, vector<1x1x32xf32>,
    %820 = vector.extract_strided_slice %765 {offsets = [1, 0], sizes = [1, 32], strides = [1, 1]} : vector<2x32xf32> to vector<1x32xf32>
    %821 = vector.shape_cast %820 : vector<1x32xf32> to vector<1x1x32xf32>
    %822 = arith.index_cast %815 : i32 to index
    %c2_411 = arith.constant 2 : index
    %c0_412 = arith.constant 0 : index
    %823 = vector.load %arg14[%822, %c2_411, %c0_412] : memref<17x4x32xf32, #tpu.memory_space<vmem>>, vector<1x1x32xf32>
    tpu.vector_store %arg14[%822, %c2_411, %c0_412], %821 {strides = array<i32>} : memref<17x4x32xf32, #tpu.memory_space<vmem>>, vector<1x1x32xf32>,
    %824 = vector.extract_strided_slice %787 {offsets = [1, 0], sizes = [1, 32], strides = [1, 1]} : vector<2x32xf32> to vector<1x32xf32>
    %825 = vector.shape_cast %824 : vector<1x32xf32> to vector<1x1x32xf32>
    %826 = arith.index_cast %815 : i32 to index
    %c3_413 = arith.constant 3 : index
    %c0_414 = arith.constant 0 : index
    %827 = vector.load %arg13[%826, %c3_413, %c0_414] : memref<17x4x32xf32, #tpu.memory_space<vmem>>, vector<1x1x32xf32>
    tpu.vector_store %arg13[%826, %c3_413, %c0_414], %825 {strides = array<i32>} : memref<17x4x32xf32, #tpu.memory_space<vmem>>, vector<1x1x32xf32>,
    %828 = vector.extract_strided_slice %785 {offsets = [1, 0], sizes = [1, 32], strides = [1, 1]} : vector<2x32xf32> to vector<1x32xf32>
    %829 = vector.shape_cast %828 : vector<1x32xf32> to vector<1x1x32xf32>
    %830 = arith.index_cast %815 : i32 to index
    %c3_415 = arith.constant 3 : index
    %c0_416 = arith.constant 0 : index
    %831 = vector.load %arg14[%830, %c3_415, %c0_416] : memref<17x4x32xf32, #tpu.memory_space<vmem>>, vector<1x1x32xf32>
    tpu.vector_store %arg14[%830, %c3_415, %c0_416], %829 {strides = array<i32>} : memref<17x4x32xf32, #tpu.memory_space<vmem>>, vector<1x1x32xf32>,
    %c6_417 = arith.constant 6 : index
    %c1_418 = arith.constant 1 : index
    %832 = memref.load %arg0[%c6_417, %c1_418] : memref<8x2xi32, #tpu.memory_space<smem>>
    %833 = arith.addi %717, %832 : i32
    %c0_i32_419 = arith.constant 0 : i32
    %c16_i32_420 = arith.constant 16 : i32
    %834 = arith.maxsi %c0_i32_419, %833 : i32
    %835 = arith.minsi %c16_i32_420, %834 : i32
    %836 = arith.index_cast %835 : i32 to index
    %c3_421 = arith.constant 3 : index
    %c0_422 = arith.constant 0 : index
    %837 = vector.load %arg13[%836, %c3_421, %c0_422] : memref<17x4x32xf32, #tpu.memory_space<vmem>>, vector<1x1x32xf32>
    %838 = vector.shape_cast %837 : vector<1x1x32xf32> to vector<1x32xf32>
    %c14 = arith.constant 14 : index
    %c0_423 = arith.constant 0 : index
    %839 = vector.load %arg15[%c14, %c0_423] : memref<16x32xf32, #tpu.memory_space<vmem>>, vector<1x32xf32>
    tpu.vector_store %arg15[%c14, %c0_423], %838 {strides = array<i32>} : memref<16x32xf32, #tpu.memory_space<vmem>>, vector<1x32xf32>,
    %840 = arith.index_cast %809 : i32 to index
    %c0_424 = arith.constant 0 : index
    %c0_425 = arith.constant 0 : index
    %841 = vector.load %arg13[%840, %c0_424, %c0_425] : memref<17x4x32xf32, #tpu.memory_space<vmem>>, vector<1x1x32xf32>
    %842 = vector.shape_cast %841 : vector<1x1x32xf32> to vector<1x32xf32>
    %843 = arith.index_cast %835 : i32 to index
    %c2_426 = arith.constant 2 : index
    %c0_427 = arith.constant 0 : index
    %844 = vector.load %arg13[%843, %c2_426, %c0_427] : memref<17x4x32xf32, #tpu.memory_space<vmem>>, vector<1x1x32xf32>
    %845 = vector.shape_cast %844 : vector<1x1x32xf32> to vector<1x32xf32>
    %846 = tpu.concatenate %842, %845 in 0 : vector<1x32xf32>, vector<1x32xf32> -> vector<2x32xf32>
    %847 = arith.index_cast %809 : i32 to index
    %c0_428 = arith.constant 0 : index
    %c0_429 = arith.constant 0 : index
    %848 = vector.load %arg14[%847, %c0_428, %c0_429] : memref<17x4x32xf32, #tpu.memory_space<vmem>>, vector<1x1x32xf32>
    %849 = vector.shape_cast %848 : vector<1x1x32xf32> to vector<1x32xf32>
    %850 = arith.index_cast %835 : i32 to index
    %c2_430 = arith.constant 2 : index
    %c0_431 = arith.constant 0 : index
    %851 = vector.load %arg14[%850, %c2_430, %c0_431] : memref<17x4x32xf32, #tpu.memory_space<vmem>>, vector<1x1x32xf32>
    %852 = vector.shape_cast %851 : vector<1x1x32xf32> to vector<1x32xf32>
    %853 = tpu.concatenate %849, %852 in 0 : vector<1x32xf32>, vector<1x32xf32> -> vector<2x32xf32>
    %854 = arith.index_cast %809 : i32 to index
    %c1_432 = arith.constant 1 : index
    %c0_433 = arith.constant 0 : index
    %855 = vector.load %arg13[%854, %c1_432, %c0_433] : memref<17x4x32xf32, #tpu.memory_space<vmem>>, vector<1x1x32xf32>
    %856 = vector.shape_cast %855 : vector<1x1x32xf32> to vector<1x32xf32>
    %857 = arith.index_cast %835 : i32 to index
    %c3_434 = arith.constant 3 : index
    %c0_435 = arith.constant 0 : index
    %858 = vector.load %arg13[%857, %c3_434, %c0_435] : memref<17x4x32xf32, #tpu.memory_space<vmem>>, vector<1x1x32xf32>
    %859 = vector.shape_cast %858 : vector<1x1x32xf32> to vector<1x32xf32>
    %860 = tpu.concatenate %856, %859 in 0 : vector<1x32xf32>, vector<1x32xf32> -> vector<2x32xf32>
    %861 = arith.index_cast %809 : i32 to index
    %c1_436 = arith.constant 1 : index
    %c0_437 = arith.constant 0 : index
    %862 = vector.load %arg14[%861, %c1_436, %c0_437] : memref<17x4x32xf32, #tpu.memory_space<vmem>>, vector<1x1x32xf32>
    %863 = vector.shape_cast %862 : vector<1x1x32xf32> to vector<1x32xf32>
    %864 = arith.index_cast %835 : i32 to index
    %c3_438 = arith.constant 3 : index
    %c0_439 = arith.constant 0 : index
    %865 = vector.load %arg14[%864, %c3_438, %c0_439] : memref<17x4x32xf32, #tpu.memory_space<vmem>>, vector<1x1x32xf32>
    %866 = vector.shape_cast %865 : vector<1x1x32xf32> to vector<1x32xf32>
    %867 = tpu.concatenate %863, %866 in 0 : vector<1x32xf32>, vector<1x32xf32> -> vector<2x32xf32>
    %868 = vector.extract_strided_slice %23 {offsets = [14, 0], sizes = [2, 128], strides = [1, 1]} : vector<16x128xf32> to vector<2x128xf32>
    %cst_440 = arith.constant dense<0.000000e+00> : vector<2x128xf32>
    %869 = tpu.matmul %846, %16, %cst_440 {dimension_numbers = #tpu.dot_dimension_numbers<[1], [0], [0], [1], [0, 0, 1, 1], [], []>} : vector<2x32xf32>, vector<32x128xf32>, vector<2x128xf32> -> vector<2x128xf32>
    %870 = arith.addf %868, %869 : vector<2x128xf32>
    %871 = arith.negf %870 : vector<2x128xf32>
    %872 = math.exp %871 : vector<2x128xf32>
    %cst_441 = arith.constant 1.000000e+00 : f32
    %873 = vector.broadcast %cst_441 : f32 to vector<2x128xf32>
    %874 = arith.addf %873, %872 : vector<2x128xf32>
    %875 = arith.divf %873, %874 : vector<2x128xf32>
    %876 = math.tanh %870 : vector<2x128xf32>
    %877 = vector.extract_strided_slice %875 {offsets = [0, 0], sizes = [2, 32], strides = [1, 1]} : vector<2x128xf32> to vector<2x32xf32>
    %878 = vector.extract_strided_slice %875 {offsets = [0, 32], sizes = [2, 32], strides = [1, 1]} : vector<2x128xf32> to vector<2x32xf32>
    %879 = vector.extract_strided_slice %876 {offsets = [0, 64], sizes = [2, 32], strides = [1, 1]} : vector<2x128xf32> to vector<2x32xf32>
    %880 = vector.extract_strided_slice %875 {offsets = [0, 96], sizes = [2, 32], strides = [1, 1]} : vector<2x128xf32> to vector<2x32xf32>
    %881 = arith.mulf %878, %853 : vector<2x32xf32>
    %882 = arith.mulf %877, %879 : vector<2x32xf32>
    %883 = arith.addf %881, %882 : vector<2x32xf32>
    %884 = math.tanh %883 : vector<2x32xf32>
    %885 = arith.mulf %880, %884 : vector<2x32xf32>
    %cst_442 = arith.constant dense<0.000000e+00> : vector<2x128xf32>
    %886 = tpu.matmul %885, %15, %cst_442 {dimension_numbers = #tpu.dot_dimension_numbers<[1], [0], [0], [1], [0, 0, 1, 1], [], []>} : vector<2x32xf32>, vector<32x128xf32>, vector<2x128xf32> -> vector<2x128xf32>
    %cst_443 = arith.constant dense<0.000000e+00> : vector<2x128xf32>
    %887 = tpu.matmul %860, %17, %cst_443 {dimension_numbers = #tpu.dot_dimension_numbers<[1], [0], [0], [1], [0, 0, 1, 1], [], []>} : vector<2x32xf32>, vector<32x128xf32>, vector<2x128xf32> -> vector<2x128xf32>
    %888 = arith.addf %886, %887 : vector<2x128xf32>
    %889 = vector.broadcast %19 : vector<1x128xf32> to vector<2x128xf32>
    %890 = arith.addf %888, %889 : vector<2x128xf32>
    %891 = arith.negf %890 : vector<2x128xf32>
    %892 = math.exp %891 : vector<2x128xf32>
    %cst_444 = arith.constant 1.000000e+00 : f32
    %893 = vector.broadcast %cst_444 : f32 to vector<2x128xf32>
    %894 = arith.addf %893, %892 : vector<2x128xf32>
    %895 = arith.divf %893, %894 : vector<2x128xf32>
    %896 = math.tanh %890 : vector<2x128xf32>
    %897 = vector.extract_strided_slice %895 {offsets = [0, 0], sizes = [2, 32], strides = [1, 1]} : vector<2x128xf32> to vector<2x32xf32>
    %898 = vector.extract_strided_slice %895 {offsets = [0, 32], sizes = [2, 32], strides = [1, 1]} : vector<2x128xf32> to vector<2x32xf32>
    %899 = vector.extract_strided_slice %896 {offsets = [0, 64], sizes = [2, 32], strides = [1, 1]} : vector<2x128xf32> to vector<2x32xf32>
    %900 = vector.extract_strided_slice %895 {offsets = [0, 96], sizes = [2, 32], strides = [1, 1]} : vector<2x128xf32> to vector<2x32xf32>
    %901 = arith.mulf %898, %867 : vector<2x32xf32>
    %902 = arith.mulf %897, %899 : vector<2x32xf32>
    %903 = arith.addf %901, %902 : vector<2x32xf32>
    %904 = math.tanh %903 : vector<2x32xf32>
    %905 = arith.mulf %900, %904 : vector<2x32xf32>
    %c1_i32_445 = arith.constant 1 : i32
    %906 = arith.addi %809, %c1_i32_445 : i32
    %c16_i32_446 = arith.constant 16 : i32
    %907 = arith.minsi %906, %c16_i32_446 : i32
    %908 = vector.extract_strided_slice %885 {offsets = [0, 0], sizes = [1, 32], strides = [1, 1]} : vector<2x32xf32> to vector<1x32xf32>
    %909 = vector.shape_cast %908 : vector<1x32xf32> to vector<1x1x32xf32>
    %910 = arith.index_cast %907 : i32 to index
    %c0_447 = arith.constant 0 : index
    %c0_448 = arith.constant 0 : index
    %911 = vector.load %arg13[%910, %c0_447, %c0_448] : memref<17x4x32xf32, #tpu.memory_space<vmem>>, vector<1x1x32xf32>
    tpu.vector_store %arg13[%910, %c0_447, %c0_448], %909 {strides = array<i32>} : memref<17x4x32xf32, #tpu.memory_space<vmem>>, vector<1x1x32xf32>,
    %912 = vector.extract_strided_slice %883 {offsets = [0, 0], sizes = [1, 32], strides = [1, 1]} : vector<2x32xf32> to vector<1x32xf32>
    %913 = vector.shape_cast %912 : vector<1x32xf32> to vector<1x1x32xf32>
    %914 = arith.index_cast %907 : i32 to index
    %c0_449 = arith.constant 0 : index
    %c0_450 = arith.constant 0 : index
    %915 = vector.load %arg14[%914, %c0_449, %c0_450] : memref<17x4x32xf32, #tpu.memory_space<vmem>>, vector<1x1x32xf32>
    tpu.vector_store %arg14[%914, %c0_449, %c0_450], %913 {strides = array<i32>} : memref<17x4x32xf32, #tpu.memory_space<vmem>>, vector<1x1x32xf32>,
    %916 = vector.extract_strided_slice %905 {offsets = [0, 0], sizes = [1, 32], strides = [1, 1]} : vector<2x32xf32> to vector<1x32xf32>
    %917 = vector.shape_cast %916 : vector<1x32xf32> to vector<1x1x32xf32>
    %918 = arith.index_cast %907 : i32 to index
    %c1_451 = arith.constant 1 : index
    %c0_452 = arith.constant 0 : index
    %919 = vector.load %arg13[%918, %c1_451, %c0_452] : memref<17x4x32xf32, #tpu.memory_space<vmem>>, vector<1x1x32xf32>
    tpu.vector_store %arg13[%918, %c1_451, %c0_452], %917 {strides = array<i32>} : memref<17x4x32xf32, #tpu.memory_space<vmem>>, vector<1x1x32xf32>,
    %920 = vector.extract_strided_slice %903 {offsets = [0, 0], sizes = [1, 32], strides = [1, 1]} : vector<2x32xf32> to vector<1x32xf32>
    %921 = vector.shape_cast %920 : vector<1x32xf32> to vector<1x1x32xf32>
    %922 = arith.index_cast %907 : i32 to index
    %c1_453 = arith.constant 1 : index
    %c0_454 = arith.constant 0 : index
    %923 = vector.load %arg14[%922, %c1_453, %c0_454] : memref<17x4x32xf32, #tpu.memory_space<vmem>>, vector<1x1x32xf32>
    tpu.vector_store %arg14[%922, %c1_453, %c0_454], %921 {strides = array<i32>} : memref<17x4x32xf32, #tpu.memory_space<vmem>>, vector<1x1x32xf32>,
    %c7 = arith.constant 7 : index
    %c0_455 = arith.constant 0 : index
    %924 = memref.load %arg0[%c7, %c0_455] : memref<8x2xi32, #tpu.memory_space<smem>>
    %925 = arith.addi %809, %924 : i32
    %c0_i32_456 = arith.constant 0 : i32
    %c16_i32_457 = arith.constant 16 : i32
    %926 = arith.maxsi %c0_i32_456, %925 : i32
    %927 = arith.minsi %c16_i32_457, %926 : i32
    %928 = arith.index_cast %927 : i32 to index
    %c1_458 = arith.constant 1 : index
    %c0_459 = arith.constant 0 : index
    %929 = vector.load %arg13[%928, %c1_458, %c0_459] : memref<17x4x32xf32, #tpu.memory_space<vmem>>, vector<1x1x32xf32>
    %930 = vector.shape_cast %929 : vector<1x1x32xf32> to vector<1x32xf32>
    %c7_460 = arith.constant 7 : index
    %c0_461 = arith.constant 0 : index
    %931 = vector.load %arg15[%c7_460, %c0_461] : memref<16x32xf32, #tpu.memory_space<vmem>>, vector<1x32xf32>
    tpu.vector_store %arg15[%c7_460, %c0_461], %930 {strides = array<i32>} : memref<16x32xf32, #tpu.memory_space<vmem>>, vector<1x32xf32>,
    %c1_i32_462 = arith.constant 1 : i32
    %932 = arith.addi %835, %c1_i32_462 : i32
    %c16_i32_463 = arith.constant 16 : i32
    %933 = arith.minsi %932, %c16_i32_463 : i32
    %934 = vector.extract_strided_slice %885 {offsets = [1, 0], sizes = [1, 32], strides = [1, 1]} : vector<2x32xf32> to vector<1x32xf32>
    %935 = vector.shape_cast %934 : vector<1x32xf32> to vector<1x1x32xf32>
    %936 = arith.index_cast %933 : i32 to index
    %c2_464 = arith.constant 2 : index
    %c0_465 = arith.constant 0 : index
    %937 = vector.load %arg13[%936, %c2_464, %c0_465] : memref<17x4x32xf32, #tpu.memory_space<vmem>>, vector<1x1x32xf32>
    tpu.vector_store %arg13[%936, %c2_464, %c0_465], %935 {strides = array<i32>} : memref<17x4x32xf32, #tpu.memory_space<vmem>>, vector<1x1x32xf32>,
    %938 = vector.extract_strided_slice %883 {offsets = [1, 0], sizes = [1, 32], strides = [1, 1]} : vector<2x32xf32> to vector<1x32xf32>
    %939 = vector.shape_cast %938 : vector<1x32xf32> to vector<1x1x32xf32>
    %940 = arith.index_cast %933 : i32 to index
    %c2_466 = arith.constant 2 : index
    %c0_467 = arith.constant 0 : index
    %941 = vector.load %arg14[%940, %c2_466, %c0_467] : memref<17x4x32xf32, #tpu.memory_space<vmem>>, vector<1x1x32xf32>
    tpu.vector_store %arg14[%940, %c2_466, %c0_467], %939 {strides = array<i32>} : memref<17x4x32xf32, #tpu.memory_space<vmem>>, vector<1x1x32xf32>,
    %942 = vector.extract_strided_slice %905 {offsets = [1, 0], sizes = [1, 32], strides = [1, 1]} : vector<2x32xf32> to vector<1x32xf32>
    %943 = vector.shape_cast %942 : vector<1x32xf32> to vector<1x1x32xf32>
    %944 = arith.index_cast %933 : i32 to index
    %c3_468 = arith.constant 3 : index
    %c0_469 = arith.constant 0 : index
    %945 = vector.load %arg13[%944, %c3_468, %c0_469] : memref<17x4x32xf32, #tpu.memory_space<vmem>>, vector<1x1x32xf32>
    tpu.vector_store %arg13[%944, %c3_468, %c0_469], %943 {strides = array<i32>} : memref<17x4x32xf32, #tpu.memory_space<vmem>>, vector<1x1x32xf32>,
    %946 = vector.extract_strided_slice %903 {offsets = [1, 0], sizes = [1, 32], strides = [1, 1]} : vector<2x32xf32> to vector<1x32xf32>
    %947 = vector.shape_cast %946 : vector<1x32xf32> to vector<1x1x32xf32>
    %948 = arith.index_cast %933 : i32 to index
    %c3_470 = arith.constant 3 : index
    %c0_471 = arith.constant 0 : index
    %949 = vector.load %arg14[%948, %c3_470, %c0_471] : memref<17x4x32xf32, #tpu.memory_space<vmem>>, vector<1x1x32xf32>
    tpu.vector_store %arg14[%948, %c3_470, %c0_471], %947 {strides = array<i32>} : memref<17x4x32xf32, #tpu.memory_space<vmem>>, vector<1x1x32xf32>,
    %c7_472 = arith.constant 7 : index
    %c1_473 = arith.constant 1 : index
    %950 = memref.load %arg0[%c7_472, %c1_473] : memref<8x2xi32, #tpu.memory_space<smem>>
    %951 = arith.addi %835, %950 : i32
    %c0_i32_474 = arith.constant 0 : i32
    %c16_i32_475 = arith.constant 16 : i32
    %952 = arith.maxsi %c0_i32_474, %951 : i32
    %953 = arith.minsi %c16_i32_475, %952 : i32
    %954 = arith.index_cast %953 : i32 to index
    %c3_476 = arith.constant 3 : index
    %c0_477 = arith.constant 0 : index
    %955 = vector.load %arg13[%954, %c3_476, %c0_477] : memref<17x4x32xf32, #tpu.memory_space<vmem>>, vector<1x1x32xf32>
    %956 = vector.shape_cast %955 : vector<1x1x32xf32> to vector<1x32xf32>
    %c15 = arith.constant 15 : index
    %c0_478 = arith.constant 0 : index
    %957 = vector.load %arg15[%c15, %c0_478] : memref<16x32xf32, #tpu.memory_space<vmem>>, vector<1x32xf32>
    tpu.vector_store %arg15[%c15, %c0_478], %956 {strides = array<i32>} : memref<16x32xf32, #tpu.memory_space<vmem>>, vector<1x32xf32>,
    %c0_479 = arith.constant 0 : index
    %c0_480 = arith.constant 0 : index
    %958 = vector.load %arg15[%c0_479, %c0_480] : memref<16x32xf32, #tpu.memory_space<vmem>>, vector<16x32xf32>
    %c0_481 = arith.constant 0 : index
    %c0_482 = arith.constant 0 : index
    %959 = vector.load %arg8[%c0_481, %c0_482] : memref<32x16xf32, #tpu.memory_space<vmem>>, vector<32x16xf32>
    %cst_483 = arith.constant dense<0.000000e+00> : vector<16x16xf32>
    %960 = tpu.matmul %958, %959, %cst_483 {dimension_numbers = #tpu.dot_dimension_numbers<[1], [0], [0], [1], [0, 0, 1, 1], [], []>} : vector<16x32xf32>, vector<32x16xf32>, vector<16x16xf32> -> vector<16x16xf32>
    %c0_484 = arith.constant 0 : index
    %c0_485 = arith.constant 0 : index
    %961 = vector.load %arg9[%c0_484, %c0_485] : memref<1x16xf32, #tpu.memory_space<vmem>>, vector<1x16xf32>
    %962 = vector.broadcast %961 : vector<1x16xf32> to vector<16x16xf32>
    %963 = arith.addf %960, %962 : vector<16x16xf32>
    %cst_486 = arith.constant dense<0xFF800000> : vector<16xf32>
    %964 = vector.multi_reduction <maximumf>, %963, %cst_486 [1] : vector<16x16xf32> to vector<16xf32>
    %965 = vector.shape_cast %964 : vector<16xf32> to vector<16x1xf32>
    %966 = vector.broadcast %965 : vector<16x1xf32> to vector<16x16xf32>
    %967 = arith.subf %963, %966 : vector<16x16xf32>
    %968 = math.exp %967 : vector<16x16xf32>
    %cst_487 = arith.constant dense<0.000000e+00> : vector<16xf32>
    %969 = vector.multi_reduction <add>, %968, %cst_487 [1] : vector<16x16xf32> to vector<16xf32>
    %970 = vector.shape_cast %969 : vector<16xf32> to vector<16x1xf32>
    %971 = math.log %970 : vector<16x1xf32>
    %972 = arith.addf %965, %971 : vector<16x1xf32>
    %973 = vector.broadcast %972 : vector<16x1xf32> to vector<16x16xf32>
    %974 = arith.subf %963, %973 : vector<16x16xf32>
    %c0_488 = arith.constant 0 : index
    %c0_489 = arith.constant 0 : index
    %975 = vector.load %arg12[%c0_488, %c0_489] : memref<16x16xf32, #tpu.memory_space<vmem>>, vector<16x16xf32>
    tpu.vector_store %arg12[%c0_488, %c0_489], %974 {strides = array<i32>} : memref<16x16xf32, #tpu.memory_space<vmem>>, vector<16x16xf32>,
    return
  }
}

</mosaic_0001>

<llo_original>
// kernel: batched_toy_stack_forward.1
$region0: #{batched_toy_stack_forward.1}
  #allocation0 [shape = 'u32[]', space=smem, size = 0x4, offset = 0x4, fixed_abs, tag = 'smem constant byte address 0x4 - core index']
  #allocation1 [shape = 'u32[144,128]{1,0:T(1,128)}', space=vmem, size = 0x12000, scoped, tag = 'internal scratch']
  #allocation2 [shape = 'f32[17,4,32]{2,1,0:T(4,128)}', space=vmem, size = 0x8800, scoped, tag = 'scratch operand']
  #allocation3 [shape = 'f32[17,4,32]{2,1,0:T(4,128)}', space=vmem, size = 0x8800, scoped, tag = 'scratch operand']
  #allocation4 [shape = 'f32[16,32]{1,0:T(8,128)}', space=vmem, size = 0x2000, scoped, tag = 'scratch operand']
  %s0 = inlined_call_operand.vmem [shape: s32[8,2], index: 0, kind: input, shape index: {}]
  %s1 = inlined_call_operand.vmem [shape: f32[16,16], index: 1, kind: input, shape index: {}]
  %s2 = inlined_call_operand.vmem [shape: f32[16,128], index: 2, kind: input, shape index: {}]
  %s3 = inlined_call_operand.vmem [shape: f32[32,128], index: 3, kind: input, shape index: {}]
  %s4 = inlined_call_operand.vmem [shape: f32[1,128], index: 4, kind: input, shape index: {}]
  %s5 = inlined_call_operand.vmem [shape: f32[32,128], index: 5, kind: input, shape index: {}]
  %s6 = inlined_call_operand.vmem [shape: f32[32,128], index: 6, kind: input, shape index: {}]
  %s7 = inlined_call_operand.vmem [shape: f32[1,128], index: 7, kind: input, shape index: {}]
  %s8 = inlined_call_operand.vmem [shape: f32[32,16], index: 8, kind: input, shape index: {}]
  %s9 = inlined_call_operand.vmem [shape: f32[1,16], index: 9, kind: input, shape index: {}]
  %s10 = inlined_call_operand.vmem [shape: f32[1,32], index: 10, kind: input, shape index: {}]
  %s11 = inlined_call_operand.vmem [shape: f32[1,32], index: 11, kind: input, shape index: {}]
  %s12 = inlined_call_operand.hbm [shape: f32[16,16], index: 12, kind: output, shape index: {}]
  %s13 = sld [smem:[#allocation0]]
  $region62: #{batched_toy_stack_forward.1} parent=0
    _
  %s15 = ssub.s32 1, %s13
  %s16 = scalar_select 0, %s15, %s13
  $region1: #{batched_toy_stack_forward.1} parent=0
    #allocation5 [shape = 'u8[4096]{0}', space=smem, size = 0x1000, scoped, tag = 'input window, operand 0, single buffered']
    #allocation6 [shape = 's32[1]{0}', space=sflag, size = 0x4, scoped, tag = 'scoped memory for batched_toy_stack_forward.1']
    #allocation7 [shape = 's32[1]{0}', space=sflag, size = 0x4, scoped, tag = 'scoped memory for batched_toy_stack_forward.1']
    #allocation8 [shape = 'u8[8192]{0}', space=vmem, size = 0x2000, scoped, tag = 'output window, operand 0, single buffered']
    %17 = vsyncpa [#allocation7], 0
    %18 = vsyncpa [#allocation6], 0
    // Predicated region
    $region2: #{batched_toy_stack_forward.1} parent=1 // pred_check
      _
    $region3: #{batched_toy_stack_forward.1} parent=1 // pred_check_branch
      %20 = sbr.rel (0) target = $region5
    $region4: #{batched_toy_stack_forward.1} parent=1 // pred_region
      %s22 = ssub.s32 128, 128
      %23 = vsyncadd [#allocation7], %s22
      %s25 = sshll.u32 %s0, 4
      %s26 = int_to_ptr.vmem [resolvable:$true] %s25
      %28 = dma.vmem_to_smem %s26, 128, [#allocation5], [#allocation7]
    $region5: #{batched_toy_stack_forward.1} parent=1 // pred_fallthru
      _
    // Predicated region
    $region6: #{batched_toy_stack_forward.1} parent=1 // pred_check
      _
    $region7: #{batched_toy_stack_forward.1} parent=1 // pred_check_branch
      %30 = sbr.rel (0) target = $region9
    $region8: #{batched_toy_stack_forward.1} parent=1 // pred_region
      _
    $region9: #{batched_toy_stack_forward.1} parent=1 // pred_fallthru
      _
    // Predicated region
    $region10: #{batched_toy_stack_forward.1} parent=1 // pred_check
      _
    $region11: #{batched_toy_stack_forward.1} parent=1 // pred_check_branch
      %32 = sbr.rel (0) target = $region13
    $region12: #{batched_toy_stack_forward.1} parent=1 // pred_region
      _
    $region13: #{batched_toy_stack_forward.1} parent=1 // pred_fallthru
      _
    // Predicated region
    $region14: #{batched_toy_stack_forward.1} parent=1 // pred_check
      _
    $region15: #{batched_toy_stack_forward.1} parent=1 // pred_check_branch
      %34 = sbr.rel (0) target = $region17
    $region16: #{batched_toy_stack_forward.1} parent=1 // pred_region
      _
    $region17: #{batched_toy_stack_forward.1} parent=1 // pred_fallthru
      _
    // Predicated region
    $region18: #{batched_toy_stack_forward.1} parent=1 // pred_check
      _
    $region19: #{batched_toy_stack_forward.1} parent=1 // pred_check_branch
      %36 = sbr.rel (0) target = $region21
    $region20: #{batched_toy_stack_forward.1} parent=1 // pred_region
      _
    $region21: #{batched_toy_stack_forward.1} parent=1 // pred_fallthru
      _
    // Predicated region
    $region22: #{batched_toy_stack_forward.1} parent=1 // pred_check
      _
    $region23: #{batched_toy_stack_forward.1} parent=1 // pred_check_branch
      %38 = sbr.rel (0) target = $region25
    $region24: #{batched_toy_stack_forward.1} parent=1 // pred_region
      _
    $region25: #{batched_toy_stack_forward.1} parent=1 // pred_fallthru
      _
    // Predicated region
    $region26: #{batched_toy_stack_forward.1} parent=1 // pred_check
      _
    $region27: #{batched_toy_stack_forward.1} parent=1 // pred_check_branch
      %40 = sbr.rel (0) target = $region29
    $region28: #{batched_toy_stack_forward.1} parent=1 // pred_region
      _
    $region29: #{batched_toy_stack_forward.1} parent=1 // pred_fallthru
      _
    // Predicated region
    $region30: #{batched_toy_stack_forward.1} parent=1 // pred_check
      _
    $region31: #{batched_toy_stack_forward.1} parent=1 // pred_check_branch
      %42 = sbr.rel (0) target = $region33
    $region32: #{batched_toy_stack_forward.1} parent=1 // pred_region
      _
    $region33: #{batched_toy_stack_forward.1} parent=1 // pred_fallthru
      _
    // Predicated region
    $region34: #{batched_toy_stack_forward.1} parent=1 // pred_check
      _
    $region35: #{batched_toy_stack_forward.1} parent=1 // pred_check_branch
      %44 = sbr.rel (0) target = $region37
    $region36: #{batched_toy_stack_forward.1} parent=1 // pred_region
      _
    $region37: #{batched_toy_stack_forward.1} parent=1 // pred_fallthru
      _
    // Predicated region
    $region38: #{batched_toy_stack_forward.1} parent=1 // pred_check
      _
    $region39: #{batched_toy_stack_forward.1} parent=1 // pred_check_branch
      %46 = sbr.rel (0) target = $region41
    $region40: #{batched_toy_stack_forward.1} parent=1 // pred_region
      _
    $region41: #{batched_toy_stack_forward.1} parent=1 // pred_fallthru
      _
    // Predicated region
    $region42: #{batched_toy_stack_forward.1} parent=1 // pred_check
      _
    $region43: #{batched_toy_stack_forward.1} parent=1 // pred_check_branch
      %48 = sbr.rel (0) target = $region45
    $region44: #{batched_toy_stack_forward.1} parent=1 // pred_region
      _
    $region45: #{batched_toy_stack_forward.1} parent=1 // pred_fallthru
      _
    // Predicated region
    $region46: #{batched_toy_stack_forward.1} parent=1 // pred_check
      _
    $region47: #{batched_toy_stack_forward.1} parent=1 // pred_check_branch
      %50 = sbr.rel (0) target = $region49
    $region48: #{batched_toy_stack_forward.1} parent=1 // pred_region
      _
    $region49: #{batched_toy_stack_forward.1} parent=1 // pred_fallthru
      _
    // Predicated region
    $region50: #{batched_toy_stack_forward.1} parent=1 // pred_check
      _
    $region51: #{batched_toy_stack_forward.1} parent=1 // pred_check_branch
      %52 = sbr.rel (0) target = $region53
    $region52: #{batched_toy_stack_forward.1} parent=1 // pred_region
      %53 = dma.done [#allocation7], 128
    $region53: #{batched_toy_stack_forward.1} parent=1 // pred_fallthru
      _
    %54 = sfence
    %vm55 = vcmask 257024
    %56 = vst.msk [vmem:[#allocation2] sm:$0xf] %vm55, 0.0
    %57 = vst.msk [vmem:[#allocation2 + $0x4] sm:$0xf] %vm55, 0.0
    %58 = vst.msk [vmem:[#allocation2 + $0x8] sm:$0xf] %vm55, 0.0
    %59 = vst.msk [vmem:[#allocation2 + $0xc] sm:$0xf] %vm55, 0.0
    %60 = vst.msk [vmem:[#allocation2 + $0x10] sm:$0xf] %vm55, 0.0
    %61 = vst.msk [vmem:[#allocation2 + $0x14] sm:$0xf] %vm55, 0.0
    %62 = vst.msk [vmem:[#allocation2 + $0x18] sm:$0xf] %vm55, 0.0
    %63 = vst.msk [vmem:[#allocation2 + $0x1c] sm:$0xf] %vm55, 0.0
    %64 = vst.msk [vmem:[#allocation2 + $0x20] sm:$0xf] %vm55, 0.0
    %65 = vst.msk [vmem:[#allocation2 + $0x24] sm:$0xf] %vm55, 0.0
    %66 = vst.msk [vmem:[#allocation2 + $0x28] sm:$0xf] %vm55, 0.0
    %67 = vst.msk [vmem:[#allocation2 + $0x2c] sm:$0xf] %vm55, 0.0
    %68 = vst.msk [vmem:[#allocation2 + $0x30] sm:$0xf] %vm55, 0.0
    %69 = vst.msk [vmem:[#allocation2 + $0x34] sm:$0xf] %vm55, 0.0
    %70 = vst.msk [vmem:[#allocation2 + $0x38] sm:$0xf] %vm55, 0.0
    %71 = vst.msk [vmem:[#allocation2 + $0x3c] sm:$0xf] %vm55, 0.0
    %72 = vst.msk [vmem:[#allocation2 + $0x40] sm:$0xf] %vm55, 0.0
    %73 = vst.msk [vmem:[#allocation3] sm:$0xf] %vm55, 0.0
    %74 = vst.msk [vmem:[#allocation3 + $0x4] sm:$0xf] %vm55, 0.0
    %75 = vst.msk [vmem:[#allocation3 + $0x8] sm:$0xf] %vm55, 0.0
    %76 = vst.msk [vmem:[#allocation3 + $0xc] sm:$0xf] %vm55, 0.0
    %77 = vst.msk [vmem:[#allocation3 + $0x10] sm:$0xf] %vm55, 0.0
    %78 = vst.msk [vmem:[#allocation3 + $0x14] sm:$0xf] %vm55, 0.0
    %79 = vst.msk [vmem:[#allocation3 + $0x18] sm:$0xf] %vm55, 0.0
    %80 = vst.msk [vmem:[#allocation3 + $0x1c] sm:$0xf] %vm55, 0.0
    %81 = vst.msk [vmem:[#allocation3 + $0x20] sm:$0xf] %vm55, 0.0
    %82 = vst.msk [vmem:[#allocation3 + $0x24] sm:$0xf] %vm55, 0.0
    %83 = vst.msk [vmem:[#allocation3 + $0x28] sm:$0xf] %vm55, 0.0
    %84 = vst.msk [vmem:[#allocation3 + $0x2c] sm:$0xf] %vm55, 0.0
    %85 = vst.msk [vmem:[#allocation3 + $0x30] sm:$0xf] %vm55, 0.0
    %86 = vst.msk [vmem:[#allocation3 + $0x34] sm:$0xf] %vm55, 0.0
    %87 = vst.msk [vmem:[#allocation3 + $0x38] sm:$0xf] %vm55, 0.0
    %88 = vst.msk [vmem:[#allocation3 + $0x3c] sm:$0xf] %vm55, 0.0
    %89 = vst.msk [vmem:[#allocation3 + $0x40] sm:$0xf] %vm55, 0.0
    %v90 = vld [vmem:[%s10] sm:$0x1]
    %v92 = vlaneseq
    %v93 = vshrl.u32 %v92, 7
    %v94 = vsub.s32 0, %v93
    %v95 = vrot.slane %v90, %v94
    %97 = vst.msk [vmem:[#allocation2] sm:$0xf] %vm55, %v95
    %v98 = vld [vmem:[%s11] sm:$0x1]
    %v100 = vlaneseq
    %v101 = vshrl.u32 %v100, 7
    %v102 = vsub.s32 0, %v101
    %v103 = vrot.slane %v98, %v102
    %105 = vst.msk [vmem:[#allocation3] sm:$0xf] %vm55, %v103
    %v106 = vld [vmem:[%s2] sm:$0xff]
    %v107 = vld [vmem:[%s2 + $0x8] sm:$0xff]
    %v108 = vld [vmem:[%s5] sm:$0xff]
    %v109 = vld [vmem:[%s5 + $0x8] sm:$0xff]
    %v110 = vld [vmem:[%s5 + $0x10] sm:$0xff]
    %v111 = vld [vmem:[%s5 + $0x18] sm:$0xff]
    %v112 = vld [vmem:[%s3] sm:$0xff]
    %v113 = vld [vmem:[%s3 + $0x8] sm:$0xff]
    %v114 = vld [vmem:[%s3 + $0x10] sm:$0xff]
    %v115 = vld [vmem:[%s3 + $0x18] sm:$0xff]
    %v116 = vld [vmem:[%s6] sm:$0xff]
    %v117 = vld [vmem:[%s6 + $0x8] sm:$0xff]
    %v118 = vld [vmem:[%s6 + $0x10] sm:$0xff]
    %v119 = vld [vmem:[%s6 + $0x18] sm:$0xff]
    %v120 = vld [vmem:[%s4] sm:$0x1]
    %v121 = vld [vmem:[%s7] sm:$0x1]
    %v122 = vld [vmem:[%s1] sm:$0xff]
    %v123 = vld [vmem:[%s1 + $0x8] sm:$0xff]
    %v125 = vlaneseq
    %v126 = vshrl.u32 %v125, 7
    %v127 = vsub.s32 0, %v126
    %v128 = vrot.slane %v120, %v127
    %vm130 = vcmask 130048
    %v132 = vsel %vm130, %v122, 0
    %v135 = vsel %vm130, %v123, 0
    %137 = vmatprep.subr.mxu0 0.0
    %138 = vmatpush1.msra.mxu0 %v106
    %139 = vmatprep.subr.mxu0 0.0
    %140 = vmatpush1.msra.mxu0 %v107
    %141 = vmatprep.subr.mxu0 0.0
    %142 = vmatpush1.msra.mxu0 0.0
    %143 = vmatprep.subr.mxu0 0.0
    %144 = vmatpush1.msra.mxu0 0.0
    %145 = vmatprep.subr.mxu0 0.0
    %146 = vmatpush1.msra.mxu0 0.0
    %147 = vmatprep.subr.mxu0 0.0
    %148 = vmatpush1.msra.mxu0 0.0
    %149 = vmatprep.subr.mxu0 0.0
    %150 = vmatpush1.msra.mxu0 0.0
    %151 = vmatprep.subr.mxu0 0.0
    %152 = vmatpush1.msra.mxu0 0.0
    %153 = vmatprep.subr.mxu0 0.0
    %154 = vmatpush1.msra.mxu0 0.0
    %155 = vmatprep.subr.mxu0 0.0
    %156 = vmatpush1.msra.mxu0 0.0
    %157 = vmatprep.subr.mxu0 0.0
    %158 = vmatpush1.msra.mxu0 0.0
    %159 = vmatprep.subr.mxu0 0.0
    %160 = vmatpush1.msra.mxu0 0.0
    %161 = vmatprep.subr.mxu0 0.0
    %162 = vmatpush1.msra.mxu0 0.0
    %163 = vmatprep.subr.mxu0 0.0
    %164 = vmatpush1.msra.mxu0 0.0
    %165 = vmatprep.subr.mxu0 0.0
    %166 = vmatpush1.msra.mxu0 0.0
    %167 = vmatprep.subr.mxu0 0.0
    %168 = vmatpush1.msra.mxu0 0.0
    %169 = vmatprep.subr.mxu0 0.0
    %170 = vmatpush1.msra.mxu0 0.0
    %171 = vmatprep.subr.mxu0 0.0
    %172 = vmatpush1.msra.mxu0 0.0
    %173 = vmatprep.subr.mxu0 0.0
    %174 = vmatpush1.msra.mxu0 0.0
    %175 = vmatprep.subr.mxu0 0.0
    %176 = vmatpush1.msra.mxu0 0.0
    %177 = vmatprep.subr.mxu0 0.0
    %178 = vmatpush1.msra.mxu0 0.0
    %179 = vmatprep.subr.mxu0 0.0
    %180 = vmatpush1.msra.mxu0 0.0
    %181 = vmatprep.subr.mxu0 0.0
    %182 = vmatpush1.msra.mxu0 0.0
    %183 = vmatprep.subr.mxu0 0.0
    %184 = vmatpush1.msra.mxu0 0.0
    %185 = vmatprep.subr.mxu0 0.0
    %186 = vmatpush1.msra.mxu0 0.0
    %187 = vmatprep.subr.mxu0 0.0
    %188 = vmatpush1.msra.mxu0 0.0
    %189 = vmatprep.subr.mxu0 0.0
    %190 = vmatpush1.msra.mxu0 0.0
    %191 = vmatprep.subr.mxu0 0.0
    %192 = vmatpush1.msra.mxu0 0.0
    %193 = vmatprep.subr.mxu0 0.0
    %194 = vmatpush1.msra.mxu0 0.0
    %195 = vmatprep.subr.mxu0 0.0
    %196 = vmatpush1.msra.mxu0 0.0
    %197 = vmatprep.subr.mxu0 0.0
    %198 = vmatpush1.msra.mxu0 0.0
    %199 = vmatprep.subr.mxu0 0.0
    %200 = vmatpush1.msra.mxu0 0.0
    %201 = vmatprep.mubr.f32.mxu0 0.0
    %202 = vmatmul.mubr.f32.gmra.mrb[0].mxu0 %v132
    %v203 = vpop.f32.mrb[0].mxu0
    %v204 = vadd.f32 %v128, %v203
    %v205 = vpop.f32.mrb[0].mxu0
    %206 = vmatprep.mubr.f32.mxu0 0.0
    %207 = vmatmul.mubr.f32.gmra.mrb[0].mxu0 %v135
    %v208 = vpop.f32.mrb[0].mxu0
    %v209 = vadd.f32 %v128, %v208
    %v210 = vpop.f32.mrb[0].mxu0
    %211 = vdwg.mxu0
    %v212 = vld [vmem:[#allocation2] sm:$0x1]
    %v213 = vld [vmem:[#allocation2 + $0x2] sm:$0x1]
    %v215 = vrot.slane %v213, 7
    %vm217 = vcmask 1040384
    %v218 = vsel %vm217, %v212, %v215
    %v219 = vld [vmem:[#allocation3] sm:$0x1]
    %v220 = vld [vmem:[#allocation3 + $0x2] sm:$0x1]
    %v222 = vrot.slane %v220, 7
    %v224 = vsel %vm217, %v219, %v222
    %v225 = vld [vmem:[#allocation2 + $0x1] sm:$0x1]
    %v226 = vld [vmem:[#allocation2 + $0x3] sm:$0x1]
    %v228 = vrot.slane %v226, 7
    %v230 = vsel %vm217, %v225, %v228
    %v231 = vld [vmem:[#allocation3 + $0x1] sm:$0x1]
    %v232 = vld [vmem:[#allocation3 + $0x3] sm:$0x1]
    %v234 = vrot.slane %v232, 7
    %v236 = vsel %vm217, %v231, %v234
    %vm237 = vcmask 261120
    %v239 = vsel %vm237, %v218, 0
    %241 = vmatprep.subr.mxu0 0.0
    %242 = vmatpush1.msra.mxu0 %v112
    %243 = vmatprep.subr.mxu0 0.0
    %244 = vmatpush1.msra.mxu0 %v113
    %245 = vmatprep.subr.mxu0 0.0
    %246 = vmatpush1.msra.mxu0 %v114
    %247 = vmatprep.subr.mxu0 0.0
    %248 = vmatpush1.msra.mxu0 %v115
    %249 = vmatprep.subr.mxu0 0.0
    %250 = vmatpush1.msra.mxu0 0.0
    %251 = vmatprep.subr.mxu0 0.0
    %252 = vmatpush1.msra.mxu0 0.0
    %253 = vmatprep.subr.mxu0 0.0
    %254 = vmatpush1.msra.mxu0 0.0
    %255 = vmatprep.subr.mxu0 0.0
    %256 = vmatpush1.msra.mxu0 0.0
    %257 = vmatprep.subr.mxu0 0.0
    %258 = vmatpush1.msra.mxu0 0.0
    %259 = vmatprep.subr.mxu0 0.0
    %260 = vmatpush1.msra.mxu0 0.0
    %261 = vmatprep.subr.mxu0 0.0
    %262 = vmatpush1.msra.mxu0 0.0
    %263 = vmatprep.subr.mxu0 0.0
    %264 = vmatpush1.msra.mxu0 0.0
    %265 = vmatprep.subr.mxu0 0.0
    %266 = vmatpush1.msra.mxu0 0.0
    %267 = vmatprep.subr.mxu0 0.0
    %268 = vmatpush1.msra.mxu0 0.0
    %269 = vmatprep.subr.mxu0 0.0
    %270 = vmatpush1.msra.mxu0 0.0
    %271 = vmatprep.subr.mxu0 0.0
    %272 = vmatpush1.msra.mxu0 0.0
    %273 = vmatprep.subr.mxu0 0.0
    %274 = vmatpush1.msra.mxu0 0.0
    %275 = vmatprep.subr.mxu0 0.0
    %276 = vmatpush1.msra.mxu0 0.0
    %277 = vmatprep.subr.mxu0 0.0
    %278 = vmatpush1.msra.mxu0 0.0
    %279 = vmatprep.subr.mxu0 0.0
    %280 = vmatpush1.msra.mxu0 0.0
    %281 = vmatprep.subr.mxu0 0.0
    %282 = vmatpush1.msra.mxu0 0.0
    %283 = vmatprep.subr.mxu0 0.0
    %284 = vmatpush1.msra.mxu0 0.0
    %285 = vmatprep.subr.mxu0 0.0
    %286 = vmatpush1.msra.mxu0 0.0
    %287 = vmatprep.subr.mxu0 0.0
    %288 = vmatpush1.msra.mxu0 0.0
    %289 = vmatprep.subr.mxu0 0.0
    %290 = vmatpush1.msra.mxu0 0.0
    %291 = vmatprep.subr.mxu0 0.0
    %292 = vmatpush1.msra.mxu0 0.0
    %293 = vmatprep.subr.mxu0 0.0
    %294 = vmatpush1.msra.mxu0 0.0
    %295 = vmatprep.subr.mxu0 0.0
    %296 = vmatpush1.msra.mxu0 0.0
    %297 = vmatprep.subr.mxu0 0.0
    %298 = vmatpush1.msra.mxu0 0.0
    %299 = vmatprep.subr.mxu0 0.0
    %300 = vmatpush1.msra.mxu0 0.0
    %301 = vmatprep.subr.mxu0 0.0
    %302 = vmatpush1.msra.mxu0 0.0
    %303 = vmatprep.subr.mxu0 0.0
    %304 = vmatpush1.msra.mxu0 0.0
    %305 = vmatprep.mubr.f32.mxu0 0.0
    %306 = vmatmul.mubr.f32.gmra.mrb[0].mxu0 %v239
    %v307 = vpop.f32.mrb[0].mxu0
    %v308 = vadd.f32 0.0, %v307
    %v309 = vpop.f32.mrb[0].mxu0
    %310 = vdwg.mxu0
    %v311 = vadd.f32 %v204, %v308
    %v312 = vxor.u32 %v311, 2147483648
    %v313 = vmul.f32 %v312, 1.442695
    %v314 = vpow.pop %v313
    %v315 = vadd.f32 %v314, 1.0
    %v316 = vrcp.pop %v315
    %v317 = vmul.f32 1.0, %v316
    %v318 = vtanh.pop %v311
    %320 = vrot.lane.b32.xlu0 %v224, 32
    %v321 = vpop.permute.xlu0 %320
    %v323 = vmul.f32 %v317, %v321
    %325 = vrot.lane.b32.xlu0 %v318, 64
    %v326 = vpop.permute.xlu0 %325
    %v328 = vmul.f32 %v317, %v326
    %330 = vrot.lane.b32.xlu0 %v328, 32
    %v331 = vpop.permute.xlu0 %330
    %v333 = vadd.f32 %v323, %v331
    %v334 = vtanh.pop %v333
    %336 = vrot.lane.b32.xlu0 %v334, 64
    %v337 = vpop.permute.xlu0 %336
    %v339 = vmul.f32 %v317, %v337
    %v341 = vsel %vm237, %v230, 0
    %343 = vmatprep.subr.mxu0 0.0
    %344 = vmatpush1.msra.mxu0 %v116
    %345 = vmatprep.subr.mxu0 0.0
    %346 = vmatpush1.msra.mxu0 %v117
    %347 = vmatprep.subr.mxu0 0.0
    %348 = vmatpush1.msra.mxu0 %v118
    %349 = vmatprep.subr.mxu0 0.0
    %350 = vmatpush1.msra.mxu0 %v119
    %351 = vmatprep.subr.mxu0 0.0
    %352 = vmatpush1.msra.mxu0 0.0
    %353 = vmatprep.subr.mxu0 0.0
    %354 = vmatpush1.msra.mxu0 0.0
    %355 = vmatprep.subr.mxu0 0.0
    %356 = vmatpush1.msra.mxu0 0.0
    %357 = vmatprep.subr.mxu0 0.0
    %358 = vmatpush1.msra.mxu0 0.0
    %359 = vmatprep.subr.mxu0 0.0
    %360 = vmatpush1.msra.mxu0 0.0
    %361 = vmatprep.subr.mxu0 0.0
    %362 = vmatpush1.msra.mxu0 0.0
    %363 = vmatprep.subr.mxu0 0.0
    %364 = vmatpush1.msra.mxu0 0.0
    %365 = vmatprep.subr.mxu0 0.0
    %366 = vmatpush1.msra.mxu0 0.0
    %367 = vmatprep.subr.mxu0 0.0
    %368 = vmatpush1.msra.mxu0 0.0
    %369 = vmatprep.subr.mxu0 0.0
    %370 = vmatpush1.msra.mxu0 0.0
    %371 = vmatprep.subr.mxu0 0.0
    %372 = vmatpush1.msra.mxu0 0.0
    %373 = vmatprep.subr.mxu0 0.0
    %374 = vmatpush1.msra.mxu0 0.0
    %375 = vmatprep.subr.mxu0 0.0
    %376 = vmatpush1.msra.mxu0 0.0
    %377 = vmatprep.subr.mxu0 0.0
    %378 = vmatpush1.msra.mxu0 0.0
    %379 = vmatprep.subr.mxu0 0.0
    %380 = vmatpush1.msra.mxu0 0.0
    %381 = vmatprep.subr.mxu0 0.0
    %382 = vmatpush1.msra.mxu0 0.0
    %383 = vmatprep.subr.mxu0 0.0
    %384 = vmatpush1.msra.mxu0 0.0
    %385 = vmatprep.subr.mxu0 0.0
    %386 = vmatpush1.msra.mxu0 0.0
    %387 = vmatprep.subr.mxu0 0.0
    %388 = vmatpush1.msra.mxu0 0.0
    %389 = vmatprep.subr.mxu0 0.0
    %390 = vmatpush1.msra.mxu0 0.0
    %391 = vmatprep.subr.mxu0 0.0
    %392 = vmatpush1.msra.mxu0 0.0
    %393 = vmatprep.subr.mxu0 0.0
    %394 = vmatpush1.msra.mxu0 0.0
    %395 = vmatprep.subr.mxu0 0.0
    %396 = vmatpush1.msra.mxu0 0.0
    %397 = vmatprep.subr.mxu0 0.0
    %398 = vmatpush1.msra.mxu0 0.0
    %399 = vmatprep.subr.mxu0 0.0
    %400 = vmatpush1.msra.mxu0 0.0
    %401 = vmatprep.subr.mxu0 0.0
    %402 = vmatpush1.msra.mxu0 0.0
    %403 = vmatprep.subr.mxu0 0.0
    %404 = vmatpush1.msra.mxu0 0.0
    %405 = vmatprep.subr.mxu0 0.0
    %406 = vmatpush1.msra.mxu0 0.0
    %407 = vmatprep.mubr.f32.mxu0 0.0
    %408 = vmatmul.mubr.f32.gmra.mrb[0].mxu0 %v341
    %v409 = vpop.f32.mrb[0].mxu0
    %v410 = vadd.f32 0.0, %v409
    %v411 = vpop.f32.mrb[0].mxu0
    %412 = vdwg.mxu0
    %414 = vrot.lane.b32.xlu0 %v339, 32
    %v415 = vpop.permute.xlu0 %414
    %v416 = vsel %vm237, %v415, 0
    %418 = vmatprep.subr.mxu0 0.0
    %419 = vmatpush1.msra.mxu0 %v108
    %420 = vmatprep.subr.mxu0 0.0
    %421 = vmatpush1.msra.mxu0 %v109
    %422 = vmatprep.subr.mxu0 0.0
    %423 = vmatpush1.msra.mxu0 %v110
    %424 = vmatprep.subr.mxu0 0.0
    %425 = vmatpush1.msra.mxu0 %v111
    %426 = vmatprep.subr.mxu0 0.0
    %427 = vmatpush1.msra.mxu0 0.0
    %428 = vmatprep.subr.mxu0 0.0
    %429 = vmatpush1.msra.mxu0 0.0
    %430 = vmatprep.subr.mxu0 0.0
    %431 = vmatpush1.msra.mxu0 0.0
    %432 = vmatprep.subr.mxu0 0.0
    %433 = vmatpush1.msra.mxu0 0.0
    %434 = vmatprep.subr.mxu0 0.0
    %435 = vmatpush1.msra.mxu0 0.0
    %436 = vmatprep.subr.mxu0 0.0
    %437 = vmatpush1.msra.mxu0 0.0
    %438 = vmatprep.subr.mxu0 0.0
    %439 = vmatpush1.msra.mxu0 0.0
    %440 = vmatprep.subr.mxu0 0.0
    %441 = vmatpush1.msra.mxu0 0.0
    %442 = vmatprep.subr.mxu0 0.0
    %443 = vmatpush1.msra.mxu0 0.0
    %444 = vmatprep.subr.mxu0 0.0
    %445 = vmatpush1.msra.mxu0 0.0
    %446 = vmatprep.subr.mxu0 0.0
    %447 = vmatpush1.msra.mxu0 0.0
    %448 = vmatprep.subr.mxu0 0.0
    %449 = vmatpush1.msra.mxu0 0.0
    %450 = vmatprep.subr.mxu0 0.0
    %451 = vmatpush1.msra.mxu0 0.0
    %452 = vmatprep.subr.mxu0 0.0
    %453 = vmatpush1.msra.mxu0 0.0
    %454 = vmatprep.subr.mxu0 0.0
    %455 = vmatpush1.msra.mxu0 0.0
    %456 = vmatprep.subr.mxu0 0.0
    %457 = vmatpush1.msra.mxu0 0.0
    %458 = vmatprep.subr.mxu0 0.0
    %459 = vmatpush1.msra.mxu0 0.0
    %460 = vmatprep.subr.mxu0 0.0
    %461 = vmatpush1.msra.mxu0 0.0
    %462 = vmatprep.subr.mxu0 0.0
    %463 = vmatpush1.msra.mxu0 0.0
    %464 = vmatprep.subr.mxu0 0.0
    %465 = vmatpush1.msra.mxu0 0.0
    %466 = vmatprep.subr.mxu0 0.0
    %467 = vmatpush1.msra.mxu0 0.0
    %468 = vmatprep.subr.mxu0 0.0
    %469 = vmatpush1.msra.mxu0 0.0
    %470 = vmatprep.subr.mxu0 0.0
    %471 = vmatpush1.msra.mxu0 0.0
    %472 = vmatprep.subr.mxu0 0.0
    %473 = vmatpush1.msra.mxu0 0.0
    %474 = vmatprep.subr.mxu0 0.0
    %475 = vmatpush1.msra.mxu0 0.0
    %476 = vmatprep.subr.mxu0 0.0
    %477 = vmatpush1.msra.mxu0 0.0
    %478 = vmatprep.subr.mxu0 0.0
    %479 = vmatpush1.msra.mxu0 0.0
    %480 = vmatprep.subr.mxu0 0.0
    %481 = vmatpush1.msra.mxu0 0.0
    %482 = vmatprep.mubr.f32.mxu0 0.0
    %483 = vmatmul.mubr.f32.gmra.mrb[0].mxu0 %v416
    %v484 = vpop.f32.mrb[0].mxu0
    %v485 = vadd.f32 %v410, %v484
    %v486 = vpop.f32.mrb[0].mxu0
    %487 = vdwg.mxu0
    %v489 = vlaneseq
    %v490 = vshrl.u32 %v489, 7
    %v491 = vsub.s32 0, %v490
    %v492 = vrot.slane %v121, %v491
    %v494 = vadd.f32 %v485, %v492
    %v495 = vxor.u32 %v494, 2147483648
    %v496 = vmul.f32 %v495, 1.442695
    %v497 = vpow.pop %v496
    %v498 = vadd.f32 %v497, 1.0
    %v499 = vrcp.pop %v498
    %v500 = vmul.f32 1.0, %v499
    %v501 = vtanh.pop %v494
    %503 = vrot.lane.b32.xlu0 %v236, 32
    %v504 = vpop.permute.xlu0 %503
    %v506 = vmul.f32 %v500, %v504
    %508 = vrot.lane.b32.xlu0 %v501, 64
    %v509 = vpop.permute.xlu0 %508
    %v511 = vmul.f32 %v500, %v509
    %513 = vrot.lane.b32.xlu0 %v511, 32
    %v514 = vpop.permute.xlu0 %513
    %v516 = vadd.f32 %v506, %v514
    %v517 = vtanh.pop %v516
    %519 = vrot.lane.b32.xlu0 %v517, 64
    %v520 = vpop.permute.xlu0 %519
    %v522 = vmul.f32 %v500, %v520
    %s524 = scalar_lea.vmem [#allocation2], 4
    %vm525 = vcmask 253952
    %526 = vst.msk [vmem:[%s524] sm:$0x1] %vm525, %v415
    %528 = vrot.lane.b32.xlu0 %v333, 96
    %v529 = vpop.permute.xlu0 %528
    %s531 = scalar_lea.vmem [#allocation3], 4
    %532 = vst.msk [vmem:[%s531] sm:$0x1] %vm525, %v529
    %534 = vrot.lane.b32.xlu0 %v522, 32
    %v535 = vpop.permute.xlu0 %534
    %537 = vst.msk [vmem:[%s524 + $0x1] sm:$0x1] %vm525, %v535
    %539 = vrot.lane.b32.xlu0 %v516, 96
    %v540 = vpop.permute.xlu0 %539
    %542 = vst.msk [vmem:[%s531 + $0x1] sm:$0x1] %vm525, %v540
    %s543 = sld [smem:[#allocation5]]
    %p544 = scmp.gt.s32.totalorder %s543, 0
    %s545 = scalar_select %p544, %s543, 0
    %p546 = scmp.lt.s32.totalorder %s545, 16
    %s547 = scalar_select %p546, %s545, 16
    %s548 = smul.u32 %s547, 4
    %s549 = scalar_lea.vmem [#allocation2], %s548
    %v550 = vld [vmem:[%s549 + $0x1] sm:$0x1]
    %551 = vst.msk [vmem:[#allocation4] sm:$0x1] %vm525, %v550
    %vm552 = vcmask 254977
    %553 = vst.msk [vmem:[%s524 + $0x1] sm:$0x2] %vm552, %v415
    %554 = vst.msk [vmem:[%s531 + $0x1] sm:$0x2] %vm552, %v529
    %555 = vst.msk [vmem:[%s524 + $0x2] sm:$0x2] %vm552, %v535
    %556 = vst.msk [vmem:[%s531 + $0x2] sm:$0x2] %vm552, %v540
    %s557 = sld [smem:[#allocation5 + $0x1]]
    %p558 = scmp.gt.s32.totalorder %s557, 0
    %s559 = scalar_select %p558, %s557, 0
    %p560 = scmp.lt.s32.totalorder %s559, 16
    %s561 = scalar_select %p560, %s559, 16
    %s562 = smul.u32 %s561, 4
    %s563 = scalar_lea.vmem [#allocation2], %s562
    %v564 = vld [vmem:[%s563 + $0x3] sm:$0x1]
    %565 = vst.msk [vmem:[#allocation4 + $0x8] sm:$0x1] %vm525, %v564
    %v566 = vld [vmem:[%s549] sm:$0x1]
    %v567 = vld [vmem:[%s563 + $0x2] sm:$0x1]
    %v569 = vrot.slane %v567, 7
    %v571 = vsel %vm217, %v566, %v569
    %s572 = scalar_lea.vmem [#allocation3], %s548
    %v573 = vld [vmem:[%s572] sm:$0x1]
    %s574 = scalar_lea.vmem [#allocation3], %s562
    %v575 = vld [vmem:[%s574 + $0x2] sm:$0x1]
    %v577 = vrot.slane %v575, 7
    %v579 = vsel %vm217, %v573, %v577
    %v580 = vld [vmem:[%s549 + $0x1] sm:$0x1]
    %v581 = vld [vmem:[%s563 + $0x3] sm:$0x1]
    %v583 = vrot.slane %v581, 7
    %v585 = vsel %vm217, %v580, %v583
    %v586 = vld [vmem:[%s572 + $0x1] sm:$0x1]
    %v587 = vld [vmem:[%s574 + $0x3] sm:$0x1]
    %v589 = vrot.slane %v587, 7
    %v591 = vsel %vm217, %v586, %v589
    %v593 = vsel %vm237, %v571, 0
    %595 = vmatprep.subr.mxu0 0.0
    %596 = vmatpush1.msra.mxu0 %v112
    %597 = vmatprep.subr.mxu0 0.0
    %598 = vmatpush1.msra.mxu0 %v113
    %599 = vmatprep.subr.mxu0 0.0
    %600 = vmatpush1.msra.mxu0 %v114
    %601 = vmatprep.subr.mxu0 0.0
    %602 = vmatpush1.msra.mxu0 %v115
    %603 = vmatprep.subr.mxu0 0.0
    %604 = vmatpush1.msra.mxu0 0.0
    %605 = vmatprep.subr.mxu0 0.0
    %606 = vmatpush1.msra.mxu0 0.0
    %607 = vmatprep.subr.mxu0 0.0
    %608 = vmatpush1.msra.mxu0 0.0
    %609 = vmatprep.subr.mxu0 0.0
    %610 = vmatpush1.msra.mxu0 0.0
    %611 = vmatprep.subr.mxu0 0.0
    %612 = vmatpush1.msra.mxu0 0.0
    %613 = vmatprep.subr.mxu0 0.0
    %614 = vmatpush1.msra.mxu0 0.0
    %615 = vmatprep.subr.mxu0 0.0
    %616 = vmatpush1.msra.mxu0 0.0
    %617 = vmatprep.subr.mxu0 0.0
    %618 = vmatpush1.msra.mxu0 0.0
    %619 = vmatprep.subr.mxu0 0.0
    %620 = vmatpush1.msra.mxu0 0.0
    %621 = vmatprep.subr.mxu0 0.0
    %622 = vmatpush1.msra.mxu0 0.0
    %623 = vmatprep.subr.mxu0 0.0
    %624 = vmatpush1.msra.mxu0 0.0
    %625 = vmatprep.subr.mxu0 0.0
    %626 = vmatpush1.msra.mxu0 0.0
    %627 = vmatprep.subr.mxu0 0.0
    %628 = vmatpush1.msra.mxu0 0.0
    %629 = vmatprep.subr.mxu0 0.0
    %630 = vmatpush1.msra.mxu0 0.0
    %631 = vmatprep.subr.mxu0 0.0
    %632 = vmatpush1.msra.mxu0 0.0
    %633 = vmatprep.subr.mxu0 0.0
    %634 = vmatpush1.msra.mxu0 0.0
    %635 = vmatprep.subr.mxu0 0.0
    %636 = vmatpush1.msra.mxu0 0.0
    %637 = vmatprep.subr.mxu0 0.0
    %638 = vmatpush1.msra.mxu0 0.0
    %639 = vmatprep.subr.mxu0 0.0
    %640 = vmatpush1.msra.mxu0 0.0
    %641 = vmatprep.subr.mxu0 0.0
    %642 = vmatpush1.msra.mxu0 0.0
    %643 = vmatprep.subr.mxu0 0.0
    %644 = vmatpush1.msra.mxu0 0.0
    %645 = vmatprep.subr.mxu0 0.0
    %646 = vmatpush1.msra.mxu0 0.0
    %647 = vmatprep.subr.mxu0 0.0
    %648 = vmatpush1.msra.mxu0 0.0
    %649 = vmatprep.subr.mxu0 0.0
    %650 = vmatpush1.msra.mxu0 0.0
    %651 = vmatprep.subr.mxu0 0.0
    %652 = vmatpush1.msra.mxu0 0.0
    %653 = vmatprep.subr.mxu0 0.0
    %654 = vmatpush1.msra.mxu0 0.0
    %655 = vmatprep.subr.mxu0 0.0
    %656 = vmatpush1.msra.mxu0 0.0
    %657 = vmatprep.subr.mxu0 0.0
    %658 = vmatpush1.msra.mxu0 0.0
    %659 = vmatprep.mubr.f32.mxu0 0.0
    %660 = vmatmul.mubr.f32.gmra.mrb[0].mxu0 %v593
    %v661 = vpop.f32.mrb[0].mxu0
    %v662 = vadd.f32 0.0, %v661
    %v663 = vpop.f32.mrb[0].mxu0
    %664 = vdwg.mxu0
    %v666 = vrot.slane %v662, 6
    %v668 = vadd.f32 %v204, %v666
    %v669 = vxor.u32 %v668, 2147483648
    %v670 = vmul.f32 %v669, 1.442695
    %v671 = vpow.pop %v670
    %v672 = vadd.f32 %v671, 1.0
    %v673 = vrcp.pop %v672
    %v674 = vmul.f32 1.0, %v673
    %v675 = vtanh.pop %v668
    %v677 = vrot.slane %v579, 6
    %678 = vrot.lane.b32.xlu0 %v677, 32
    %v679 = vpop.permute.xlu0 %678
    %v681 = vmul.f32 %v674, %v679
    %683 = vrot.lane.b32.xlu0 %v675, 64
    %v684 = vpop.permute.xlu0 %683
    %v686 = vmul.f32 %v674, %v684
    %688 = vrot.lane.b32.xlu0 %v686, 32
    %v689 = vpop.permute.xlu0 %688
    %v691 = vadd.f32 %v681, %v689
    %v692 = vtanh.pop %v691
    %694 = vrot.lane.b32.xlu0 %v692, 64
    %v695 = vpop.permute.xlu0 %694
    %v697 = vmul.f32 %v674, %v695
    %v699 = vsel %vm237, %v585, 0
    %701 = vmatprep.subr.mxu0 0.0
    %702 = vmatpush1.msra.mxu0 %v116
    %703 = vmatprep.subr.mxu0 0.0
    %704 = vmatpush1.msra.mxu0 %v117
    %705 = vmatprep.subr.mxu0 0.0
    %706 = vmatpush1.msra.mxu0 %v118
    %707 = vmatprep.subr.mxu0 0.0
    %708 = vmatpush1.msra.mxu0 %v119
    %709 = vmatprep.subr.mxu0 0.0
    %710 = vmatpush1.msra.mxu0 0.0
    %711 = vmatprep.subr.mxu0 0.0
    %712 = vmatpush1.msra.mxu0 0.0
    %713 = vmatprep.subr.mxu0 0.0
    %714 = vmatpush1.msra.mxu0 0.0
    %715 = vmatprep.subr.mxu0 0.0
    %716 = vmatpush1.msra.mxu0 0.0
    %717 = vmatprep.subr.mxu0 0.0
    %718 = vmatpush1.msra.mxu0 0.0
    %719 = vmatprep.subr.mxu0 0.0
    %720 = vmatpush1.msra.mxu0 0.0
    %721 = vmatprep.subr.mxu0 0.0
    %722 = vmatpush1.msra.mxu0 0.0
    %723 = vmatprep.subr.mxu0 0.0
    %724 = vmatpush1.msra.mxu0 0.0
    %725 = vmatprep.subr.mxu0 0.0
    %726 = vmatpush1.msra.mxu0 0.0
    %727 = vmatprep.subr.mxu0 0.0
    %728 = vmatpush1.msra.mxu0 0.0
    %729 = vmatprep.subr.mxu0 0.0
    %730 = vmatpush1.msra.mxu0 0.0
    %731 = vmatprep.subr.mxu0 0.0
    %732 = vmatpush1.msra.mxu0 0.0
    %733 = vmatprep.subr.mxu0 0.0
    %734 = vmatpush1.msra.mxu0 0.0
    %735 = vmatprep.subr.mxu0 0.0
    %736 = vmatpush1.msra.mxu0 0.0
    %737 = vmatprep.subr.mxu0 0.0
    %738 = vmatpush1.msra.mxu0 0.0
    %739 = vmatprep.subr.mxu0 0.0
    %740 = vmatpush1.msra.mxu0 0.0
    %741 = vmatprep.subr.mxu0 0.0
    %742 = vmatpush1.msra.mxu0 0.0
    %743 = vmatprep.subr.mxu0 0.0
    %744 = vmatpush1.msra.mxu0 0.0
    %745 = vmatprep.subr.mxu0 0.0
    %746 = vmatpush1.msra.mxu0 0.0
    %747 = vmatprep.subr.mxu0 0.0
    %748 = vmatpush1.msra.mxu0 0.0
    %749 = vmatprep.subr.mxu0 0.0
    %750 = vmatpush1.msra.mxu0 0.0
    %751 = vmatprep.subr.mxu0 0.0
    %752 = vmatpush1.msra.mxu0 0.0
    %753 = vmatprep.subr.mxu0 0.0
    %754 = vmatpush1.msra.mxu0 0.0
    %755 = vmatprep.subr.mxu0 0.0
    %756 = vmatpush1.msra.mxu0 0.0
    %757 = vmatprep.subr.mxu0 0.0
    %758 = vmatpush1.msra.mxu0 0.0
    %759 = vmatprep.subr.mxu0 0.0
    %760 = vmatpush1.msra.mxu0 0.0
    %761 = vmatprep.subr.mxu0 0.0
    %762 = vmatpush1.msra.mxu0 0.0
    %763 = vmatprep.subr.mxu0 0.0
    %764 = vmatpush1.msra.mxu0 0.0
    %765 = vmatprep.mubr.f32.mxu0 0.0
    %766 = vmatmul.mubr.f32.gmra.mrb[0].mxu0 %v699
    %v767 = vpop.f32.mrb[0].mxu0
    %v768 = vadd.f32 0.0, %v767
    %v769 = vpop.f32.mrb[0].mxu0
    %770 = vdwg.mxu0
    %v772 = vrot.slane %v697, 2
    %773 = vrot.lane.b32.xlu0 %v772, 32
    %v774 = vpop.permute.xlu0 %773
    %v775 = vsel %vm237, %v774, 0
    %777 = vmatprep.subr.mxu0 0.0
    %778 = vmatpush1.msra.mxu0 %v108
    %779 = vmatprep.subr.mxu0 0.0
    %780 = vmatpush1.msra.mxu0 %v109
    %781 = vmatprep.subr.mxu0 0.0
    %782 = vmatpush1.msra.mxu0 %v110
    %783 = vmatprep.subr.mxu0 0.0
    %784 = vmatpush1.msra.mxu0 %v111
    %785 = vmatprep.subr.mxu0 0.0
    %786 = vmatpush1.msra.mxu0 0.0
    %787 = vmatprep.subr.mxu0 0.0
    %788 = vmatpush1.msra.mxu0 0.0
    %789 = vmatprep.subr.mxu0 0.0
    %790 = vmatpush1.msra.mxu0 0.0
    %791 = vmatprep.subr.mxu0 0.0
    %792 = vmatpush1.msra.mxu0 0.0
    %793 = vmatprep.subr.mxu0 0.0
    %794 = vmatpush1.msra.mxu0 0.0
    %795 = vmatprep.subr.mxu0 0.0
    %796 = vmatpush1.msra.mxu0 0.0
    %797 = vmatprep.subr.mxu0 0.0
    %798 = vmatpush1.msra.mxu0 0.0
    %799 = vmatprep.subr.mxu0 0.0
    %800 = vmatpush1.msra.mxu0 0.0
    %801 = vmatprep.subr.mxu0 0.0
    %802 = vmatpush1.msra.mxu0 0.0
    %803 = vmatprep.subr.mxu0 0.0
    %804 = vmatpush1.msra.mxu0 0.0
    %805 = vmatprep.subr.mxu0 0.0
    %806 = vmatpush1.msra.mxu0 0.0
    %807 = vmatprep.subr.mxu0 0.0
    %808 = vmatpush1.msra.mxu0 0.0
    %809 = vmatprep.subr.mxu0 0.0
    %810 = vmatpush1.msra.mxu0 0.0
    %811 = vmatprep.subr.mxu0 0.0
    %812 = vmatpush1.msra.mxu0 0.0
    %813 = vmatprep.subr.mxu0 0.0
    %814 = vmatpush1.msra.mxu0 0.0
    %815 = vmatprep.subr.mxu0 0.0
    %816 = vmatpush1.msra.mxu0 0.0
    %817 = vmatprep.subr.mxu0 0.0
    %818 = vmatpush1.msra.mxu0 0.0
    %819 = vmatprep.subr.mxu0 0.0
    %820 = vmatpush1.msra.mxu0 0.0
    %821 = vmatprep.subr.mxu0 0.0
    %822 = vmatpush1.msra.mxu0 0.0
    %823 = vmatprep.subr.mxu0 0.0
    %824 = vmatpush1.msra.mxu0 0.0
    %825 = vmatprep.subr.mxu0 0.0
    %826 = vmatpush1.msra.mxu0 0.0
    %827 = vmatprep.subr.mxu0 0.0
    %828 = vmatpush1.msra.mxu0 0.0
    %829 = vmatprep.subr.mxu0 0.0
    %830 = vmatpush1.msra.mxu0 0.0
    %831 = vmatprep.subr.mxu0 0.0
    %832 = vmatpush1.msra.mxu0 0.0
    %833 = vmatprep.subr.mxu0 0.0
    %834 = vmatpush1.msra.mxu0 0.0
    %835 = vmatprep.subr.mxu0 0.0
    %836 = vmatpush1.msra.mxu0 0.0
    %837 = vmatprep.subr.mxu0 0.0
    %838 = vmatpush1.msra.mxu0 0.0
    %839 = vmatprep.subr.mxu0 0.0
    %840 = vmatpush1.msra.mxu0 0.0
    %841 = vmatprep.mubr.f32.mxu0 0.0
    %842 = vmatmul.mubr.f32.gmra.mrb[0].mxu0 %v775
    %v843 = vpop.f32.mrb[0].mxu0
    %v844 = vadd.f32 %v768, %v843
    %v845 = vpop.f32.mrb[0].mxu0
    %846 = vdwg.mxu0
    %v847 = vadd.f32 %v844, %v492
    %v848 = vxor.u32 %v847, 2147483648
    %v849 = vmul.f32 %v848, 1.442695
    %v850 = vpow.pop %v849
    %v851 = vadd.f32 %v850, 1.0
    %v852 = vrcp.pop %v851
    %v853 = vmul.f32 1.0, %v852
    %v854 = vtanh.pop %v847
    %856 = vrot.lane.b32.xlu0 %v591, 32
    %v857 = vpop.permute.xlu0 %856
    %v859 = vmul.f32 %v853, %v857
    %861 = vrot.lane.b32.xlu0 %v854, 64
    %v862 = vpop.permute.xlu0 %861
    %v864 = vmul.f32 %v853, %v862
    %866 = vrot.lane.b32.xlu0 %v864, 32
    %v867 = vpop.permute.xlu0 %866
    %v869 = vadd.f32 %v859, %v867
    %v870 = vtanh.pop %v869
    %872 = vrot.lane.b32.xlu0 %v870, 64
    %v873 = vpop.permute.xlu0 %872
    %v875 = vmul.f32 %v853, %v873
    %s876 = sadd.s32 %s547, 1
    %p877 = scmp.lt.s32.totalorder %s876, 16
    %s878 = scalar_select %p877, %s876, 16
    %879 = vrot.lane.b32.xlu0 %v697, 32
    %v880 = vpop.permute.xlu0 %879
    %s882 = smul.u32 %s878, 4
    %s883 = scalar_lea.vmem [#allocation2], %s882
    %vm884 = vcmask 256002
    %885 = vst.msk [vmem:[%s883 - $0x2] sm:$0x4] %vm884, %v880
    %887 = vrot.lane.b32.xlu0 %v691, 96
    %v888 = vpop.permute.xlu0 %887
    %s890 = scalar_lea.vmem [#allocation3], %s882
    %891 = vst.msk [vmem:[%s890 - $0x2] sm:$0x4] %vm884, %v888
    %893 = vrot.lane.b32.xlu0 %v875, 32
    %v894 = vpop.permute.xlu0 %893
    %896 = vst.msk [vmem:[%s883 + $0x1] sm:$0x1] %vm525, %v894
    %898 = vrot.lane.b32.xlu0 %v869, 96
    %v899 = vpop.permute.xlu0 %898
    %901 = vst.msk [vmem:[%s890 + $0x1] sm:$0x1] %vm525, %v899
    %s902 = sld [smem:[#allocation5 + $0x80]]
    %s903 = sadd.s32 %s547, %s902
    %p904 = scmp.gt.s32.totalorder %s903, 0
    %s905 = scalar_select %p904, %s903, 0
    %p906 = scmp.lt.s32.totalorder %s905, 16
    %s907 = scalar_select %p906, %s905, 16
    %s908 = smul.u32 %s907, 4
    %s909 = scalar_lea.vmem [#allocation2], %s908
    %v910 = vld [vmem:[%s909 + $0x1] sm:$0x1]
    %911 = vst.msk [vmem:[#allocation4 + $0x1] sm:$0x1] %vm525, %v910
    %s912 = sadd.s32 %s561, 1
    %p913 = scmp.lt.s32.totalorder %s912, 16
    %s914 = scalar_select %p913, %s912, 16
    %s915 = smul.u32 %s914, 4
    %s916 = scalar_lea.vmem [#allocation2], %s915
    %vm917 = vcmask 257027
    %918 = vst.msk [vmem:[%s916 - $0x1] sm:$0x8] %vm917, %v880
    %s919 = scalar_lea.vmem [#allocation3], %s915
    %920 = vst.msk [vmem:[%s919 - $0x1] sm:$0x8] %vm917, %v888
    %921 = vst.msk [vmem:[%s916 + $0x2] sm:$0x2] %vm552, %v894
    %922 = vst.msk [vmem:[%s919 + $0x2] sm:$0x2] %vm552, %v899
    %s923 = sld [smem:[#allocation5 + $0x81]]
    %s924 = sadd.s32 %s561, %s923
    %p925 = scmp.gt.s32.totalorder %s924, 0
    %s926 = scalar_select %p925, %s924, 0
    %p927 = scmp.lt.s32.totalorder %s926, 16
    %s928 = scalar_select %p927, %s926, 16
    %s929 = smul.u32 %s928, 4
    %s930 = scalar_lea.vmem [#allocation2], %s929
    %v931 = vld [vmem:[%s930 + $0x3] sm:$0x1]
    %932 = vst.msk [vmem:[#allocation4 + $0x9] sm:$0x1] %vm525, %v931
    %v933 = vld [vmem:[%s909] sm:$0x1]
    %v934 = vld [vmem:[%s930 + $0x2] sm:$0x1]
    %v936 = vrot.slane %v934, 7
    %v938 = vsel %vm217, %v933, %v936
    %s939 = scalar_lea.vmem [#allocation3], %s908
    %v940 = vld [vmem:[%s939] sm:$0x1]
    %s941 = scalar_lea.vmem [#allocation3], %s929
    %v942 = vld [vmem:[%s941 + $0x2] sm:$0x1]
    %v944 = vrot.slane %v942, 7
    %v946 = vsel %vm217, %v940, %v944
    %v947 = vld [vmem:[%s909 + $0x1] sm:$0x1]
    %v948 = vld [vmem:[%s930 + $0x3] sm:$0x1]
    %v950 = vrot.slane %v948, 7
    %v952 = vsel %vm217, %v947, %v950
    %v953 = vld [vmem:[%s939 + $0x1] sm:$0x1]
    %v954 = vld [vmem:[%s941 + $0x3] sm:$0x1]
    %v956 = vrot.slane %v954, 7
    %v958 = vsel %vm217, %v953, %v956
    %v960 = vsel %vm237, %v938, 0
    %962 = vmatprep.subr.mxu0 0.0
    %963 = vmatpush1.msra.mxu0 %v112
    %964 = vmatprep.subr.mxu0 0.0
    %965 = vmatpush1.msra.mxu0 %v113
    %966 = vmatprep.subr.mxu0 0.0
    %967 = vmatpush1.msra.mxu0 %v114
    %968 = vmatprep.subr.mxu0 0.0
    %969 = vmatpush1.msra.mxu0 %v115
    %970 = vmatprep.subr.mxu0 0.0
    %971 = vmatpush1.msra.mxu0 0.0
    %972 = vmatprep.subr.mxu0 0.0
    %973 = vmatpush1.msra.mxu0 0.0
    %974 = vmatprep.subr.mxu0 0.0
    %975 = vmatpush1.msra.mxu0 0.0
    %976 = vmatprep.subr.mxu0 0.0
    %977 = vmatpush1.msra.mxu0 0.0
    %978 = vmatprep.subr.mxu0 0.0
    %979 = vmatpush1.msra.mxu0 0.0
    %980 = vmatprep.subr.mxu0 0.0
    %981 = vmatpush1.msra.mxu0 0.0
    %982 = vmatprep.subr.mxu0 0.0
    %983 = vmatpush1.msra.mxu0 0.0
    %984 = vmatprep.subr.mxu0 0.0
    %985 = vmatpush1.msra.mxu0 0.0
    %986 = vmatprep.subr.mxu0 0.0
    %987 = vmatpush1.msra.mxu0 0.0
    %988 = vmatprep.subr.mxu0 0.0
    %989 = vmatpush1.msra.mxu0 0.0
    %990 = vmatprep.subr.mxu0 0.0
    %991 = vmatpush1.msra.mxu0 0.0
    %992 = vmatprep.subr.mxu0 0.0
    %993 = vmatpush1.msra.mxu0 0.0
    %994 = vmatprep.subr.mxu0 0.0
    %995 = vmatpush1.msra.mxu0 0.0
    %996 = vmatprep.subr.mxu0 0.0
    %997 = vmatpush1.msra.mxu0 0.0
    %998 = vmatprep.subr.mxu0 0.0
    %999 = vmatpush1.msra.mxu0 0.0
    %1000 = vmatprep.subr.mxu0 0.0
    %1001 = vmatpush1.msra.mxu0 0.0
    %1002 = vmatprep.subr.mxu0 0.0
    %1003 = vmatpush1.msra.mxu0 0.0
    %1004 = vmatprep.subr.mxu0 0.0
    %1005 = vmatpush1.msra.mxu0 0.0
    %1006 = vmatprep.subr.mxu0 0.0
    %1007 = vmatpush1.msra.mxu0 0.0
    %1008 = vmatprep.subr.mxu0 0.0
    %1009 = vmatpush1.msra.mxu0 0.0
    %1010 = vmatprep.subr.mxu0 0.0
    %1011 = vmatpush1.msra.mxu0 0.0
    %1012 = vmatprep.subr.mxu0 0.0
    %1013 = vmatpush1.msra.mxu0 0.0
    %1014 = vmatprep.subr.mxu0 0.0
    %1015 = vmatpush1.msra.mxu0 0.0
    %1016 = vmatprep.subr.mxu0 0.0
    %1017 = vmatpush1.msra.mxu0 0.0
    %1018 = vmatprep.subr.mxu0 0.0
    %1019 = vmatpush1.msra.mxu0 0.0
    %1020 = vmatprep.subr.mxu0 0.0
    %1021 = vmatpush1.msra.mxu0 0.0
    %1022 = vmatprep.subr.mxu0 0.0
    %1023 = vmatpush1.msra.mxu0 0.0
    %1024 = vmatprep.subr.mxu0 0.0
    %1025 = vmatpush1.msra.mxu0 0.0
    %1026 = vmatprep.mubr.f32.mxu0 0.0
    %1027 = vmatmul.mubr.f32.gmra.mrb[0].mxu0 %v960
    %v1028 = vpop.f32.mrb[0].mxu0
    %v1029 = vadd.f32 0.0, %v1028
    %v1030 = vpop.f32.mrb[0].mxu0
    %1031 = vdwg.mxu0
    %v1033 = vrot.slane %v1029, 4
    %v1035 = vadd.f32 %v204, %v1033
    %v1036 = vxor.u32 %v1035, 2147483648
    %v1037 = vmul.f32 %v1036, 1.442695
    %v1038 = vpow.pop %v1037
    %v1039 = vadd.f32 %v1038, 1.0
    %v1040 = vrcp.pop %v1039
    %v1041 = vmul.f32 1.0, %v1040
    %v1042 = vtanh.pop %v1035
    %v1044 = vrot.slane %v946, 4
    %1045 = vrot.lane.b32.xlu0 %v1044, 32
    %v1046 = vpop.permute.xlu0 %1045
    %v1048 = vmul.f32 %v1041, %v1046
    %1050 = vrot.lane.b32.xlu0 %v1042, 64
    %v1051 = vpop.permute.xlu0 %1050
    %v1053 = vmul.f32 %v1041, %v1051
    %1055 = vrot.lane.b32.xlu0 %v1053, 32
    %v1056 = vpop.permute.xlu0 %1055
    %v1058 = vadd.f32 %v1048, %v1056
    %v1059 = vtanh.pop %v1058
    %1061 = vrot.lane.b32.xlu0 %v1059, 64
    %v1062 = vpop.permute.xlu0 %1061
    %v1064 = vmul.f32 %v1041, %v1062
    %v1066 = vsel %vm237, %v952, 0
    %1068 = vmatprep.subr.mxu0 0.0
    %1069 = vmatpush1.msra.mxu0 %v116
    %1070 = vmatprep.subr.mxu0 0.0
    %1071 = vmatpush1.msra.mxu0 %v117
    %1072 = vmatprep.subr.mxu0 0.0
    %1073 = vmatpush1.msra.mxu0 %v118
    %1074 = vmatprep.subr.mxu0 0.0
    %1075 = vmatpush1.msra.mxu0 %v119
    %1076 = vmatprep.subr.mxu0 0.0
    %1077 = vmatpush1.msra.mxu0 0.0
    %1078 = vmatprep.subr.mxu0 0.0
    %1079 = vmatpush1.msra.mxu0 0.0
    %1080 = vmatprep.subr.mxu0 0.0
    %1081 = vmatpush1.msra.mxu0 0.0
    %1082 = vmatprep.subr.mxu0 0.0
    %1083 = vmatpush1.msra.mxu0 0.0
    %1084 = vmatprep.subr.mxu0 0.0
    %1085 = vmatpush1.msra.mxu0 0.0
    %1086 = vmatprep.subr.mxu0 0.0
    %1087 = vmatpush1.msra.mxu0 0.0
    %1088 = vmatprep.subr.mxu0 0.0
    %1089 = vmatpush1.msra.mxu0 0.0
    %1090 = vmatprep.subr.mxu0 0.0
    %1091 = vmatpush1.msra.mxu0 0.0
    %1092 = vmatprep.subr.mxu0 0.0
    %1093 = vmatpush1.msra.mxu0 0.0
    %1094 = vmatprep.subr.mxu0 0.0
    %1095 = vmatpush1.msra.mxu0 0.0
    %1096 = vmatprep.subr.mxu0 0.0
    %1097 = vmatpush1.msra.mxu0 0.0
    %1098 = vmatprep.subr.mxu0 0.0
    %1099 = vmatpush1.msra.mxu0 0.0
    %1100 = vmatprep.subr.mxu0 0.0
    %1101 = vmatpush1.msra.mxu0 0.0
    %1102 = vmatprep.subr.mxu0 0.0
    %1103 = vmatpush1.msra.mxu0 0.0
    %1104 = vmatprep.subr.mxu0 0.0
    %1105 = vmatpush1.msra.mxu0 0.0
    %1106 = vmatprep.subr.mxu0 0.0
    %1107 = vmatpush1.msra.mxu0 0.0
    %1108 = vmatprep.subr.mxu0 0.0
    %1109 = vmatpush1.msra.mxu0 0.0
    %1110 = vmatprep.subr.mxu0 0.0
    %1111 = vmatpush1.msra.mxu0 0.0
    %1112 = vmatprep.subr.mxu0 0.0
    %1113 = vmatpush1.msra.mxu0 0.0
    %1114 = vmatprep.subr.mxu0 0.0
    %1115 = vmatpush1.msra.mxu0 0.0
    %1116 = vmatprep.subr.mxu0 0.0
    %1117 = vmatpush1.msra.mxu0 0.0
    %1118 = vmatprep.subr.mxu0 0.0
    %1119 = vmatpush1.msra.mxu0 0.0
    %1120 = vmatprep.subr.mxu0 0.0
    %1121 = vmatpush1.msra.mxu0 0.0
    %1122 = vmatprep.subr.mxu0 0.0
    %1123 = vmatpush1.msra.mxu0 0.0
    %1124 = vmatprep.subr.mxu0 0.0
    %1125 = vmatpush1.msra.mxu0 0.0
    %1126 = vmatprep.subr.mxu0 0.0
    %1127 = vmatpush1.msra.mxu0 0.0
    %1128 = vmatprep.subr.mxu0 0.0
    %1129 = vmatpush1.msra.mxu0 0.0
    %1130 = vmatprep.subr.mxu0 0.0
    %1131 = vmatpush1.msra.mxu0 0.0
    %1132 = vmatprep.mubr.f32.mxu0 0.0
    %1133 = vmatmul.mubr.f32.gmra.mrb[0].mxu0 %v1066
    %v1134 = vpop.f32.mrb[0].mxu0
    %v1135 = vadd.f32 0.0, %v1134
    %v1136 = vpop.f32.mrb[0].mxu0
    %1137 = vdwg.mxu0
    %v1139 = vrot.slane %v1064, 4
    %1140 = vrot.lane.b32.xlu0 %v1139, 32
    %v1141 = vpop.permute.xlu0 %1140
    %v1142 = vsel %vm237, %v1141, 0
    %1144 = vmatprep.subr.mxu0 0.0
    %1145 = vmatpush1.msra.mxu0 %v108
    %1146 = vmatprep.subr.mxu0 0.0
    %1147 = vmatpush1.msra.mxu0 %v109
    %1148 = vmatprep.subr.mxu0 0.0
    %1149 = vmatpush1.msra.mxu0 %v110
    %1150 = vmatprep.subr.mxu0 0.0
    %1151 = vmatpush1.msra.mxu0 %v111
    %1152 = vmatprep.subr.mxu0 0.0
    %1153 = vmatpush1.msra.mxu0 0.0
    %1154 = vmatprep.subr.mxu0 0.0
    %1155 = vmatpush1.msra.mxu0 0.0
    %1156 = vmatprep.subr.mxu0 0.0
    %1157 = vmatpush1.msra.mxu0 0.0
    %1158 = vmatprep.subr.mxu0 0.0
    %1159 = vmatpush1.msra.mxu0 0.0
    %1160 = vmatprep.subr.mxu0 0.0
    %1161 = vmatpush1.msra.mxu0 0.0
    %1162 = vmatprep.subr.mxu0 0.0
    %1163 = vmatpush1.msra.mxu0 0.0
    %1164 = vmatprep.subr.mxu0 0.0
    %1165 = vmatpush1.msra.mxu0 0.0
    %1166 = vmatprep.subr.mxu0 0.0
    %1167 = vmatpush1.msra.mxu0 0.0
    %1168 = vmatprep.subr.mxu0 0.0
    %1169 = vmatpush1.msra.mxu0 0.0
    %1170 = vmatprep.subr.mxu0 0.0
    %1171 = vmatpush1.msra.mxu0 0.0
    %1172 = vmatprep.subr.mxu0 0.0
    %1173 = vmatpush1.msra.mxu0 0.0
    %1174 = vmatprep.subr.mxu0 0.0
    %1175 = vmatpush1.msra.mxu0 0.0
    %1176 = vmatprep.subr.mxu0 0.0
    %1177 = vmatpush1.msra.mxu0 0.0
    %1178 = vmatprep.subr.mxu0 0.0
    %1179 = vmatpush1.msra.mxu0 0.0
    %1180 = vmatprep.subr.mxu0 0.0
    %1181 = vmatpush1.msra.mxu0 0.0
    %1182 = vmatprep.subr.mxu0 0.0
    %1183 = vmatpush1.msra.mxu0 0.0
    %1184 = vmatprep.subr.mxu0 0.0
    %1185 = vmatpush1.msra.mxu0 0.0
    %1186 = vmatprep.subr.mxu0 0.0
    %1187 = vmatpush1.msra.mxu0 0.0
    %1188 = vmatprep.subr.mxu0 0.0
    %1189 = vmatpush1.msra.mxu0 0.0
    %1190 = vmatprep.subr.mxu0 0.0
    %1191 = vmatpush1.msra.mxu0 0.0
    %1192 = vmatprep.subr.mxu0 0.0
    %1193 = vmatpush1.msra.mxu0 0.0
    %1194 = vmatprep.subr.mxu0 0.0
    %1195 = vmatpush1.msra.mxu0 0.0
    %1196 = vmatprep.subr.mxu0 0.0
    %1197 = vmatpush1.msra.mxu0 0.0
    %1198 = vmatprep.subr.mxu0 0.0
    %1199 = vmatpush1.msra.mxu0 0.0
    %1200 = vmatprep.subr.mxu0 0.0
    %1201 = vmatpush1.msra.mxu0 0.0
    %1202 = vmatprep.subr.mxu0 0.0
    %1203 = vmatpush1.msra.mxu0 0.0
    %1204 = vmatprep.subr.mxu0 0.0
    %1205 = vmatpush1.msra.mxu0 0.0
    %1206 = vmatprep.subr.mxu0 0.0
    %1207 = vmatpush1.msra.mxu0 0.0
    %1208 = vmatprep.mubr.f32.mxu0 0.0
    %1209 = vmatmul.mubr.f32.gmra.mrb[0].mxu0 %v1142
    %v1210 = vpop.f32.mrb[0].mxu0
    %v1211 = vadd.f32 %v1135, %v1210
    %v1212 = vpop.f32.mrb[0].mxu0
    %1213 = vdwg.mxu0
    %v1214 = vadd.f32 %v1211, %v492
    %v1215 = vxor.u32 %v1214, 2147483648
    %v1216 = vmul.f32 %v1215, 1.442695
    %v1217 = vpow.pop %v1216
    %v1218 = vadd.f32 %v1217, 1.0
    %v1219 = vrcp.pop %v1218
    %v1220 = vmul.f32 1.0, %v1219
    %v1221 = vtanh.pop %v1214
    %1223 = vrot.lane.b32.xlu0 %v958, 32
    %v1224 = vpop.permute.xlu0 %1223
    %v1226 = vmul.f32 %v1220, %v1224
    %1228 = vrot.lane.b32.xlu0 %v1221, 64
    %v1229 = vpop.permute.xlu0 %1228
    %v1231 = vmul.f32 %v1220, %v1229
    %1233 = vrot.lane.b32.xlu0 %v1231, 32
    %v1234 = vpop.permute.xlu0 %1233
    %v1236 = vadd.f32 %v1226, %v1234
    %v1237 = vtanh.pop %v1236
    %1239 = vrot.lane.b32.xlu0 %v1237, 64
    %v1240 = vpop.permute.xlu0 %1239
    %v1242 = vmul.f32 %v1220, %v1240
    %s1243 = sadd.s32 %s907, 1
    %p1244 = scmp.lt.s32.totalorder %s1243, 16
    %s1245 = scalar_select %p1244, %s1243, 16
    %1246 = vrot.lane.b32.xlu0 %v1064, 32
    %v1247 = vpop.permute.xlu0 %1246
    %s1249 = smul.u32 %s1245, 4
    %s1250 = scalar_lea.vmem [#allocation2], %s1249
    %vm1251 = vcmask 258052
    %1252 = vst.msk [vmem:[%s1250 - $0x4] sm:$0x10] %vm1251, %v1247
    %1254 = vrot.lane.b32.xlu0 %v1058, 96
    %v1255 = vpop.permute.xlu0 %1254
    %s1257 = scalar_lea.vmem [#allocation3], %s1249
    %1258 = vst.msk [vmem:[%s1257 - $0x4] sm:$0x10] %vm1251, %v1255
    %1260 = vrot.lane.b32.xlu0 %v1242, 32
    %v1261 = vpop.permute.xlu0 %1260
    %1263 = vst.msk [vmem:[%s1250 + $0x1] sm:$0x1] %vm525, %v1261
    %1265 = vrot.lane.b32.xlu0 %v1236, 96
    %v1266 = vpop.permute.xlu0 %1265
    %1268 = vst.msk [vmem:[%s1257 + $0x1] sm:$0x1] %vm525, %v1266
    %s1269 = sld [smem:[#allocation5 + $0x100]]
    %s1270 = sadd.s32 %s907, %s1269
    %p1271 = scmp.gt.s32.totalorder %s1270, 0
    %s1272 = scalar_select %p1271, %s1270, 0
    %p1273 = scmp.lt.s32.totalorder %s1272, 16
    %s1274 = scalar_select %p1273, %s1272, 16
    %s1275 = smul.u32 %s1274, 4
    %s1276 = scalar_lea.vmem [#allocation2], %s1275
    %v1277 = vld [vmem:[%s1276 + $0x1] sm:$0x1]
    %1278 = vst.msk [vmem:[#allocation4 + $0x2] sm:$0x1] %vm525, %v1277
    %s1279 = sadd.s32 %s928, 1
    %p1280 = scmp.lt.s32.totalorder %s1279, 16
    %s1281 = scalar_select %p1280, %s1279, 16
    %s1282 = smul.u32 %s1281, 4
    %s1283 = scalar_lea.vmem [#allocation2], %s1282
    %vm1284 = vcmask 259077
    %1285 = vst.msk [vmem:[%s1283 - $0x3] sm:$0x20] %vm1284, %v1247
    %s1286 = scalar_lea.vmem [#allocation3], %s1282
    %1287 = vst.msk [vmem:[%s1286 - $0x3] sm:$0x20] %vm1284, %v1255
    %1288 = vst.msk [vmem:[%s1283 + $0x2] sm:$0x2] %vm552, %v1261
    %1289 = vst.msk [vmem:[%s1286 + $0x2] sm:$0x2] %vm552, %v1266
    %s1290 = sld [smem:[#allocation5 + $0x101]]
    %s1291 = sadd.s32 %s928, %s1290
    %p1292 = scmp.gt.s32.totalorder %s1291, 0
    %s1293 = scalar_select %p1292, %s1291, 0
    %p1294 = scmp.lt.s32.totalorder %s1293, 16
    %s1295 = scalar_select %p1294, %s1293, 16
    %s1296 = smul.u32 %s1295, 4
    %s1297 = scalar_lea.vmem [#allocation2], %s1296
    %v1298 = vld [vmem:[%s1297 + $0x3] sm:$0x1]
    %1299 = vst.msk [vmem:[#allocation4 + $0xa] sm:$0x1] %vm525, %v1298
    %v1300 = vld [vmem:[%s1276] sm:$0x1]
    %v1301 = vld [vmem:[%s1297 + $0x2] sm:$0x1]
    %v1303 = vrot.slane %v1301, 7
    %v1305 = vsel %vm217, %v1300, %v1303
    %s1306 = scalar_lea.vmem [#allocation3], %s1275
    %v1307 = vld [vmem:[%s1306] sm:$0x1]
    %s1308 = scalar_lea.vmem [#allocation3], %s1296
    %v1309 = vld [vmem:[%s1308 + $0x2] sm:$0x1]
    %v1311 = vrot.slane %v1309, 7
    %v1313 = vsel %vm217, %v1307, %v1311
    %v1314 = vld [vmem:[%s1276 + $0x1] sm:$0x1]
    %v1315 = vld [vmem:[%s1297 + $0x3] sm:$0x1]
    %v1317 = vrot.slane %v1315, 7
    %v1319 = vsel %vm217, %v1314, %v1317
    %v1320 = vld [vmem:[%s1306 + $0x1] sm:$0x1]
    %v1321 = vld [vmem:[%s1308 + $0x3] sm:$0x1]
    %v1323 = vrot.slane %v1321, 7
    %v1325 = vsel %vm217, %v1320, %v1323
    %v1327 = vsel %vm237, %v1305, 0
    %1329 = vmatprep.subr.mxu0 0.0
    %1330 = vmatpush1.msra.mxu0 %v112
    %1331 = vmatprep.subr.mxu0 0.0
    %1332 = vmatpush1.msra.mxu0 %v113
    %1333 = vmatprep.subr.mxu0 0.0
    %1334 = vmatpush1.msra.mxu0 %v114
    %1335 = vmatprep.subr.mxu0 0.0
    %1336 = vmatpush1.msra.mxu0 %v115
    %1337 = vmatprep.subr.mxu0 0.0
    %1338 = vmatpush1.msra.mxu0 0.0
    %1339 = vmatprep.subr.mxu0 0.0
    %1340 = vmatpush1.msra.mxu0 0.0
    %1341 = vmatprep.subr.mxu0 0.0
    %1342 = vmatpush1.msra.mxu0 0.0
    %1343 = vmatprep.subr.mxu0 0.0
    %1344 = vmatpush1.msra.mxu0 0.0
    %1345 = vmatprep.subr.mxu0 0.0
    %1346 = vmatpush1.msra.mxu0 0.0
    %1347 = vmatprep.subr.mxu0 0.0
    %1348 = vmatpush1.msra.mxu0 0.0
    %1349 = vmatprep.subr.mxu0 0.0
    %1350 = vmatpush1.msra.mxu0 0.0
    %1351 = vmatprep.subr.mxu0 0.0
    %1352 = vmatpush1.msra.mxu0 0.0
    %1353 = vmatprep.subr.mxu0 0.0
    %1354 = vmatpush1.msra.mxu0 0.0
    %1355 = vmatprep.subr.mxu0 0.0
    %1356 = vmatpush1.msra.mxu0 0.0
    %1357 = vmatprep.subr.mxu0 0.0
    %1358 = vmatpush1.msra.mxu0 0.0
    %1359 = vmatprep.subr.mxu0 0.0
    %1360 = vmatpush1.msra.mxu0 0.0
    %1361 = vmatprep.subr.mxu0 0.0
    %1362 = vmatpush1.msra.mxu0 0.0
    %1363 = vmatprep.subr.mxu0 0.0
    %1364 = vmatpush1.msra.mxu0 0.0
    %1365 = vmatprep.subr.mxu0 0.0
    %1366 = vmatpush1.msra.mxu0 0.0
    %1367 = vmatprep.subr.mxu0 0.0
    %1368 = vmatpush1.msra.mxu0 0.0
    %1369 = vmatprep.subr.mxu0 0.0
    %1370 = vmatpush1.msra.mxu0 0.0
    %1371 = vmatprep.subr.mxu0 0.0
    %1372 = vmatpush1.msra.mxu0 0.0
    %1373 = vmatprep.subr.mxu0 0.0
    %1374 = vmatpush1.msra.mxu0 0.0
    %1375 = vmatprep.subr.mxu0 0.0
    %1376 = vmatpush1.msra.mxu0 0.0
    %1377 = vmatprep.subr.mxu0 0.0
    %1378 = vmatpush1.msra.mxu0 0.0
    %1379 = vmatprep.subr.mxu0 0.0
    %1380 = vmatpush1.msra.mxu0 0.0
    %1381 = vmatprep.subr.mxu0 0.0
    %1382 = vmatpush1.msra.mxu0 0.0
    %1383 = vmatprep.subr.mxu0 0.0
    %1384 = vmatpush1.msra.mxu0 0.0
    %1385 = vmatprep.subr.mxu0 0.0
    %1386 = vmatpush1.msra.mxu0 0.0
    %1387 = vmatprep.subr.mxu0 0.0
    %1388 = vmatpush1.msra.mxu0 0.0
    %1389 = vmatprep.subr.mxu0 0.0
    %1390 = vmatpush1.msra.mxu0 0.0
    %1391 = vmatprep.subr.mxu0 0.0
    %1392 = vmatpush1.msra.mxu0 0.0
    %1393 = vmatprep.mubr.f32.mxu0 0.0
    %1394 = vmatmul.mubr.f32.gmra.mrb[0].mxu0 %v1327
    %v1395 = vpop.f32.mrb[0].mxu0
    %v1396 = vadd.f32 0.0, %v1395
    %v1397 = vpop.f32.mrb[0].mxu0
    %1398 = vdwg.mxu0
    %v1400 = vrot.slane %v1396, 2
    %v1402 = vadd.f32 %v204, %v1400
    %v1403 = vxor.u32 %v1402, 2147483648
    %v1404 = vmul.f32 %v1403, 1.442695
    %v1405 = vpow.pop %v1404
    %v1406 = vadd.f32 %v1405, 1.0
    %v1407 = vrcp.pop %v1406
    %v1408 = vmul.f32 1.0, %v1407
    %v1409 = vtanh.pop %v1402
    %v1411 = vrot.slane %v1313, 2
    %1412 = vrot.lane.b32.xlu0 %v1411, 32
    %v1413 = vpop.permute.xlu0 %1412
    %v1415 = vmul.f32 %v1408, %v1413
    %1417 = vrot.lane.b32.xlu0 %v1409, 64
    %v1418 = vpop.permute.xlu0 %1417
    %v1420 = vmul.f32 %v1408, %v1418
    %1422 = vrot.lane.b32.xlu0 %v1420, 32
    %v1423 = vpop.permute.xlu0 %1422
    %v1425 = vadd.f32 %v1415, %v1423
    %v1426 = vtanh.pop %v1425
    %1428 = vrot.lane.b32.xlu0 %v1426, 64
    %v1429 = vpop.permute.xlu0 %1428
    %v1431 = vmul.f32 %v1408, %v1429
    %v1433 = vsel %vm237, %v1319, 0
    %1435 = vmatprep.subr.mxu0 0.0
    %1436 = vmatpush1.msra.mxu0 %v116
    %1437 = vmatprep.subr.mxu0 0.0
    %1438 = vmatpush1.msra.mxu0 %v117
    %1439 = vmatprep.subr.mxu0 0.0
    %1440 = vmatpush1.msra.mxu0 %v118
    %1441 = vmatprep.subr.mxu0 0.0
    %1442 = vmatpush1.msra.mxu0 %v119
    %1443 = vmatprep.subr.mxu0 0.0
    %1444 = vmatpush1.msra.mxu0 0.0
    %1445 = vmatprep.subr.mxu0 0.0
    %1446 = vmatpush1.msra.mxu0 0.0
    %1447 = vmatprep.subr.mxu0 0.0
    %1448 = vmatpush1.msra.mxu0 0.0
    %1449 = vmatprep.subr.mxu0 0.0
    %1450 = vmatpush1.msra.mxu0 0.0
    %1451 = vmatprep.subr.mxu0 0.0
    %1452 = vmatpush1.msra.mxu0 0.0
    %1453 = vmatprep.subr.mxu0 0.0
    %1454 = vmatpush1.msra.mxu0 0.0
    %1455 = vmatprep.subr.mxu0 0.0
    %1456 = vmatpush1.msra.mxu0 0.0
    %1457 = vmatprep.subr.mxu0 0.0
    %1458 = vmatpush1.msra.mxu0 0.0
    %1459 = vmatprep.subr.mxu0 0.0
    %1460 = vmatpush1.msra.mxu0 0.0
    %1461 = vmatprep.subr.mxu0 0.0
    %1462 = vmatpush1.msra.mxu0 0.0
    %1463 = vmatprep.subr.mxu0 0.0
    %1464 = vmatpush1.msra.mxu0 0.0
    %1465 = vmatprep.subr.mxu0 0.0
    %1466 = vmatpush1.msra.mxu0 0.0
    %1467 = vmatprep.subr.mxu0 0.0
    %1468 = vmatpush1.msra.mxu0 0.0
    %1469 = vmatprep.subr.mxu0 0.0
    %1470 = vmatpush1.msra.mxu0 0.0
    %1471 = vmatprep.subr.mxu0 0.0
    %1472 = vmatpush1.msra.mxu0 0.0
    %1473 = vmatprep.subr.mxu0 0.0
    %1474 = vmatpush1.msra.mxu0 0.0
    %1475 = vmatprep.subr.mxu0 0.0
    %1476 = vmatpush1.msra.mxu0 0.0
    %1477 = vmatprep.subr.mxu0 0.0
    %1478 = vmatpush1.msra.mxu0 0.0
    %1479 = vmatprep.subr.mxu0 0.0
    %1480 = vmatpush1.msra.mxu0 0.0
    %1481 = vmatprep.subr.mxu0 0.0
    %1482 = vmatpush1.msra.mxu0 0.0
    %1483 = vmatprep.subr.mxu0 0.0
    %1484 = vmatpush1.msra.mxu0 0.0
    %1485 = vmatprep.subr.mxu0 0.0
    %1486 = vmatpush1.msra.mxu0 0.0
    %1487 = vmatprep.subr.mxu0 0.0
    %1488 = vmatpush1.msra.mxu0 0.0
    %1489 = vmatprep.subr.mxu0 0.0
    %1490 = vmatpush1.msra.mxu0 0.0
    %1491 = vmatprep.subr.mxu0 0.0
    %1492 = vmatpush1.msra.mxu0 0.0
    %1493 = vmatprep.subr.mxu0 0.0
    %1494 = vmatpush1.msra.mxu0 0.0
    %1495 = vmatprep.subr.mxu0 0.0
    %1496 = vmatpush1.msra.mxu0 0.0
    %1497 = vmatprep.subr.mxu0 0.0
    %1498 = vmatpush1.msra.mxu0 0.0
    %1499 = vmatprep.mubr.f32.mxu0 0.0
    %1500 = vmatmul.mubr.f32.gmra.mrb[0].mxu0 %v1433
    %v1501 = vpop.f32.mrb[0].mxu0
    %v1502 = vadd.f32 0.0, %v1501
    %v1503 = vpop.f32.mrb[0].mxu0
    %1504 = vdwg.mxu0
    %v1506 = vrot.slane %v1431, 6
    %1507 = vrot.lane.b32.xlu0 %v1506, 32
    %v1508 = vpop.permute.xlu0 %1507
    %v1509 = vsel %vm237, %v1508, 0
    %1511 = vmatprep.subr.mxu0 0.0
    %1512 = vmatpush1.msra.mxu0 %v108
    %1513 = vmatprep.subr.mxu0 0.0
    %1514 = vmatpush1.msra.mxu0 %v109
    %1515 = vmatprep.subr.mxu0 0.0
    %1516 = vmatpush1.msra.mxu0 %v110
    %1517 = vmatprep.subr.mxu0 0.0
    %1518 = vmatpush1.msra.mxu0 %v111
    %1519 = vmatprep.subr.mxu0 0.0
    %1520 = vmatpush1.msra.mxu0 0.0
    %1521 = vmatprep.subr.mxu0 0.0
    %1522 = vmatpush1.msra.mxu0 0.0
    %1523 = vmatprep.subr.mxu0 0.0
    %1524 = vmatpush1.msra.mxu0 0.0
    %1525 = vmatprep.subr.mxu0 0.0
    %1526 = vmatpush1.msra.mxu0 0.0
    %1527 = vmatprep.subr.mxu0 0.0
    %1528 = vmatpush1.msra.mxu0 0.0
    %1529 = vmatprep.subr.mxu0 0.0
    %1530 = vmatpush1.msra.mxu0 0.0
    %1531 = vmatprep.subr.mxu0 0.0
    %1532 = vmatpush1.msra.mxu0 0.0
    %1533 = vmatprep.subr.mxu0 0.0
    %1534 = vmatpush1.msra.mxu0 0.0
    %1535 = vmatprep.subr.mxu0 0.0
    %1536 = vmatpush1.msra.mxu0 0.0
    %1537 = vmatprep.subr.mxu0 0.0
    %1538 = vmatpush1.msra.mxu0 0.0
    %1539 = vmatprep.subr.mxu0 0.0
    %1540 = vmatpush1.msra.mxu0 0.0
    %1541 = vmatprep.subr.mxu0 0.0
    %1542 = vmatpush1.msra.mxu0 0.0
    %1543 = vmatprep.subr.mxu0 0.0
    %1544 = vmatpush1.msra.mxu0 0.0
    %1545 = vmatprep.subr.mxu0 0.0
    %1546 = vmatpush1.msra.mxu0 0.0
    %1547 = vmatprep.subr.mxu0 0.0
    %1548 = vmatpush1.msra.mxu0 0.0
    %1549 = vmatprep.subr.mxu0 0.0
    %1550 = vmatpush1.msra.mxu0 0.0
    %1551 = vmatprep.subr.mxu0 0.0
    %1552 = vmatpush1.msra.mxu0 0.0
    %1553 = vmatprep.subr.mxu0 0.0
    %1554 = vmatpush1.msra.mxu0 0.0
    %1555 = vmatprep.subr.mxu0 0.0
    %1556 = vmatpush1.msra.mxu0 0.0
    %1557 = vmatprep.subr.mxu0 0.0
    %1558 = vmatpush1.msra.mxu0 0.0
    %1559 = vmatprep.subr.mxu0 0.0
    %1560 = vmatpush1.msra.mxu0 0.0
    %1561 = vmatprep.subr.mxu0 0.0
    %1562 = vmatpush1.msra.mxu0 0.0
    %1563 = vmatprep.subr.mxu0 0.0
    %1564 = vmatpush1.msra.mxu0 0.0
    %1565 = vmatprep.subr.mxu0 0.0
    %1566 = vmatpush1.msra.mxu0 0.0
    %1567 = vmatprep.subr.mxu0 0.0
    %1568 = vmatpush1.msra.mxu0 0.0
    %1569 = vmatprep.subr.mxu0 0.0
    %1570 = vmatpush1.msra.mxu0 0.0
    %1571 = vmatprep.subr.mxu0 0.0
    %1572 = vmatpush1.msra.mxu0 0.0
    %1573 = vmatprep.subr.mxu0 0.0
    %1574 = vmatpush1.msra.mxu0 0.0
    %1575 = vmatprep.mubr.f32.mxu0 0.0
    %1576 = vmatmul.mubr.f32.gmra.mrb[0].mxu0 %v1509
    %v1577 = vpop.f32.mrb[0].mxu0
    %v1578 = vadd.f32 %v1502, %v1577
    %v1579 = vpop.f32.mrb[0].mxu0
    %1580 = vdwg.mxu0
    %v1581 = vadd.f32 %v1578, %v492
    %v1582 = vxor.u32 %v1581, 2147483648
    %v1583 = vmul.f32 %v1582, 1.442695
    %v1584 = vpow.pop %v1583
    %v1585 = vadd.f32 %v1584, 1.0
    %v1586 = vrcp.pop %v1585
    %v1587 = vmul.f32 1.0, %v1586
    %v1588 = vtanh.pop %v1581
    %1590 = vrot.lane.b32.xlu0 %v1325, 32
    %v1591 = vpop.permute.xlu0 %1590
    %v1593 = vmul.f32 %v1587, %v1591
    %1595 = vrot.lane.b32.xlu0 %v1588, 64
    %v1596 = vpop.permute.xlu0 %1595
    %v1598 = vmul.f32 %v1587, %v1596
    %1600 = vrot.lane.b32.xlu0 %v1598, 32
    %v1601 = vpop.permute.xlu0 %1600
    %v1603 = vadd.f32 %v1593, %v1601
    %v1604 = vtanh.pop %v1603
    %1606 = vrot.lane.b32.xlu0 %v1604, 64
    %v1607 = vpop.permute.xlu0 %1606
    %v1609 = vmul.f32 %v1587, %v1607
    %s1610 = sadd.s32 %s1274, 1
    %p1611 = scmp.lt.s32.totalorder %s1610, 16
    %s1612 = scalar_select %p1611, %s1610, 16
    %1613 = vrot.lane.b32.xlu0 %v1431, 32
    %v1614 = vpop.permute.xlu0 %1613
    %s1616 = smul.u32 %s1612, 4
    %s1617 = scalar_lea.vmem [#allocation2], %s1616
    %vm1618 = vcmask 260102
    %1619 = vst.msk [vmem:[%s1617 - $0x6] sm:$0x40] %vm1618, %v1614
    %1621 = vrot.lane.b32.xlu0 %v1425, 96
    %v1622 = vpop.permute.xlu0 %1621
    %s1624 = scalar_lea.vmem [#allocation3], %s1616
    %1625 = vst.msk [vmem:[%s1624 - $0x6] sm:$0x40] %vm1618, %v1622
    %1627 = vrot.lane.b32.xlu0 %v1609, 32
    %v1628 = vpop.permute.xlu0 %1627
    %1630 = vst.msk [vmem:[%s1617 + $0x1] sm:$0x1] %vm525, %v1628
    %1632 = vrot.lane.b32.xlu0 %v1603, 96
    %v1633 = vpop.permute.xlu0 %1632
    %1635 = vst.msk [vmem:[%s1624 + $0x1] sm:$0x1] %vm525, %v1633
    %s1636 = sld [smem:[#allocation5 + $0x180]]
    %s1637 = sadd.s32 %s1274, %s1636
    %p1638 = scmp.gt.s32.totalorder %s1637, 0
    %s1639 = scalar_select %p1638, %s1637, 0
    %p1640 = scmp.lt.s32.totalorder %s1639, 16
    %s1641 = scalar_select %p1640, %s1639, 16
    %s1642 = smul.u32 %s1641, 4
    %s1643 = scalar_lea.vmem [#allocation2], %s1642
    %v1644 = vld [vmem:[%s1643 + $0x1] sm:$0x1]
    %1645 = vst.msk [vmem:[#allocation4 + $0x3] sm:$0x1] %vm525, %v1644
    %s1646 = sadd.s32 %s1295, 1
    %p1647 = scmp.lt.s32.totalorder %s1646, 16
    %s1648 = scalar_select %p1647, %s1646, 16
    %s1649 = smul.u32 %s1648, 4
    %s1650 = scalar_lea.vmem [#allocation2], %s1649
    %vm1651 = vcmask 261127
    %1652 = vst.msk [vmem:[%s1650 - $0x5] sm:$0x80] %vm1651, %v1614
    %s1653 = scalar_lea.vmem [#allocation3], %s1649
    %1654 = vst.msk [vmem:[%s1653 - $0x5] sm:$0x80] %vm1651, %v1622
    %1655 = vst.msk [vmem:[%s1650 + $0x2] sm:$0x2] %vm552, %v1628
    %1656 = vst.msk [vmem:[%s1653 + $0x2] sm:$0x2] %vm552, %v1633
    %s1657 = sld [smem:[#allocation5 + $0x181]]
    %s1658 = sadd.s32 %s1295, %s1657
    %p1659 = scmp.gt.s32.totalorder %s1658, 0
    %s1660 = scalar_select %p1659, %s1658, 0
    %p1661 = scmp.lt.s32.totalorder %s1660, 16
    %s1662 = scalar_select %p1661, %s1660, 16
    %s1663 = smul.u32 %s1662, 4
    %s1664 = scalar_lea.vmem [#allocation2], %s1663
    %v1665 = vld [vmem:[%s1664 + $0x3] sm:$0x1]
    %1666 = vst.msk [vmem:[#allocation4 + $0xb] sm:$0x1] %vm525, %v1665
    %v1667 = vld [vmem:[%s1643] sm:$0x1]
    %v1668 = vld [vmem:[%s1664 + $0x2] sm:$0x1]
    %v1670 = vrot.slane %v1668, 7
    %v1672 = vsel %vm217, %v1667, %v1670
    %s1673 = scalar_lea.vmem [#allocation3], %s1642
    %v1674 = vld [vmem:[%s1673] sm:$0x1]
    %s1675 = scalar_lea.vmem [#allocation3], %s1663
    %v1676 = vld [vmem:[%s1675 + $0x2] sm:$0x1]
    %v1678 = vrot.slane %v1676, 7
    %v1680 = vsel %vm217, %v1674, %v1678
    %v1681 = vld [vmem:[%s1643 + $0x1] sm:$0x1]
    %v1682 = vld [vmem:[%s1664 + $0x3] sm:$0x1]
    %v1684 = vrot.slane %v1682, 7
    %v1686 = vsel %vm217, %v1681, %v1684
    %v1687 = vld [vmem:[%s1673 + $0x1] sm:$0x1]
    %v1688 = vld [vmem:[%s1675 + $0x3] sm:$0x1]
    %v1690 = vrot.slane %v1688, 7
    %v1692 = vsel %vm217, %v1687, %v1690
    %v1694 = vsel %vm237, %v1672, 0
    %1696 = vmatprep.subr.mxu0 0.0
    %1697 = vmatpush1.msra.mxu0 %v112
    %1698 = vmatprep.subr.mxu0 0.0
    %1699 = vmatpush1.msra.mxu0 %v113
    %1700 = vmatprep.subr.mxu0 0.0
    %1701 = vmatpush1.msra.mxu0 %v114
    %1702 = vmatprep.subr.mxu0 0.0
    %1703 = vmatpush1.msra.mxu0 %v115
    %1704 = vmatprep.subr.mxu0 0.0
    %1705 = vmatpush1.msra.mxu0 0.0
    %1706 = vmatprep.subr.mxu0 0.0
    %1707 = vmatpush1.msra.mxu0 0.0
    %1708 = vmatprep.subr.mxu0 0.0
    %1709 = vmatpush1.msra.mxu0 0.0
    %1710 = vmatprep.subr.mxu0 0.0
    %1711 = vmatpush1.msra.mxu0 0.0
    %1712 = vmatprep.subr.mxu0 0.0
    %1713 = vmatpush1.msra.mxu0 0.0
    %1714 = vmatprep.subr.mxu0 0.0
    %1715 = vmatpush1.msra.mxu0 0.0
    %1716 = vmatprep.subr.mxu0 0.0
    %1717 = vmatpush1.msra.mxu0 0.0
    %1718 = vmatprep.subr.mxu0 0.0
    %1719 = vmatpush1.msra.mxu0 0.0
    %1720 = vmatprep.subr.mxu0 0.0
    %1721 = vmatpush1.msra.mxu0 0.0
    %1722 = vmatprep.subr.mxu0 0.0
    %1723 = vmatpush1.msra.mxu0 0.0
    %1724 = vmatprep.subr.mxu0 0.0
    %1725 = vmatpush1.msra.mxu0 0.0
    %1726 = vmatprep.subr.mxu0 0.0
    %1727 = vmatpush1.msra.mxu0 0.0
    %1728 = vmatprep.subr.mxu0 0.0
    %1729 = vmatpush1.msra.mxu0 0.0
    %1730 = vmatprep.subr.mxu0 0.0
    %1731 = vmatpush1.msra.mxu0 0.0
    %1732 = vmatprep.subr.mxu0 0.0
    %1733 = vmatpush1.msra.mxu0 0.0
    %1734 = vmatprep.subr.mxu0 0.0
    %1735 = vmatpush1.msra.mxu0 0.0
    %1736 = vmatprep.subr.mxu0 0.0
    %1737 = vmatpush1.msra.mxu0 0.0
    %1738 = vmatprep.subr.mxu0 0.0
    %1739 = vmatpush1.msra.mxu0 0.0
    %1740 = vmatprep.subr.mxu0 0.0
    %1741 = vmatpush1.msra.mxu0 0.0
    %1742 = vmatprep.subr.mxu0 0.0
    %1743 = vmatpush1.msra.mxu0 0.0
    %1744 = vmatprep.subr.mxu0 0.0
    %1745 = vmatpush1.msra.mxu0 0.0
    %1746 = vmatprep.subr.mxu0 0.0
    %1747 = vmatpush1.msra.mxu0 0.0
    %1748 = vmatprep.subr.mxu0 0.0
    %1749 = vmatpush1.msra.mxu0 0.0
    %1750 = vmatprep.subr.mxu0 0.0
    %1751 = vmatpush1.msra.mxu0 0.0
    %1752 = vmatprep.subr.mxu0 0.0
    %1753 = vmatpush1.msra.mxu0 0.0
    %1754 = vmatprep.subr.mxu0 0.0
    %1755 = vmatpush1.msra.mxu0 0.0
    %1756 = vmatprep.subr.mxu0 0.0
    %1757 = vmatpush1.msra.mxu0 0.0
    %1758 = vmatprep.subr.mxu0 0.0
    %1759 = vmatpush1.msra.mxu0 0.0
    %1760 = vmatprep.mubr.f32.mxu0 0.0
    %1761 = vmatmul.mubr.f32.gmra.mrb[0].mxu0 %v1694
    %v1762 = vpop.f32.mrb[0].mxu0
    %v1763 = vadd.f32 0.0, %v1762
    %v1764 = vpop.f32.mrb[0].mxu0
    %1765 = vdwg.mxu0
    %v1766 = vadd.f32 %v209, %v1763
    %v1767 = vxor.u32 %v1766, 2147483648
    %v1768 = vmul.f32 %v1767, 1.442695
    %v1769 = vpow.pop %v1768
    %v1770 = vadd.f32 %v1769, 1.0
    %v1771 = vrcp.pop %v1770
    %v1772 = vmul.f32 1.0, %v1771
    %v1773 = vtanh.pop %v1766
    %1775 = vrot.lane.b32.xlu0 %v1680, 32
    %v1776 = vpop.permute.xlu0 %1775
    %v1778 = vmul.f32 %v1772, %v1776
    %1780 = vrot.lane.b32.xlu0 %v1773, 64
    %v1781 = vpop.permute.xlu0 %1780
    %v1783 = vmul.f32 %v1772, %v1781
    %1785 = vrot.lane.b32.xlu0 %v1783, 32
    %v1786 = vpop.permute.xlu0 %1785
    %v1788 = vadd.f32 %v1778, %v1786
    %v1789 = vtanh.pop %v1788
    %1791 = vrot.lane.b32.xlu0 %v1789, 64
    %v1792 = vpop.permute.xlu0 %1791
    %v1794 = vmul.f32 %v1772, %v1792
    %v1796 = vsel %vm237, %v1686, 0
    %1798 = vmatprep.subr.mxu0 0.0
    %1799 = vmatpush1.msra.mxu0 %v116
    %1800 = vmatprep.subr.mxu0 0.0
    %1801 = vmatpush1.msra.mxu0 %v117
    %1802 = vmatprep.subr.mxu0 0.0
    %1803 = vmatpush1.msra.mxu0 %v118
    %1804 = vmatprep.subr.mxu0 0.0
    %1805 = vmatpush1.msra.mxu0 %v119
    %1806 = vmatprep.subr.mxu0 0.0
    %1807 = vmatpush1.msra.mxu0 0.0
    %1808 = vmatprep.subr.mxu0 0.0
    %1809 = vmatpush1.msra.mxu0 0.0
    %1810 = vmatprep.subr.mxu0 0.0
    %1811 = vmatpush1.msra.mxu0 0.0
    %1812 = vmatprep.subr.mxu0 0.0
    %1813 = vmatpush1.msra.mxu0 0.0
    %1814 = vmatprep.subr.mxu0 0.0
    %1815 = vmatpush1.msra.mxu0 0.0
    %1816 = vmatprep.subr.mxu0 0.0
    %1817 = vmatpush1.msra.mxu0 0.0
    %1818 = vmatprep.subr.mxu0 0.0
    %1819 = vmatpush1.msra.mxu0 0.0
    %1820 = vmatprep.subr.mxu0 0.0
    %1821 = vmatpush1.msra.mxu0 0.0
    %1822 = vmatprep.subr.mxu0 0.0
    %1823 = vmatpush1.msra.mxu0 0.0
    %1824 = vmatprep.subr.mxu0 0.0
    %1825 = vmatpush1.msra.mxu0 0.0
    %1826 = vmatprep.subr.mxu0 0.0
    %1827 = vmatpush1.msra.mxu0 0.0
    %1828 = vmatprep.subr.mxu0 0.0
    %1829 = vmatpush1.msra.mxu0 0.0
    %1830 = vmatprep.subr.mxu0 0.0
    %1831 = vmatpush1.msra.mxu0 0.0
    %1832 = vmatprep.subr.mxu0 0.0
    %1833 = vmatpush1.msra.mxu0 0.0
    %1834 = vmatprep.subr.mxu0 0.0
    %1835 = vmatpush1.msra.mxu0 0.0
    %1836 = vmatprep.subr.mxu0 0.0
    %1837 = vmatpush1.msra.mxu0 0.0
    %1838 = vmatprep.subr.mxu0 0.0
    %1839 = vmatpush1.msra.mxu0 0.0
    %1840 = vmatprep.subr.mxu0 0.0
    %1841 = vmatpush1.msra.mxu0 0.0
    %1842 = vmatprep.subr.mxu0 0.0
    %1843 = vmatpush1.msra.mxu0 0.0
    %1844 = vmatprep.subr.mxu0 0.0
    %1845 = vmatpush1.msra.mxu0 0.0
    %1846 = vmatprep.subr.mxu0 0.0
    %1847 = vmatpush1.msra.mxu0 0.0
    %1848 = vmatprep.subr.mxu0 0.0
    %1849 = vmatpush1.msra.mxu0 0.0
    %1850 = vmatprep.subr.mxu0 0.0
    %1851 = vmatpush1.msra.mxu0 0.0
    %1852 = vmatprep.subr.mxu0 0.0
    %1853 = vmatpush1.msra.mxu0 0.0
    %1854 = vmatprep.subr.mxu0 0.0
    %1855 = vmatpush1.msra.mxu0 0.0
    %1856 = vmatprep.subr.mxu0 0.0
    %1857 = vmatpush1.msra.mxu0 0.0
    %1858 = vmatprep.subr.mxu0 0.0
    %1859 = vmatpush1.msra.mxu0 0.0
    %1860 = vmatprep.subr.mxu0 0.0
    %1861 = vmatpush1.msra.mxu0 0.0
    %1862 = vmatprep.mubr.f32.mxu0 0.0
    %1863 = vmatmul.mubr.f32.gmra.mrb[0].mxu0 %v1796
    %v1864 = vpop.f32.mrb[0].mxu0
    %v1865 = vadd.f32 0.0, %v1864
    %v1866 = vpop.f32.mrb[0].mxu0
    %1867 = vdwg.mxu0
    %1869 = vrot.lane.b32.xlu0 %v1794, 32
    %v1870 = vpop.permute.xlu0 %1869
    %v1871 = vsel %vm237, %v1870, 0
    %1873 = vmatprep.subr.mxu0 0.0
    %1874 = vmatpush1.msra.mxu0 %v108
    %1875 = vmatprep.subr.mxu0 0.0
    %1876 = vmatpush1.msra.mxu0 %v109
    %1877 = vmatprep.subr.mxu0 0.0
    %1878 = vmatpush1.msra.mxu0 %v110
    %1879 = vmatprep.subr.mxu0 0.0
    %1880 = vmatpush1.msra.mxu0 %v111
    %1881 = vmatprep.subr.mxu0 0.0
    %1882 = vmatpush1.msra.mxu0 0.0
    %1883 = vmatprep.subr.mxu0 0.0
    %1884 = vmatpush1.msra.mxu0 0.0
    %1885 = vmatprep.subr.mxu0 0.0
    %1886 = vmatpush1.msra.mxu0 0.0
    %1887 = vmatprep.subr.mxu0 0.0
    %1888 = vmatpush1.msra.mxu0 0.0
    %1889 = vmatprep.subr.mxu0 0.0
    %1890 = vmatpush1.msra.mxu0 0.0
    %1891 = vmatprep.subr.mxu0 0.0
    %1892 = vmatpush1.msra.mxu0 0.0
    %1893 = vmatprep.subr.mxu0 0.0
    %1894 = vmatpush1.msra.mxu0 0.0
    %1895 = vmatprep.subr.mxu0 0.0
    %1896 = vmatpush1.msra.mxu0 0.0
    %1897 = vmatprep.subr.mxu0 0.0
    %1898 = vmatpush1.msra.mxu0 0.0
    %1899 = vmatprep.subr.mxu0 0.0
    %1900 = vmatpush1.msra.mxu0 0.0
    %1901 = vmatprep.subr.mxu0 0.0
    %1902 = vmatpush1.msra.mxu0 0.0
    %1903 = vmatprep.subr.mxu0 0.0
    %1904 = vmatpush1.msra.mxu0 0.0
    %1905 = vmatprep.subr.mxu0 0.0
    %1906 = vmatpush1.msra.mxu0 0.0
    %1907 = vmatprep.subr.mxu0 0.0
    %1908 = vmatpush1.msra.mxu0 0.0
    %1909 = vmatprep.subr.mxu0 0.0
    %1910 = vmatpush1.msra.mxu0 0.0
    %1911 = vmatprep.subr.mxu0 0.0
    %1912 = vmatpush1.msra.mxu0 0.0
    %1913 = vmatprep.subr.mxu0 0.0
    %1914 = vmatpush1.msra.mxu0 0.0
    %1915 = vmatprep.subr.mxu0 0.0
    %1916 = vmatpush1.msra.mxu0 0.0
    %1917 = vmatprep.subr.mxu0 0.0
    %1918 = vmatpush1.msra.mxu0 0.0
    %1919 = vmatprep.subr.mxu0 0.0
    %1920 = vmatpush1.msra.mxu0 0.0
    %1921 = vmatprep.subr.mxu0 0.0
    %1922 = vmatpush1.msra.mxu0 0.0
    %1923 = vmatprep.subr.mxu0 0.0
    %1924 = vmatpush1.msra.mxu0 0.0
    %1925 = vmatprep.subr.mxu0 0.0
    %1926 = vmatpush1.msra.mxu0 0.0
    %1927 = vmatprep.subr.mxu0 0.0
    %1928 = vmatpush1.msra.mxu0 0.0
    %1929 = vmatprep.subr.mxu0 0.0
    %1930 = vmatpush1.msra.mxu0 0.0
    %1931 = vmatprep.subr.mxu0 0.0
    %1932 = vmatpush1.msra.mxu0 0.0
    %1933 = vmatprep.subr.mxu0 0.0
    %1934 = vmatpush1.msra.mxu0 0.0
    %1935 = vmatprep.subr.mxu0 0.0
    %1936 = vmatpush1.msra.mxu0 0.0
    %1937 = vmatprep.mubr.f32.mxu0 0.0
    %1938 = vmatmul.mubr.f32.gmra.mrb[0].mxu0 %v1871
    %v1939 = vpop.f32.mrb[0].mxu0
    %v1940 = vadd.f32 %v1865, %v1939
    %v1941 = vpop.f32.mrb[0].mxu0
    %1942 = vdwg.mxu0
    %v1943 = vadd.f32 %v1940, %v492
    %v1944 = vxor.u32 %v1943, 2147483648
    %v1945 = vmul.f32 %v1944, 1.442695
    %v1946 = vpow.pop %v1945
    %v1947 = vadd.f32 %v1946, 1.0
    %v1948 = vrcp.pop %v1947
    %v1949 = vmul.f32 1.0, %v1948
    %v1950 = vtanh.pop %v1943
    %1952 = vrot.lane.b32.xlu0 %v1692, 32
    %v1953 = vpop.permute.xlu0 %1952
    %v1955 = vmul.f32 %v1949, %v1953
    %1957 = vrot.lane.b32.xlu0 %v1950, 64
    %v1958 = vpop.permute.xlu0 %1957
    %v1960 = vmul.f32 %v1949, %v1958
    %1962 = vrot.lane.b32.xlu0 %v1960, 32
    %v1963 = vpop.permute.xlu0 %1962
    %v1965 = vadd.f32 %v1955, %v1963
    %v1966 = vtanh.pop %v1965
    %1968 = vrot.lane.b32.xlu0 %v1966, 64
    %v1969 = vpop.permute.xlu0 %1968
    %v1971 = vmul.f32 %v1949, %v1969
    %s1972 = sadd.s32 %s1641, 1
    %p1973 = scmp.lt.s32.totalorder %s1972, 16
    %s1974 = scalar_select %p1973, %s1972, 16
    %s1976 = smul.u32 %s1974, 4
    %s1977 = scalar_lea.vmem [#allocation2], %s1976
    %1978 = vst.msk [vmem:[%s1977] sm:$0x1] %vm525, %v1870
    %1980 = vrot.lane.b32.xlu0 %v1788, 96
    %v1981 = vpop.permute.xlu0 %1980
    %s1983 = scalar_lea.vmem [#allocation3], %s1976
    %1984 = vst.msk [vmem:[%s1983] sm:$0x1] %vm525, %v1981
    %1986 = vrot.lane.b32.xlu0 %v1971, 32
    %v1987 = vpop.permute.xlu0 %1986
    %1989 = vst.msk [vmem:[%s1977 + $0x1] sm:$0x1] %vm525, %v1987
    %1991 = vrot.lane.b32.xlu0 %v1965, 96
    %v1992 = vpop.permute.xlu0 %1991
    %1994 = vst.msk [vmem:[%s1983 + $0x1] sm:$0x1] %vm525, %v1992
    %s1995 = sld [smem:[#allocation5 + $0x200]]
    %s1996 = sadd.s32 %s1641, %s1995
    %p1997 = scmp.gt.s32.totalorder %s1996, 0
    %s1998 = scalar_select %p1997, %s1996, 0
    %p1999 = scmp.lt.s32.totalorder %s1998, 16
    %s2000 = scalar_select %p1999, %s1998, 16
    %s2001 = smul.u32 %s2000, 4
    %s2002 = scalar_lea.vmem [#allocation2], %s2001
    %v2003 = vld [vmem:[%s2002 + $0x1] sm:$0x1]
    %2004 = vst.msk [vmem:[#allocation4 + $0x4] sm:$0x1] %vm525, %v2003
    %s2005 = sadd.s32 %s1662, 1
    %p2006 = scmp.lt.s32.totalorder %s2005, 16
    %s2007 = scalar_select %p2006, %s2005, 16
    %s2008 = smul.u32 %s2007, 4
    %s2009 = scalar_lea.vmem [#allocation2], %s2008
    %2010 = vst.msk [vmem:[%s2009 + $0x1] sm:$0x2] %vm552, %v1870
    %s2011 = scalar_lea.vmem [#allocation3], %s2008
    %2012 = vst.msk [vmem:[%s2011 + $0x1] sm:$0x2] %vm552, %v1981
    %2013 = vst.msk [vmem:[%s2009 + $0x2] sm:$0x2] %vm552, %v1987
    %2014 = vst.msk [vmem:[%s2011 + $0x2] sm:$0x2] %vm552, %v1992
    %s2015 = sld [smem:[#allocation5 + $0x201]]
    %s2016 = sadd.s32 %s1662, %s2015
    %p2017 = scmp.gt.s32.totalorder %s2016, 0
    %s2018 = scalar_select %p2017, %s2016, 0
    %p2019 = scmp.lt.s32.totalorder %s2018, 16
    %s2020 = scalar_select %p2019, %s2018, 16
    %s2021 = smul.u32 %s2020, 4
    %s2022 = scalar_lea.vmem [#allocation2], %s2021
    %v2023 = vld [vmem:[%s2022 + $0x3] sm:$0x1]
    %2024 = vst.msk [vmem:[#allocation4 + $0xc] sm:$0x1] %vm525, %v2023
    %v2025 = vld [vmem:[%s2002] sm:$0x1]
    %v2026 = vld [vmem:[%s2022 + $0x2] sm:$0x1]
    %v2028 = vrot.slane %v2026, 7
    %v2030 = vsel %vm217, %v2025, %v2028
    %s2031 = scalar_lea.vmem [#allocation3], %s2001
    %v2032 = vld [vmem:[%s2031] sm:$0x1]
    %s2033 = scalar_lea.vmem [#allocation3], %s2021
    %v2034 = vld [vmem:[%s2033 + $0x2] sm:$0x1]
    %v2036 = vrot.slane %v2034, 7
    %v2038 = vsel %vm217, %v2032, %v2036
    %v2039 = vld [vmem:[%s2002 + $0x1] sm:$0x1]
    %v2040 = vld [vmem:[%s2022 + $0x3] sm:$0x1]
    %v2042 = vrot.slane %v2040, 7
    %v2044 = vsel %vm217, %v2039, %v2042
    %v2045 = vld [vmem:[%s2031 + $0x1] sm:$0x1]
    %v2046 = vld [vmem:[%s2033 + $0x3] sm:$0x1]
    %v2048 = vrot.slane %v2046, 7
    %v2050 = vsel %vm217, %v2045, %v2048
    %v2052 = vsel %vm237, %v2030, 0
    %2054 = vmatprep.subr.mxu0 0.0
    %2055 = vmatpush1.msra.mxu0 %v112
    %2056 = vmatprep.subr.mxu0 0.0
    %2057 = vmatpush1.msra.mxu0 %v113
    %2058 = vmatprep.subr.mxu0 0.0
    %2059 = vmatpush1.msra.mxu0 %v114
    %2060 = vmatprep.subr.mxu0 0.0
    %2061 = vmatpush1.msra.mxu0 %v115
    %2062 = vmatprep.subr.mxu0 0.0
    %2063 = vmatpush1.msra.mxu0 0.0
    %2064 = vmatprep.subr.mxu0 0.0
    %2065 = vmatpush1.msra.mxu0 0.0
    %2066 = vmatprep.subr.mxu0 0.0
    %2067 = vmatpush1.msra.mxu0 0.0
    %2068 = vmatprep.subr.mxu0 0.0
    %2069 = vmatpush1.msra.mxu0 0.0
    %2070 = vmatprep.subr.mxu0 0.0
    %2071 = vmatpush1.msra.mxu0 0.0
    %2072 = vmatprep.subr.mxu0 0.0
    %2073 = vmatpush1.msra.mxu0 0.0
    %2074 = vmatprep.subr.mxu0 0.0
    %2075 = vmatpush1.msra.mxu0 0.0
    %2076 = vmatprep.subr.mxu0 0.0
    %2077 = vmatpush1.msra.mxu0 0.0
    %2078 = vmatprep.subr.mxu0 0.0
    %2079 = vmatpush1.msra.mxu0 0.0
    %2080 = vmatprep.subr.mxu0 0.0
    %2081 = vmatpush1.msra.mxu0 0.0
    %2082 = vmatprep.subr.mxu0 0.0
    %2083 = vmatpush1.msra.mxu0 0.0
    %2084 = vmatprep.subr.mxu0 0.0
    %2085 = vmatpush1.msra.mxu0 0.0
    %2086 = vmatprep.subr.mxu0 0.0
    %2087 = vmatpush1.msra.mxu0 0.0
    %2088 = vmatprep.subr.mxu0 0.0
    %2089 = vmatpush1.msra.mxu0 0.0
    %2090 = vmatprep.subr.mxu0 0.0
    %2091 = vmatpush1.msra.mxu0 0.0
    %2092 = vmatprep.subr.mxu0 0.0
    %2093 = vmatpush1.msra.mxu0 0.0
    %2094 = vmatprep.subr.mxu0 0.0
    %2095 = vmatpush1.msra.mxu0 0.0
    %2096 = vmatprep.subr.mxu0 0.0
    %2097 = vmatpush1.msra.mxu0 0.0
    %2098 = vmatprep.subr.mxu0 0.0
    %2099 = vmatpush1.msra.mxu0 0.0
    %2100 = vmatprep.subr.mxu0 0.0
    %2101 = vmatpush1.msra.mxu0 0.0
    %2102 = vmatprep.subr.mxu0 0.0
    %2103 = vmatpush1.msra.mxu0 0.0
    %2104 = vmatprep.subr.mxu0 0.0
    %2105 = vmatpush1.msra.mxu0 0.0
    %2106 = vmatprep.subr.mxu0 0.0
    %2107 = vmatpush1.msra.mxu0 0.0
    %2108 = vmatprep.subr.mxu0 0.0
    %2109 = vmatpush1.msra.mxu0 0.0
    %2110 = vmatprep.subr.mxu0 0.0
    %2111 = vmatpush1.msra.mxu0 0.0
    %2112 = vmatprep.subr.mxu0 0.0
    %2113 = vmatpush1.msra.mxu0 0.0
    %2114 = vmatprep.subr.mxu0 0.0
    %2115 = vmatpush1.msra.mxu0 0.0
    %2116 = vmatprep.subr.mxu0 0.0
    %2117 = vmatpush1.msra.mxu0 0.0
    %2118 = vmatprep.mubr.f32.mxu0 0.0
    %2119 = vmatmul.mubr.f32.gmra.mrb[0].mxu0 %v2052
    %v2120 = vpop.f32.mrb[0].mxu0
    %v2121 = vadd.f32 0.0, %v2120
    %v2122 = vpop.f32.mrb[0].mxu0
    %2123 = vdwg.mxu0
    %v2125 = vrot.slane %v2121, 6
    %v2127 = vadd.f32 %v209, %v2125
    %v2128 = vxor.u32 %v2127, 2147483648
    %v2129 = vmul.f32 %v2128, 1.442695
    %v2130 = vpow.pop %v2129
    %v2131 = vadd.f32 %v2130, 1.0
    %v2132 = vrcp.pop %v2131
    %v2133 = vmul.f32 1.0, %v2132
    %v2134 = vtanh.pop %v2127
    %v2136 = vrot.slane %v2038, 6
    %2137 = vrot.lane.b32.xlu0 %v2136, 32
    %v2138 = vpop.permute.xlu0 %2137
    %v2140 = vmul.f32 %v2133, %v2138
    %2142 = vrot.lane.b32.xlu0 %v2134, 64
    %v2143 = vpop.permute.xlu0 %2142
    %v2145 = vmul.f32 %v2133, %v2143
    %2147 = vrot.lane.b32.xlu0 %v2145, 32
    %v2148 = vpop.permute.xlu0 %2147
    %v2150 = vadd.f32 %v2140, %v2148
    %v2151 = vtanh.pop %v2150
    %2153 = vrot.lane.b32.xlu0 %v2151, 64
    %v2154 = vpop.permute.xlu0 %2153
    %v2156 = vmul.f32 %v2133, %v2154
    %v2158 = vsel %vm237, %v2044, 0
    %2160 = vmatprep.subr.mxu0 0.0
    %2161 = vmatpush1.msra.mxu0 %v116
    %2162 = vmatprep.subr.mxu0 0.0
    %2163 = vmatpush1.msra.mxu0 %v117
    %2164 = vmatprep.subr.mxu0 0.0
    %2165 = vmatpush1.msra.mxu0 %v118
    %2166 = vmatprep.subr.mxu0 0.0
    %2167 = vmatpush1.msra.mxu0 %v119
    %2168 = vmatprep.subr.mxu0 0.0
    %2169 = vmatpush1.msra.mxu0 0.0
    %2170 = vmatprep.subr.mxu0 0.0
    %2171 = vmatpush1.msra.mxu0 0.0
    %2172 = vmatprep.subr.mxu0 0.0
    %2173 = vmatpush1.msra.mxu0 0.0
    %2174 = vmatprep.subr.mxu0 0.0
    %2175 = vmatpush1.msra.mxu0 0.0
    %2176 = vmatprep.subr.mxu0 0.0
    %2177 = vmatpush1.msra.mxu0 0.0
    %2178 = vmatprep.subr.mxu0 0.0
    %2179 = vmatpush1.msra.mxu0 0.0
    %2180 = vmatprep.subr.mxu0 0.0
    %2181 = vmatpush1.msra.mxu0 0.0
    %2182 = vmatprep.subr.mxu0 0.0
    %2183 = vmatpush1.msra.mxu0 0.0
    %2184 = vmatprep.subr.mxu0 0.0
    %2185 = vmatpush1.msra.mxu0 0.0
    %2186 = vmatprep.subr.mxu0 0.0
    %2187 = vmatpush1.msra.mxu0 0.0
    %2188 = vmatprep.subr.mxu0 0.0
    %2189 = vmatpush1.msra.mxu0 0.0
    %2190 = vmatprep.subr.mxu0 0.0
    %2191 = vmatpush1.msra.mxu0 0.0
    %2192 = vmatprep.subr.mxu0 0.0
    %2193 = vmatpush1.msra.mxu0 0.0
    %2194 = vmatprep.subr.mxu0 0.0
    %2195 = vmatpush1.msra.mxu0 0.0
    %2196 = vmatprep.subr.mxu0 0.0
    %2197 = vmatpush1.msra.mxu0 0.0
    %2198 = vmatprep.subr.mxu0 0.0
    %2199 = vmatpush1.msra.mxu0 0.0
    %2200 = vmatprep.subr.mxu0 0.0
    %2201 = vmatpush1.msra.mxu0 0.0
    %2202 = vmatprep.subr.mxu0 0.0
    %2203 = vmatpush1.msra.mxu0 0.0
    %2204 = vmatprep.subr.mxu0 0.0
    %2205 = vmatpush1.msra.mxu0 0.0
    %2206 = vmatprep.subr.mxu0 0.0
    %2207 = vmatpush1.msra.mxu0 0.0
    %2208 = vmatprep.subr.mxu0 0.0
    %2209 = vmatpush1.msra.mxu0 0.0
    %2210 = vmatprep.subr.mxu0 0.0
    %2211 = vmatpush1.msra.mxu0 0.0
    %2212 = vmatprep.subr.mxu0 0.0
    %2213 = vmatpush1.msra.mxu0 0.0
    %2214 = vmatprep.subr.mxu0 0.0
    %2215 = vmatpush1.msra.mxu0 0.0
    %2216 = vmatprep.subr.mxu0 0.0
    %2217 = vmatpush1.msra.mxu0 0.0
    %2218 = vmatprep.subr.mxu0 0.0
    %2219 = vmatpush1.msra.mxu0 0.0
    %2220 = vmatprep.subr.mxu0 0.0
    %2221 = vmatpush1.msra.mxu0 0.0
    %2222 = vmatprep.subr.mxu0 0.0
    %2223 = vmatpush1.msra.mxu0 0.0
    %2224 = vmatprep.mubr.f32.mxu0 0.0
    %2225 = vmatmul.mubr.f32.gmra.mrb[0].mxu0 %v2158
    %v2226 = vpop.f32.mrb[0].mxu0
    %v2227 = vadd.f32 0.0, %v2226
    %v2228 = vpop.f32.mrb[0].mxu0
    %2229 = vdwg.mxu0
    %v2231 = vrot.slane %v2156, 2
    %2232 = vrot.lane.b32.xlu0 %v2231, 32
    %v2233 = vpop.permute.xlu0 %2232
    %v2234 = vsel %vm237, %v2233, 0
    %2236 = vmatprep.subr.mxu0 0.0
    %2237 = vmatpush1.msra.mxu0 %v108
    %2238 = vmatprep.subr.mxu0 0.0
    %2239 = vmatpush1.msra.mxu0 %v109
    %2240 = vmatprep.subr.mxu0 0.0
    %2241 = vmatpush1.msra.mxu0 %v110
    %2242 = vmatprep.subr.mxu0 0.0
    %2243 = vmatpush1.msra.mxu0 %v111
    %2244 = vmatprep.subr.mxu0 0.0
    %2245 = vmatpush1.msra.mxu0 0.0
    %2246 = vmatprep.subr.mxu0 0.0
    %2247 = vmatpush1.msra.mxu0 0.0
    %2248 = vmatprep.subr.mxu0 0.0
    %2249 = vmatpush1.msra.mxu0 0.0
    %2250 = vmatprep.subr.mxu0 0.0
    %2251 = vmatpush1.msra.mxu0 0.0
    %2252 = vmatprep.subr.mxu0 0.0
    %2253 = vmatpush1.msra.mxu0 0.0
    %2254 = vmatprep.subr.mxu0 0.0
    %2255 = vmatpush1.msra.mxu0 0.0
    %2256 = vmatprep.subr.mxu0 0.0
    %2257 = vmatpush1.msra.mxu0 0.0
    %2258 = vmatprep.subr.mxu0 0.0
    %2259 = vmatpush1.msra.mxu0 0.0
    %2260 = vmatprep.subr.mxu0 0.0
    %2261 = vmatpush1.msra.mxu0 0.0
    %2262 = vmatprep.subr.mxu0 0.0
    %2263 = vmatpush1.msra.mxu0 0.0
    %2264 = vmatprep.subr.mxu0 0.0
    %2265 = vmatpush1.msra.mxu0 0.0
    %2266 = vmatprep.subr.mxu0 0.0
    %2267 = vmatpush1.msra.mxu0 0.0
    %2268 = vmatprep.subr.mxu0 0.0
    %2269 = vmatpush1.msra.mxu0 0.0
    %2270 = vmatprep.subr.mxu0 0.0
    %2271 = vmatpush1.msra.mxu0 0.0
    %2272 = vmatprep.subr.mxu0 0.0
    %2273 = vmatpush1.msra.mxu0 0.0
    %2274 = vmatprep.subr.mxu0 0.0
    %2275 = vmatpush1.msra.mxu0 0.0
    %2276 = vmatprep.subr.mxu0 0.0
    %2277 = vmatpush1.msra.mxu0 0.0
    %2278 = vmatprep.subr.mxu0 0.0
    %2279 = vmatpush1.msra.mxu0 0.0
    %2280 = vmatprep.subr.mxu0 0.0
    %2281 = vmatpush1.msra.mxu0 0.0
    %2282 = vmatprep.subr.mxu0 0.0
    %2283 = vmatpush1.msra.mxu0 0.0
    %2284 = vmatprep.subr.mxu0 0.0
    %2285 = vmatpush1.msra.mxu0 0.0
    %2286 = vmatprep.subr.mxu0 0.0
    %2287 = vmatpush1.msra.mxu0 0.0
    %2288 = vmatprep.subr.mxu0 0.0
    %2289 = vmatpush1.msra.mxu0 0.0
    %2290 = vmatprep.subr.mxu0 0.0
    %2291 = vmatpush1.msra.mxu0 0.0
    %2292 = vmatprep.subr.mxu0 0.0
    %2293 = vmatpush1.msra.mxu0 0.0
    %2294 = vmatprep.subr.mxu0 0.0
    %2295 = vmatpush1.msra.mxu0 0.0
    %2296 = vmatprep.subr.mxu0 0.0
    %2297 = vmatpush1.msra.mxu0 0.0
    %2298 = vmatprep.subr.mxu0 0.0
    %2299 = vmatpush1.msra.mxu0 0.0
    %2300 = vmatprep.mubr.f32.mxu0 0.0
    %2301 = vmatmul.mubr.f32.gmra.mrb[0].mxu0 %v2234
    %v2302 = vpop.f32.mrb[0].mxu0
    %v2303 = vadd.f32 %v2227, %v2302
    %v2304 = vpop.f32.mrb[0].mxu0
    %2305 = vdwg.mxu0
    %v2306 = vadd.f32 %v2303, %v492
    %v2307 = vxor.u32 %v2306, 2147483648
    %v2308 = vmul.f32 %v2307, 1.442695
    %v2309 = vpow.pop %v2308
    %v2310 = vadd.f32 %v2309, 1.0
    %v2311 = vrcp.pop %v2310
    %v2312 = vmul.f32 1.0, %v2311
    %v2313 = vtanh.pop %v2306
    %2315 = vrot.lane.b32.xlu0 %v2050, 32
    %v2316 = vpop.permute.xlu0 %2315
    %v2318 = vmul.f32 %v2312, %v2316
    %2320 = vrot.lane.b32.xlu0 %v2313, 64
    %v2321 = vpop.permute.xlu0 %2320
    %v2323 = vmul.f32 %v2312, %v2321
    %2325 = vrot.lane.b32.xlu0 %v2323, 32
    %v2326 = vpop.permute.xlu0 %2325
    %v2328 = vadd.f32 %v2318, %v2326
    %v2329 = vtanh.pop %v2328
    %2331 = vrot.lane.b32.xlu0 %v2329, 64
    %v2332 = vpop.permute.xlu0 %2331
    %v2334 = vmul.f32 %v2312, %v2332
    %s2335 = sadd.s32 %s2000, 1
    %p2336 = scmp.lt.s32.totalorder %s2335, 16
    %s2337 = scalar_select %p2336, %s2335, 16
    %2338 = vrot.lane.b32.xlu0 %v2156, 32
    %v2339 = vpop.permute.xlu0 %2338
    %s2341 = smul.u32 %s2337, 4
    %s2342 = scalar_lea.vmem [#allocation2], %s2341
    %2343 = vst.msk [vmem:[%s2342 - $0x2] sm:$0x4] %vm884, %v2339
    %2345 = vrot.lane.b32.xlu0 %v2150, 96
    %v2346 = vpop.permute.xlu0 %2345
    %s2348 = scalar_lea.vmem [#allocation3], %s2341
    %2349 = vst.msk [vmem:[%s2348 - $0x2] sm:$0x4] %vm884, %v2346
    %2351 = vrot.lane.b32.xlu0 %v2334, 32
    %v2352 = vpop.permute.xlu0 %2351
    %2354 = vst.msk [vmem:[%s2342 + $0x1] sm:$0x1] %vm525, %v2352
    %2356 = vrot.lane.b32.xlu0 %v2328, 96
    %v2357 = vpop.permute.xlu0 %2356
    %2359 = vst.msk [vmem:[%s2348 + $0x1] sm:$0x1] %vm525, %v2357
    %s2360 = sld [smem:[#allocation5 + $0x280]]
    %s2361 = sadd.s32 %s2000, %s2360
    %p2362 = scmp.gt.s32.totalorder %s2361, 0
    %s2363 = scalar_select %p2362, %s2361, 0
    %p2364 = scmp.lt.s32.totalorder %s2363, 16
    %s2365 = scalar_select %p2364, %s2363, 16
    %s2366 = smul.u32 %s2365, 4
    %s2367 = scalar_lea.vmem [#allocation2], %s2366
    %v2368 = vld [vmem:[%s2367 + $0x1] sm:$0x1]
    %2369 = vst.msk [vmem:[#allocation4 + $0x5] sm:$0x1] %vm525, %v2368
    %s2370 = sadd.s32 %s2020, 1
    %p2371 = scmp.lt.s32.totalorder %s2370, 16
    %s2372 = scalar_select %p2371, %s2370, 16
    %s2373 = smul.u32 %s2372, 4
    %s2374 = scalar_lea.vmem [#allocation2], %s2373
    %2375 = vst.msk [vmem:[%s2374 - $0x1] sm:$0x8] %vm917, %v2339
    %s2376 = scalar_lea.vmem [#allocation3], %s2373
    %2377 = vst.msk [vmem:[%s2376 - $0x1] sm:$0x8] %vm917, %v2346
    %2378 = vst.msk [vmem:[%s2374 + $0x2] sm:$0x2] %vm552, %v2352
    %2379 = vst.msk [vmem:[%s2376 + $0x2] sm:$0x2] %vm552, %v2357
    %s2380 = sld [smem:[#allocation5 + $0x281]]
    %s2381 = sadd.s32 %s2020, %s2380
    %p2382 = scmp.gt.s32.totalorder %s2381, 0
    %s2383 = scalar_select %p2382, %s2381, 0
    %p2384 = scmp.lt.s32.totalorder %s2383, 16
    %s2385 = scalar_select %p2384, %s2383, 16
    %s2386 = smul.u32 %s2385, 4
    %s2387 = scalar_lea.vmem [#allocation2], %s2386
    %v2388 = vld [vmem:[%s2387 + $0x3] sm:$0x1]
    %2389 = vst.msk [vmem:[#allocation4 + $0xd] sm:$0x1] %vm525, %v2388
    %v2390 = vld [vmem:[%s2367] sm:$0x1]
    %v2391 = vld [vmem:[%s2387 + $0x2] sm:$0x1]
    %v2393 = vrot.slane %v2391, 7
    %v2395 = vsel %vm217, %v2390, %v2393
    %s2396 = scalar_lea.vmem [#allocation3], %s2366
    %v2397 = vld [vmem:[%s2396] sm:$0x1]
    %s2398 = scalar_lea.vmem [#allocation3], %s2386
    %v2399 = vld [vmem:[%s2398 + $0x2] sm:$0x1]
    %v2401 = vrot.slane %v2399, 7
    %v2403 = vsel %vm217, %v2397, %v2401
    %v2404 = vld [vmem:[%s2367 + $0x1] sm:$0x1]
    %v2405 = vld [vmem:[%s2387 + $0x3] sm:$0x1]
    %v2407 = vrot.slane %v2405, 7
    %v2409 = vsel %vm217, %v2404, %v2407
    %v2410 = vld [vmem:[%s2396 + $0x1] sm:$0x1]
    %v2411 = vld [vmem:[%s2398 + $0x3] sm:$0x1]
    %v2413 = vrot.slane %v2411, 7
    %v2415 = vsel %vm217, %v2410, %v2413
    %v2417 = vsel %vm237, %v2395, 0
    %2419 = vmatprep.subr.mxu0 0.0
    %2420 = vmatpush1.msra.mxu0 %v112
    %2421 = vmatprep.subr.mxu0 0.0
    %2422 = vmatpush1.msra.mxu0 %v113
    %2423 = vmatprep.subr.mxu0 0.0
    %2424 = vmatpush1.msra.mxu0 %v114
    %2425 = vmatprep.subr.mxu0 0.0
    %2426 = vmatpush1.msra.mxu0 %v115
    %2427 = vmatprep.subr.mxu0 0.0
    %2428 = vmatpush1.msra.mxu0 0.0
    %2429 = vmatprep.subr.mxu0 0.0
    %2430 = vmatpush1.msra.mxu0 0.0
    %2431 = vmatprep.subr.mxu0 0.0
    %2432 = vmatpush1.msra.mxu0 0.0
    %2433 = vmatprep.subr.mxu0 0.0
    %2434 = vmatpush1.msra.mxu0 0.0
    %2435 = vmatprep.subr.mxu0 0.0
    %2436 = vmatpush1.msra.mxu0 0.0
    %2437 = vmatprep.subr.mxu0 0.0
    %2438 = vmatpush1.msra.mxu0 0.0
    %2439 = vmatprep.subr.mxu0 0.0
    %2440 = vmatpush1.msra.mxu0 0.0
    %2441 = vmatprep.subr.mxu0 0.0
    %2442 = vmatpush1.msra.mxu0 0.0
    %2443 = vmatprep.subr.mxu0 0.0
    %2444 = vmatpush1.msra.mxu0 0.0
    %2445 = vmatprep.subr.mxu0 0.0
    %2446 = vmatpush1.msra.mxu0 0.0
    %2447 = vmatprep.subr.mxu0 0.0
    %2448 = vmatpush1.msra.mxu0 0.0
    %2449 = vmatprep.subr.mxu0 0.0
    %2450 = vmatpush1.msra.mxu0 0.0
    %2451 = vmatprep.subr.mxu0 0.0
    %2452 = vmatpush1.msra.mxu0 0.0
    %2453 = vmatprep.subr.mxu0 0.0
    %2454 = vmatpush1.msra.mxu0 0.0
    %2455 = vmatprep.subr.mxu0 0.0
    %2456 = vmatpush1.msra.mxu0 0.0
    %2457 = vmatprep.subr.mxu0 0.0
    %2458 = vmatpush1.msra.mxu0 0.0
    %2459 = vmatprep.subr.mxu0 0.0
    %2460 = vmatpush1.msra.mxu0 0.0
    %2461 = vmatprep.subr.mxu0 0.0
    %2462 = vmatpush1.msra.mxu0 0.0
    %2463 = vmatprep.subr.mxu0 0.0
    %2464 = vmatpush1.msra.mxu0 0.0
    %2465 = vmatprep.subr.mxu0 0.0
    %2466 = vmatpush1.msra.mxu0 0.0
    %2467 = vmatprep.subr.mxu0 0.0
    %2468 = vmatpush1.msra.mxu0 0.0
    %2469 = vmatprep.subr.mxu0 0.0
    %2470 = vmatpush1.msra.mxu0 0.0
    %2471 = vmatprep.subr.mxu0 0.0
    %2472 = vmatpush1.msra.mxu0 0.0
    %2473 = vmatprep.subr.mxu0 0.0
    %2474 = vmatpush1.msra.mxu0 0.0
    %2475 = vmatprep.subr.mxu0 0.0
    %2476 = vmatpush1.msra.mxu0 0.0
    %2477 = vmatprep.subr.mxu0 0.0
    %2478 = vmatpush1.msra.mxu0 0.0
    %2479 = vmatprep.subr.mxu0 0.0
    %2480 = vmatpush1.msra.mxu0 0.0
    %2481 = vmatprep.subr.mxu0 0.0
    %2482 = vmatpush1.msra.mxu0 0.0
    %2483 = vmatprep.mubr.f32.mxu0 0.0
    %2484 = vmatmul.mubr.f32.gmra.mrb[0].mxu0 %v2417
    %v2485 = vpop.f32.mrb[0].mxu0
    %v2486 = vadd.f32 0.0, %v2485
    %v2487 = vpop.f32.mrb[0].mxu0
    %2488 = vdwg.mxu0
    %v2490 = vrot.slane %v2486, 4
    %v2492 = vadd.f32 %v209, %v2490
    %v2493 = vxor.u32 %v2492, 2147483648
    %v2494 = vmul.f32 %v2493, 1.442695
    %v2495 = vpow.pop %v2494
    %v2496 = vadd.f32 %v2495, 1.0
    %v2497 = vrcp.pop %v2496
    %v2498 = vmul.f32 1.0, %v2497
    %v2499 = vtanh.pop %v2492
    %v2501 = vrot.slane %v2403, 4
    %2502 = vrot.lane.b32.xlu0 %v2501, 32
    %v2503 = vpop.permute.xlu0 %2502
    %v2505 = vmul.f32 %v2498, %v2503
    %2507 = vrot.lane.b32.xlu0 %v2499, 64
    %v2508 = vpop.permute.xlu0 %2507
    %v2510 = vmul.f32 %v2498, %v2508
    %2512 = vrot.lane.b32.xlu0 %v2510, 32
    %v2513 = vpop.permute.xlu0 %2512
    %v2515 = vadd.f32 %v2505, %v2513
    %v2516 = vtanh.pop %v2515
    %2518 = vrot.lane.b32.xlu0 %v2516, 64
    %v2519 = vpop.permute.xlu0 %2518
    %v2521 = vmul.f32 %v2498, %v2519
    %v2523 = vsel %vm237, %v2409, 0
    %2525 = vmatprep.subr.mxu0 0.0
    %2526 = vmatpush1.msra.mxu0 %v116
    %2527 = vmatprep.subr.mxu0 0.0
    %2528 = vmatpush1.msra.mxu0 %v117
    %2529 = vmatprep.subr.mxu0 0.0
    %2530 = vmatpush1.msra.mxu0 %v118
    %2531 = vmatprep.subr.mxu0 0.0
    %2532 = vmatpush1.msra.mxu0 %v119
    %2533 = vmatprep.subr.mxu0 0.0
    %2534 = vmatpush1.msra.mxu0 0.0
    %2535 = vmatprep.subr.mxu0 0.0
    %2536 = vmatpush1.msra.mxu0 0.0
    %2537 = vmatprep.subr.mxu0 0.0
    %2538 = vmatpush1.msra.mxu0 0.0
    %2539 = vmatprep.subr.mxu0 0.0
    %2540 = vmatpush1.msra.mxu0 0.0
    %2541 = vmatprep.subr.mxu0 0.0
    %2542 = vmatpush1.msra.mxu0 0.0
    %2543 = vmatprep.subr.mxu0 0.0
    %2544 = vmatpush1.msra.mxu0 0.0
    %2545 = vmatprep.subr.mxu0 0.0
    %2546 = vmatpush1.msra.mxu0 0.0
    %2547 = vmatprep.subr.mxu0 0.0
    %2548 = vmatpush1.msra.mxu0 0.0
    %2549 = vmatprep.subr.mxu0 0.0
    %2550 = vmatpush1.msra.mxu0 0.0
    %2551 = vmatprep.subr.mxu0 0.0
    %2552 = vmatpush1.msra.mxu0 0.0
    %2553 = vmatprep.subr.mxu0 0.0
    %2554 = vmatpush1.msra.mxu0 0.0
    %2555 = vmatprep.subr.mxu0 0.0
    %2556 = vmatpush1.msra.mxu0 0.0
    %2557 = vmatprep.subr.mxu0 0.0
    %2558 = vmatpush1.msra.mxu0 0.0
    %2559 = vmatprep.subr.mxu0 0.0
    %2560 = vmatpush1.msra.mxu0 0.0
    %2561 = vmatprep.subr.mxu0 0.0
    %2562 = vmatpush1.msra.mxu0 0.0
    %2563 = vmatprep.subr.mxu0 0.0
    %2564 = vmatpush1.msra.mxu0 0.0
    %2565 = vmatprep.subr.mxu0 0.0
    %2566 = vmatpush1.msra.mxu0 0.0
    %2567 = vmatprep.subr.mxu0 0.0
    %2568 = vmatpush1.msra.mxu0 0.0
    %2569 = vmatprep.subr.mxu0 0.0
    %2570 = vmatpush1.msra.mxu0 0.0
    %2571 = vmatprep.subr.mxu0 0.0
    %2572 = vmatpush1.msra.mxu0 0.0
    %2573 = vmatprep.subr.mxu0 0.0
    %2574 = vmatpush1.msra.mxu0 0.0
    %2575 = vmatprep.subr.mxu0 0.0
    %2576 = vmatpush1.msra.mxu0 0.0
    %2577 = vmatprep.subr.mxu0 0.0
    %2578 = vmatpush1.msra.mxu0 0.0
    %2579 = vmatprep.subr.mxu0 0.0
    %2580 = vmatpush1.msra.mxu0 0.0
    %2581 = vmatprep.subr.mxu0 0.0
    %2582 = vmatpush1.msra.mxu0 0.0
    %2583 = vmatprep.subr.mxu0 0.0
    %2584 = vmatpush1.msra.mxu0 0.0
    %2585 = vmatprep.subr.mxu0 0.0
    %2586 = vmatpush1.msra.mxu0 0.0
    %2587 = vmatprep.subr.mxu0 0.0
    %2588 = vmatpush1.msra.mxu0 0.0
    %2589 = vmatprep.mubr.f32.mxu0 0.0
    %2590 = vmatmul.mubr.f32.gmra.mrb[0].mxu0 %v2523
    %v2591 = vpop.f32.mrb[0].mxu0
    %v2592 = vadd.f32 0.0, %v2591
    %v2593 = vpop.f32.mrb[0].mxu0
    %2594 = vdwg.mxu0
    %v2596 = vrot.slane %v2521, 4
    %2597 = vrot.lane.b32.xlu0 %v2596, 32
    %v2598 = vpop.permute.xlu0 %2597
    %v2599 = vsel %vm237, %v2598, 0
    %2601 = vmatprep.subr.mxu0 0.0
    %2602 = vmatpush1.msra.mxu0 %v108
    %2603 = vmatprep.subr.mxu0 0.0
    %2604 = vmatpush1.msra.mxu0 %v109
    %2605 = vmatprep.subr.mxu0 0.0
    %2606 = vmatpush1.msra.mxu0 %v110
    %2607 = vmatprep.subr.mxu0 0.0
    %2608 = vmatpush1.msra.mxu0 %v111
    %2609 = vmatprep.subr.mxu0 0.0
    %2610 = vmatpush1.msra.mxu0 0.0
    %2611 = vmatprep.subr.mxu0 0.0
    %2612 = vmatpush1.msra.mxu0 0.0
    %2613 = vmatprep.subr.mxu0 0.0
    %2614 = vmatpush1.msra.mxu0 0.0
    %2615 = vmatprep.subr.mxu0 0.0
    %2616 = vmatpush1.msra.mxu0 0.0
    %2617 = vmatprep.subr.mxu0 0.0
    %2618 = vmatpush1.msra.mxu0 0.0
    %2619 = vmatprep.subr.mxu0 0.0
    %2620 = vmatpush1.msra.mxu0 0.0
    %2621 = vmatprep.subr.mxu0 0.0
    %2622 = vmatpush1.msra.mxu0 0.0
    %2623 = vmatprep.subr.mxu0 0.0
    %2624 = vmatpush1.msra.mxu0 0.0
    %2625 = vmatprep.subr.mxu0 0.0
    %2626 = vmatpush1.msra.mxu0 0.0
    %2627 = vmatprep.subr.mxu0 0.0
    %2628 = vmatpush1.msra.mxu0 0.0
    %2629 = vmatprep.subr.mxu0 0.0
    %2630 = vmatpush1.msra.mxu0 0.0
    %2631 = vmatprep.subr.mxu0 0.0
    %2632 = vmatpush1.msra.mxu0 0.0
    %2633 = vmatprep.subr.mxu0 0.0
    %2634 = vmatpush1.msra.mxu0 0.0
    %2635 = vmatprep.subr.mxu0 0.0
    %2636 = vmatpush1.msra.mxu0 0.0
    %2637 = vmatprep.subr.mxu0 0.0
    %2638 = vmatpush1.msra.mxu0 0.0
    %2639 = vmatprep.subr.mxu0 0.0
    %2640 = vmatpush1.msra.mxu0 0.0
    %2641 = vmatprep.subr.mxu0 0.0
    %2642 = vmatpush1.msra.mxu0 0.0
    %2643 = vmatprep.subr.mxu0 0.0
    %2644 = vmatpush1.msra.mxu0 0.0
    %2645 = vmatprep.subr.mxu0 0.0
    %2646 = vmatpush1.msra.mxu0 0.0
    %2647 = vmatprep.subr.mxu0 0.0
    %2648 = vmatpush1.msra.mxu0 0.0
    %2649 = vmatprep.subr.mxu0 0.0
    %2650 = vmatpush1.msra.mxu0 0.0
    %2651 = vmatprep.subr.mxu0 0.0
    %2652 = vmatpush1.msra.mxu0 0.0
    %2653 = vmatprep.subr.mxu0 0.0
    %2654 = vmatpush1.msra.mxu0 0.0
    %2655 = vmatprep.subr.mxu0 0.0
    %2656 = vmatpush1.msra.mxu0 0.0
    %2657 = vmatprep.subr.mxu0 0.0
    %2658 = vmatpush1.msra.mxu0 0.0
    %2659 = vmatprep.subr.mxu0 0.0
    %2660 = vmatpush1.msra.mxu0 0.0
    %2661 = vmatprep.subr.mxu0 0.0
    %2662 = vmatpush1.msra.mxu0 0.0
    %2663 = vmatprep.subr.mxu0 0.0
    %2664 = vmatpush1.msra.mxu0 0.0
    %2665 = vmatprep.mubr.f32.mxu0 0.0
    %2666 = vmatmul.mubr.f32.gmra.mrb[0].mxu0 %v2599
    %v2667 = vpop.f32.mrb[0].mxu0
    %v2668 = vadd.f32 %v2592, %v2667
    %v2669 = vpop.f32.mrb[0].mxu0
    %2670 = vdwg.mxu0
    %v2671 = vadd.f32 %v2668, %v492
    %v2672 = vxor.u32 %v2671, 2147483648
    %v2673 = vmul.f32 %v2672, 1.442695
    %v2674 = vpow.pop %v2673
    %v2675 = vadd.f32 %v2674, 1.0
    %v2676 = vrcp.pop %v2675
    %v2677 = vmul.f32 1.0, %v2676
    %v2678 = vtanh.pop %v2671
    %2680 = vrot.lane.b32.xlu0 %v2415, 32
    %v2681 = vpop.permute.xlu0 %2680
    %v2683 = vmul.f32 %v2677, %v2681
    %2685 = vrot.lane.b32.xlu0 %v2678, 64
    %v2686 = vpop.permute.xlu0 %2685
    %v2688 = vmul.f32 %v2677, %v2686
    %2690 = vrot.lane.b32.xlu0 %v2688, 32
    %v2691 = vpop.permute.xlu0 %2690
    %v2693 = vadd.f32 %v2683, %v2691
    %v2694 = vtanh.pop %v2693
    %2696 = vrot.lane.b32.xlu0 %v2694, 64
    %v2697 = vpop.permute.xlu0 %2696
    %v2699 = vmul.f32 %v2677, %v2697
    %s2700 = sadd.s32 %s2365, 1
    %p2701 = scmp.lt.s32.totalorder %s2700, 16
    %s2702 = scalar_select %p2701, %s2700, 16
    %2703 = vrot.lane.b32.xlu0 %v2521, 32
    %v2704 = vpop.permute.xlu0 %2703
    %s2706 = smul.u32 %s2702, 4
    %s2707 = scalar_lea.vmem [#allocation2], %s2706
    %2708 = vst.msk [vmem:[%s2707 - $0x4] sm:$0x10] %vm1251, %v2704
    %2710 = vrot.lane.b32.xlu0 %v2515, 96
    %v2711 = vpop.permute.xlu0 %2710
    %s2713 = scalar_lea.vmem [#allocation3], %s2706
    %2714 = vst.msk [vmem:[%s2713 - $0x4] sm:$0x10] %vm1251, %v2711
    %2716 = vrot.lane.b32.xlu0 %v2699, 32
    %v2717 = vpop.permute.xlu0 %2716
    %2719 = vst.msk [vmem:[%s2707 + $0x1] sm:$0x1] %vm525, %v2717
    %2721 = vrot.lane.b32.xlu0 %v2693, 96
    %v2722 = vpop.permute.xlu0 %2721
    %2724 = vst.msk [vmem:[%s2713 + $0x1] sm:$0x1] %vm525, %v2722
    %s2725 = sld [smem:[#allocation5 + $0x300]]
    %s2726 = sadd.s32 %s2365, %s2725
    %p2727 = scmp.gt.s32.totalorder %s2726, 0
    %s2728 = scalar_select %p2727, %s2726, 0
    %p2729 = scmp.lt.s32.totalorder %s2728, 16
    %s2730 = scalar_select %p2729, %s2728, 16
    %s2731 = smul.u32 %s2730, 4
    %s2732 = scalar_lea.vmem [#allocation2], %s2731
    %v2733 = vld [vmem:[%s2732 + $0x1] sm:$0x1]
    %2734 = vst.msk [vmem:[#allocation4 + $0x6] sm:$0x1] %vm525, %v2733
    %s2735 = sadd.s32 %s2385, 1
    %p2736 = scmp.lt.s32.totalorder %s2735, 16
    %s2737 = scalar_select %p2736, %s2735, 16
    %s2738 = smul.u32 %s2737, 4
    %s2739 = scalar_lea.vmem [#allocation2], %s2738
    %2740 = vst.msk [vmem:[%s2739 - $0x3] sm:$0x20] %vm1284, %v2704
    %s2741 = scalar_lea.vmem [#allocation3], %s2738
    %2742 = vst.msk [vmem:[%s2741 - $0x3] sm:$0x20] %vm1284, %v2711
    %2743 = vst.msk [vmem:[%s2739 + $0x2] sm:$0x2] %vm552, %v2717
    %2744 = vst.msk [vmem:[%s2741 + $0x2] sm:$0x2] %vm552, %v2722
    %s2745 = sld [smem:[#allocation5 + $0x301]]
    %s2746 = sadd.s32 %s2385, %s2745
    %p2747 = scmp.gt.s32.totalorder %s2746, 0
    %s2748 = scalar_select %p2747, %s2746, 0
    %p2749 = scmp.lt.s32.totalorder %s2748, 16
    %s2750 = scalar_select %p2749, %s2748, 16
    %s2751 = smul.u32 %s2750, 4
    %s2752 = scalar_lea.vmem [#allocation2], %s2751
    %v2753 = vld [vmem:[%s2752 + $0x3] sm:$0x1]
    %2754 = vst.msk [vmem:[#allocation4 + $0xe] sm:$0x1] %vm525, %v2753
    %v2755 = vld [vmem:[%s2732] sm:$0x1]
    %v2756 = vld [vmem:[%s2752 + $0x2] sm:$0x1]
    %v2758 = vrot.slane %v2756, 7
    %v2760 = vsel %vm217, %v2755, %v2758
    %s2761 = scalar_lea.vmem [#allocation3], %s2731
    %v2762 = vld [vmem:[%s2761] sm:$0x1]
    %s2763 = scalar_lea.vmem [#allocation3], %s2751
    %v2764 = vld [vmem:[%s2763 + $0x2] sm:$0x1]
    %v2766 = vrot.slane %v2764, 7
    %v2768 = vsel %vm217, %v2762, %v2766
    %v2769 = vld [vmem:[%s2732 + $0x1] sm:$0x1]
    %v2770 = vld [vmem:[%s2752 + $0x3] sm:$0x1]
    %v2772 = vrot.slane %v2770, 7
    %v2774 = vsel %vm217, %v2769, %v2772
    %v2775 = vld [vmem:[%s2761 + $0x1] sm:$0x1]
    %v2776 = vld [vmem:[%s2763 + $0x3] sm:$0x1]
    %v2778 = vrot.slane %v2776, 7
    %v2780 = vsel %vm217, %v2775, %v2778
    %v2782 = vsel %vm237, %v2760, 0
    %2784 = vmatprep.subr.mxu0 0.0
    %2785 = vmatpush1.msra.mxu0 %v112
    %2786 = vmatprep.subr.mxu0 0.0
    %2787 = vmatpush1.msra.mxu0 %v113
    %2788 = vmatprep.subr.mxu0 0.0
    %2789 = vmatpush1.msra.mxu0 %v114
    %2790 = vmatprep.subr.mxu0 0.0
    %2791 = vmatpush1.msra.mxu0 %v115
    %2792 = vmatprep.subr.mxu0 0.0
    %2793 = vmatpush1.msra.mxu0 0.0
    %2794 = vmatprep.subr.mxu0 0.0
    %2795 = vmatpush1.msra.mxu0 0.0
    %2796 = vmatprep.subr.mxu0 0.0
    %2797 = vmatpush1.msra.mxu0 0.0
    %2798 = vmatprep.subr.mxu0 0.0
    %2799 = vmatpush1.msra.mxu0 0.0
    %2800 = vmatprep.subr.mxu0 0.0
    %2801 = vmatpush1.msra.mxu0 0.0
    %2802 = vmatprep.subr.mxu0 0.0
    %2803 = vmatpush1.msra.mxu0 0.0
    %2804 = vmatprep.subr.mxu0 0.0
    %2805 = vmatpush1.msra.mxu0 0.0
    %2806 = vmatprep.subr.mxu0 0.0
    %2807 = vmatpush1.msra.mxu0 0.0
    %2808 = vmatprep.subr.mxu0 0.0
    %2809 = vmatpush1.msra.mxu0 0.0
    %2810 = vmatprep.subr.mxu0 0.0
    %2811 = vmatpush1.msra.mxu0 0.0
    %2812 = vmatprep.subr.mxu0 0.0
    %2813 = vmatpush1.msra.mxu0 0.0
    %2814 = vmatprep.subr.mxu0 0.0
    %2815 = vmatpush1.msra.mxu0 0.0
    %2816 = vmatprep.subr.mxu0 0.0
    %2817 = vmatpush1.msra.mxu0 0.0
    %2818 = vmatprep.subr.mxu0 0.0
    %2819 = vmatpush1.msra.mxu0 0.0
    %2820 = vmatprep.subr.mxu0 0.0
    %2821 = vmatpush1.msra.mxu0 0.0
    %2822 = vmatprep.subr.mxu0 0.0
    %2823 = vmatpush1.msra.mxu0 0.0
    %2824 = vmatprep.subr.mxu0 0.0
    %2825 = vmatpush1.msra.mxu0 0.0
    %2826 = vmatprep.subr.mxu0 0.0
    %2827 = vmatpush1.msra.mxu0 0.0
    %2828 = vmatprep.subr.mxu0 0.0
    %2829 = vmatpush1.msra.mxu0 0.0
    %2830 = vmatprep.subr.mxu0 0.0
    %2831 = vmatpush1.msra.mxu0 0.0
    %2832 = vmatprep.subr.mxu0 0.0
    %2833 = vmatpush1.msra.mxu0 0.0
    %2834 = vmatprep.subr.mxu0 0.0
    %2835 = vmatpush1.msra.mxu0 0.0
    %2836 = vmatprep.subr.mxu0 0.0
    %2837 = vmatpush1.msra.mxu0 0.0
    %2838 = vmatprep.subr.mxu0 0.0
    %2839 = vmatpush1.msra.mxu0 0.0
    %2840 = vmatprep.subr.mxu0 0.0
    %2841 = vmatpush1.msra.mxu0 0.0
    %2842 = vmatprep.subr.mxu0 0.0
    %2843 = vmatpush1.msra.mxu0 0.0
    %2844 = vmatprep.subr.mxu0 0.0
    %2845 = vmatpush1.msra.mxu0 0.0
    %2846 = vmatprep.subr.mxu0 0.0
    %2847 = vmatpush1.msra.mxu0 0.0
    %2848 = vmatprep.mubr.f32.mxu0 0.0
    %2849 = vmatmul.mubr.f32.gmra.mrb[0].mxu0 %v2782
    %v2850 = vpop.f32.mrb[0].mxu0
    %v2851 = vadd.f32 0.0, %v2850
    %v2852 = vpop.f32.mrb[0].mxu0
    %2853 = vdwg.mxu0
    %v2855 = vrot.slane %v2851, 2
    %v2857 = vadd.f32 %v209, %v2855
    %v2858 = vxor.u32 %v2857, 2147483648
    %v2859 = vmul.f32 %v2858, 1.442695
    %v2860 = vpow.pop %v2859
    %v2861 = vadd.f32 %v2860, 1.0
    %v2862 = vrcp.pop %v2861
    %v2863 = vmul.f32 1.0, %v2862
    %v2864 = vtanh.pop %v2857
    %v2866 = vrot.slane %v2768, 2
    %2867 = vrot.lane.b32.xlu0 %v2866, 32
    %v2868 = vpop.permute.xlu0 %2867
    %v2870 = vmul.f32 %v2863, %v2868
    %2872 = vrot.lane.b32.xlu0 %v2864, 64
    %v2873 = vpop.permute.xlu0 %2872
    %v2875 = vmul.f32 %v2863, %v2873
    %2877 = vrot.lane.b32.xlu0 %v2875, 32
    %v2878 = vpop.permute.xlu0 %2877
    %v2880 = vadd.f32 %v2870, %v2878
    %v2881 = vtanh.pop %v2880
    %2883 = vrot.lane.b32.xlu0 %v2881, 64
    %v2884 = vpop.permute.xlu0 %2883
    %v2886 = vmul.f32 %v2863, %v2884
    %v2888 = vsel %vm237, %v2774, 0
    %2890 = vmatprep.subr.mxu0 0.0
    %2891 = vmatpush1.msra.mxu0 %v116
    %2892 = vmatprep.subr.mxu0 0.0
    %2893 = vmatpush1.msra.mxu0 %v117
    %2894 = vmatprep.subr.mxu0 0.0
    %2895 = vmatpush1.msra.mxu0 %v118
    %2896 = vmatprep.subr.mxu0 0.0
    %2897 = vmatpush1.msra.mxu0 %v119
    %2898 = vmatprep.subr.mxu0 0.0
    %2899 = vmatpush1.msra.mxu0 0.0
    %2900 = vmatprep.subr.mxu0 0.0
    %2901 = vmatpush1.msra.mxu0 0.0
    %2902 = vmatprep.subr.mxu0 0.0
    %2903 = vmatpush1.msra.mxu0 0.0
    %2904 = vmatprep.subr.mxu0 0.0
    %2905 = vmatpush1.msra.mxu0 0.0
    %2906 = vmatprep.subr.mxu0 0.0
    %2907 = vmatpush1.msra.mxu0 0.0
    %2908 = vmatprep.subr.mxu0 0.0
    %2909 = vmatpush1.msra.mxu0 0.0
    %2910 = vmatprep.subr.mxu0 0.0
    %2911 = vmatpush1.msra.mxu0 0.0
    %2912 = vmatprep.subr.mxu0 0.0
    %2913 = vmatpush1.msra.mxu0 0.0
    %2914 = vmatprep.subr.mxu0 0.0
    %2915 = vmatpush1.msra.mxu0 0.0
    %2916 = vmatprep.subr.mxu0 0.0
    %2917 = vmatpush1.msra.mxu0 0.0
    %2918 = vmatprep.subr.mxu0 0.0
    %2919 = vmatpush1.msra.mxu0 0.0
    %2920 = vmatprep.subr.mxu0 0.0
    %2921 = vmatpush1.msra.mxu0 0.0
    %2922 = vmatprep.subr.mxu0 0.0
    %2923 = vmatpush1.msra.mxu0 0.0
    %2924 = vmatprep.subr.mxu0 0.0
    %2925 = vmatpush1.msra.mxu0 0.0
    %2926 = vmatprep.subr.mxu0 0.0
    %2927 = vmatpush1.msra.mxu0 0.0
    %2928 = vmatprep.subr.mxu0 0.0
    %2929 = vmatpush1.msra.mxu0 0.0
    %2930 = vmatprep.subr.mxu0 0.0
    %2931 = vmatpush1.msra.mxu0 0.0
    %2932 = vmatprep.subr.mxu0 0.0
    %2933 = vmatpush1.msra.mxu0 0.0
    %2934 = vmatprep.subr.mxu0 0.0
    %2935 = vmatpush1.msra.mxu0 0.0
    %2936 = vmatprep.subr.mxu0 0.0
    %2937 = vmatpush1.msra.mxu0 0.0
    %2938 = vmatprep.subr.mxu0 0.0
    %2939 = vmatpush1.msra.mxu0 0.0
    %2940 = vmatprep.subr.mxu0 0.0
    %2941 = vmatpush1.msra.mxu0 0.0
    %2942 = vmatprep.subr.mxu0 0.0
    %2943 = vmatpush1.msra.mxu0 0.0
    %2944 = vmatprep.subr.mxu0 0.0
    %2945 = vmatpush1.msra.mxu0 0.0
    %2946 = vmatprep.subr.mxu0 0.0
    %2947 = vmatpush1.msra.mxu0 0.0
    %2948 = vmatprep.subr.mxu0 0.0
    %2949 = vmatpush1.msra.mxu0 0.0
    %2950 = vmatprep.subr.mxu0 0.0
    %2951 = vmatpush1.msra.mxu0 0.0
    %2952 = vmatprep.subr.mxu0 0.0
    %2953 = vmatpush1.msra.mxu0 0.0
    %2954 = vmatprep.mubr.f32.mxu0 0.0
    %2955 = vmatmul.mubr.f32.gmra.mrb[0].mxu0 %v2888
    %v2956 = vpop.f32.mrb[0].mxu0
    %v2957 = vadd.f32 0.0, %v2956
    %v2958 = vpop.f32.mrb[0].mxu0
    %2959 = vdwg.mxu0
    %v2961 = vrot.slane %v2886, 6
    %2962 = vrot.lane.b32.xlu0 %v2961, 32
    %v2963 = vpop.permute.xlu0 %2962
    %v2964 = vsel %vm237, %v2963, 0
    %2966 = vmatprep.subr.mxu0 0.0
    %2967 = vmatpush1.msra.mxu0 %v108
    %2968 = vmatprep.subr.mxu0 0.0
    %2969 = vmatpush1.msra.mxu0 %v109
    %2970 = vmatprep.subr.mxu0 0.0
    %2971 = vmatpush1.msra.mxu0 %v110
    %2972 = vmatprep.subr.mxu0 0.0
    %2973 = vmatpush1.msra.mxu0 %v111
    %2974 = vmatprep.subr.mxu0 0.0
    %2975 = vmatpush1.msra.mxu0 0.0
    %2976 = vmatprep.subr.mxu0 0.0
    %2977 = vmatpush1.msra.mxu0 0.0
    %2978 = vmatprep.subr.mxu0 0.0
    %2979 = vmatpush1.msra.mxu0 0.0
    %2980 = vmatprep.subr.mxu0 0.0
    %2981 = vmatpush1.msra.mxu0 0.0
    %2982 = vmatprep.subr.mxu0 0.0
    %2983 = vmatpush1.msra.mxu0 0.0
    %2984 = vmatprep.subr.mxu0 0.0
    %2985 = vmatpush1.msra.mxu0 0.0
    %2986 = vmatprep.subr.mxu0 0.0
    %2987 = vmatpush1.msra.mxu0 0.0
    %2988 = vmatprep.subr.mxu0 0.0
    %2989 = vmatpush1.msra.mxu0 0.0
    %2990 = vmatprep.subr.mxu0 0.0
    %2991 = vmatpush1.msra.mxu0 0.0
    %2992 = vmatprep.subr.mxu0 0.0
    %2993 = vmatpush1.msra.mxu0 0.0
    %2994 = vmatprep.subr.mxu0 0.0
    %2995 = vmatpush1.msra.mxu0 0.0
    %2996 = vmatprep.subr.mxu0 0.0
    %2997 = vmatpush1.msra.mxu0 0.0
    %2998 = vmatprep.subr.mxu0 0.0
    %2999 = vmatpush1.msra.mxu0 0.0
    %3000 = vmatprep.subr.mxu0 0.0
    %3001 = vmatpush1.msra.mxu0 0.0
    %3002 = vmatprep.subr.mxu0 0.0
    %3003 = vmatpush1.msra.mxu0 0.0
    %3004 = vmatprep.subr.mxu0 0.0
    %3005 = vmatpush1.msra.mxu0 0.0
    %3006 = vmatprep.subr.mxu0 0.0
    %3007 = vmatpush1.msra.mxu0 0.0
    %3008 = vmatprep.subr.mxu0 0.0
    %3009 = vmatpush1.msra.mxu0 0.0
    %3010 = vmatprep.subr.mxu0 0.0
    %3011 = vmatpush1.msra.mxu0 0.0
    %3012 = vmatprep.subr.mxu0 0.0
    %3013 = vmatpush1.msra.mxu0 0.0
    %3014 = vmatprep.subr.mxu0 0.0
    %3015 = vmatpush1.msra.mxu0 0.0
    %3016 = vmatprep.subr.mxu0 0.0
    %3017 = vmatpush1.msra.mxu0 0.0
    %3018 = vmatprep.subr.mxu0 0.0
    %3019 = vmatpush1.msra.mxu0 0.0
    %3020 = vmatprep.subr.mxu0 0.0
    %3021 = vmatpush1.msra.mxu0 0.0
    %3022 = vmatprep.subr.mxu0 0.0
    %3023 = vmatpush1.msra.mxu0 0.0
    %3024 = vmatprep.subr.mxu0 0.0
    %3025 = vmatpush1.msra.mxu0 0.0
    %3026 = vmatprep.subr.mxu0 0.0
    %3027 = vmatpush1.msra.mxu0 0.0
    %3028 = vmatprep.subr.mxu0 0.0
    %3029 = vmatpush1.msra.mxu0 0.0
    %3030 = vmatprep.mubr.f32.mxu0 0.0
    %3031 = vmatmul.mubr.f32.gmra.mrb[0].mxu0 %v2964
    %v3032 = vpop.f32.mrb[0].mxu0
    %v3033 = vadd.f32 %v2957, %v3032
    %v3034 = vpop.f32.mrb[0].mxu0
    %3035 = vdwg.mxu0
    %v3036 = vadd.f32 %v3033, %v492
    %v3037 = vxor.u32 %v3036, 2147483648
    %v3038 = vmul.f32 %v3037, 1.442695
    %v3039 = vpow.pop %v3038
    %v3040 = vadd.f32 %v3039, 1.0
    %v3041 = vrcp.pop %v3040
    %v3042 = vmul.f32 1.0, %v3041
    %v3043 = vtanh.pop %v3036
    %3045 = vrot.lane.b32.xlu0 %v2780, 32
    %v3046 = vpop.permute.xlu0 %3045
    %v3048 = vmul.f32 %v3042, %v3046
    %3050 = vrot.lane.b32.xlu0 %v3043, 64
    %v3051 = vpop.permute.xlu0 %3050
    %v3053 = vmul.f32 %v3042, %v3051
    %3055 = vrot.lane.b32.xlu0 %v3053, 32
    %v3056 = vpop.permute.xlu0 %3055
    %v3058 = vadd.f32 %v3048, %v3056
    %v3059 = vtanh.pop %v3058
    %3061 = vrot.lane.b32.xlu0 %v3059, 64
    %v3062 = vpop.permute.xlu0 %3061
    %v3064 = vmul.f32 %v3042, %v3062
    %s3065 = sadd.s32 %s2730, 1
    %p3066 = scmp.lt.s32.totalorder %s3065, 16
    %s3067 = scalar_select %p3066, %s3065, 16
    %3068 = vrot.lane.b32.xlu0 %v2886, 32
    %v3069 = vpop.permute.xlu0 %3068
    %s3071 = smul.u32 %s3067, 4
    %s3072 = scalar_lea.vmem [#allocation2], %s3071
    %3073 = vst.msk [vmem:[%s3072 - $0x6] sm:$0x40] %vm1618, %v3069
    %3075 = vrot.lane.b32.xlu0 %v2880, 96
    %v3076 = vpop.permute.xlu0 %3075
    %s3078 = scalar_lea.vmem [#allocation3], %s3071
    %3079 = vst.msk [vmem:[%s3078 - $0x6] sm:$0x40] %vm1618, %v3076
    %3081 = vrot.lane.b32.xlu0 %v3064, 32
    %v3082 = vpop.permute.xlu0 %3081
    %3084 = vst.msk [vmem:[%s3072 + $0x1] sm:$0x1] %vm525, %v3082
    %3086 = vrot.lane.b32.xlu0 %v3058, 96
    %v3087 = vpop.permute.xlu0 %3086
    %3089 = vst.msk [vmem:[%s3078 + $0x1] sm:$0x1] %vm525, %v3087
    %s3090 = sld [smem:[#allocation5 + $0x380]]
    %s3091 = sadd.s32 %s2730, %s3090
    %p3092 = scmp.gt.s32.totalorder %s3091, 0
    %s3093 = scalar_select %p3092, %s3091, 0
    %p3094 = scmp.lt.s32.totalorder %s3093, 16
    %s3095 = scalar_select %p3094, %s3093, 16
    %s3096 = smul.u32 %s3095, 4
    %s3097 = scalar_lea.vmem [#allocation2], %s3096
    %v3098 = vld [vmem:[%s3097 + $0x1] sm:$0x1]
    %3099 = vst.msk [vmem:[#allocation4 + $0x7] sm:$0x1] %vm525, %v3098
    %s3100 = sadd.s32 %s2750, 1
    %p3101 = scmp.lt.s32.totalorder %s3100, 16
    %s3102 = scalar_select %p3101, %s3100, 16
    %s3103 = smul.u32 %s3102, 4
    %s3104 = scalar_lea.vmem [#allocation2], %s3103
    %3105 = vst.msk [vmem:[%s3104 - $0x5] sm:$0x80] %vm1651, %v3069
    %s3106 = scalar_lea.vmem [#allocation3], %s3103
    %3107 = vst.msk [vmem:[%s3106 - $0x5] sm:$0x80] %vm1651, %v3076
    %3108 = vst.msk [vmem:[%s3104 + $0x2] sm:$0x2] %vm552, %v3082
    %3109 = vst.msk [vmem:[%s3106 + $0x2] sm:$0x2] %vm552, %v3087
    %s3110 = sld [smem:[#allocation5 + $0x381]]
    %s3111 = sadd.s32 %s2750, %s3110
    %p3112 = scmp.gt.s32.totalorder %s3111, 0
    %s3113 = scalar_select %p3112, %s3111, 0
    %p3114 = scmp.lt.s32.totalorder %s3113, 16
    %s3115 = scalar_select %p3114, %s3113, 16
    %s3116 = smul.u32 %s3115, 4
    %s3117 = scalar_lea.vmem [#allocation2], %s3116
    %v3118 = vld [vmem:[%s3117 + $0x3] sm:$0x1]
    %3119 = vst.msk [vmem:[#allocation4 + $0xf] sm:$0x1] %vm525, %v3118
    %v3120 = vld [vmem:[#allocation4] sm:$0xff]
    %v3121 = vld [vmem:[#allocation4 + $0x8] sm:$0xff]
    %v3122 = vld [vmem:[%s8] sm:$0xff]
    %v3123 = vld [vmem:[%s8 + $0x8] sm:$0xff]
    %v3124 = vld [vmem:[%s8 + $0x10] sm:$0xff]
    %v3125 = vld [vmem:[%s8 + $0x18] sm:$0xff]
    %v3126 = vld [vmem:[%s9] sm:$0x1]
    %v3128 = vlaneseq
    %v3129 = vshrl.u32 %v3128, 7
    %v3130 = vsub.s32 0, %v3129
    %v3131 = vrot.slane %v3126, %v3130
    %v3134 = vsel %vm237, %v3120, 0
    %v3137 = vsel %vm237, %v3121, 0
    %3139 = vmatprep.subr.mxu0 0.0
    %3140 = vmatpush1.msra.mxu0 %v3122
    %3141 = vmatprep.subr.mxu0 0.0
    %3142 = vmatpush1.msra.mxu0 %v3123
    %3143 = vmatprep.subr.mxu0 0.0
    %3144 = vmatpush1.msra.mxu0 %v3124
    %3145 = vmatprep.subr.mxu0 0.0
    %3146 = vmatpush1.msra.mxu0 %v3125
    %3147 = vmatprep.subr.mxu0 0.0
    %3148 = vmatpush1.msra.mxu0 0.0
    %3149 = vmatprep.subr.mxu0 0.0
    %3150 = vmatpush1.msra.mxu0 0.0
    %3151 = vmatprep.subr.mxu0 0.0
    %3152 = vmatpush1.msra.mxu0 0.0
    %3153 = vmatprep.subr.mxu0 0.0
    %3154 = vmatpush1.msra.mxu0 0.0
    %3155 = vmatprep.subr.mxu0 0.0
    %3156 = vmatpush1.msra.mxu0 0.0
    %3157 = vmatprep.subr.mxu0 0.0
    %3158 = vmatpush1.msra.mxu0 0.0
    %3159 = vmatprep.subr.mxu0 0.0
    %3160 = vmatpush1.msra.mxu0 0.0
    %3161 = vmatprep.subr.mxu0 0.0
    %3162 = vmatpush1.msra.mxu0 0.0
    %3163 = vmatprep.subr.mxu0 0.0
    %3164 = vmatpush1.msra.mxu0 0.0
    %3165 = vmatprep.subr.mxu0 0.0
    %3166 = vmatpush1.msra.mxu0 0.0
    %3167 = vmatprep.subr.mxu0 0.0
    %3168 = vmatpush1.msra.mxu0 0.0
    %3169 = vmatprep.subr.mxu0 0.0
    %3170 = vmatpush1.msra.mxu0 0.0
    %3171 = vmatprep.subr.mxu0 0.0
    %3172 = vmatpush1.msra.mxu0 0.0
    %3173 = vmatprep.subr.mxu0 0.0
    %3174 = vmatpush1.msra.mxu0 0.0
    %3175 = vmatprep.subr.mxu0 0.0
    %3176 = vmatpush1.msra.mxu0 0.0
    %3177 = vmatprep.subr.mxu0 0.0
    %3178 = vmatpush1.msra.mxu0 0.0
    %3179 = vmatprep.subr.mxu0 0.0
    %3180 = vmatpush1.msra.mxu0 0.0
    %3181 = vmatprep.subr.mxu0 0.0
    %3182 = vmatpush1.msra.mxu0 0.0
    %3183 = vmatprep.subr.mxu0 0.0
    %3184 = vmatpush1.msra.mxu0 0.0
    %3185 = vmatprep.subr.mxu0 0.0
    %3186 = vmatpush1.msra.mxu0 0.0
    %3187 = vmatprep.subr.mxu0 0.0
    %3188 = vmatpush1.msra.mxu0 0.0
    %3189 = vmatprep.subr.mxu0 0.0
    %3190 = vmatpush1.msra.mxu0 0.0
    %3191 = vmatprep.subr.mxu0 0.0
    %3192 = vmatpush1.msra.mxu0 0.0
    %3193 = vmatprep.subr.mxu0 0.0
    %3194 = vmatpush1.msra.mxu0 0.0
    %3195 = vmatprep.subr.mxu0 0.0
    %3196 = vmatpush1.msra.mxu0 0.0
    %3197 = vmatprep.subr.mxu0 0.0
    %3198 = vmatpush1.msra.mxu0 0.0
    %3199 = vmatprep.subr.mxu0 0.0
    %3200 = vmatpush1.msra.mxu0 0.0
    %3201 = vmatprep.subr.mxu0 0.0
    %3202 = vmatpush1.msra.mxu0 0.0
    %3203 = vmatprep.mubr.f32.mxu0 0.0
    %3204 = vmatmul.mubr.f32.gmra.mrb[0].mxu0 %v3134
    %v3205 = vpop.f32.mrb[0].mxu0
    %v3206 = vadd.f32 %v3131, %v3205
    %v3207 = vpop.f32.mrb[0].mxu0
    %3208 = vmatprep.mubr.f32.mxu0 0.0
    %3209 = vmatmul.mubr.f32.gmra.mrb[0].mxu0 %v3137
    %v3210 = vpop.f32.mrb[0].mxu0
    %v3211 = vadd.f32 %v3131, %v3210
    %v3212 = vpop.f32.mrb[0].mxu0
    %3213 = vdwg.mxu0
    %v3214 = vsel %vm130, %v3206, -inf
    %3215 = vmax.xlane.f32.xlu0 %v3214
    %v3216 = vpop.xlane.xlu0 %3215
    %v3217 = vsel %vm130, %v3211, -inf
    %3218 = vmax.xlane.f32.xlu0 %v3217
    %v3219 = vpop.xlane.xlu0 %3218
    %v3220 = vsub.f32 %v3206, %v3216
    %v3221 = vsub.f32 %v3211, %v3219
    %v3222 = vmul.f32 %v3220, 1.442695
    %v3223 = vpow.pop %v3222
    %v3224 = vmul.f32 %v3221, 1.442695
    %v3225 = vpow.pop %v3224
    %v3226 = vsel %vm130, %v3223, 0.0
    %3227 = vadd.xlane.f32.xlu0 %v3226
    %v3228 = vpop.xlane.xlu0 %3227
    %v3229 = vsel %vm130, %v3225, 0.0
    %3230 = vadd.xlane.f32.xlu0 %v3229
    %v3231 = vpop.xlane.xlu0 %3230
    %v3232 = vlog2.pop %v3228
    %v3233 = vmul.f32 %v3232, 0.6931472
    %v3234 = vlog2.pop %v3231
    %v3235 = vmul.f32 %v3234, 0.6931472
    %v3236 = vadd.f32 %v3216, %v3233
    %v3237 = vadd.f32 %v3219, %v3235
    %v3238 = vsub.f32 %v3206, %v3236
    %v3239 = vsub.f32 %v3211, %v3237
    %3240 = vst.msk [vmem:[#allocation8] sm:$0xff] %vm130, %v3238
    %3241 = vst.msk [vmem:[#allocation8 + $0x8] sm:$0xff] %vm130, %v3239
    // Predicated region
    $region54: #{batched_toy_stack_forward.1} parent=1 // pred_check
      _
    $region55: #{batched_toy_stack_forward.1} parent=1 // pred_check_branch
      %3243 = sbr.rel (0) target = $region57
    $region56: #{batched_toy_stack_forward.1} parent=1 // pred_region
      %s3245 = ssub.s32 256, 256
      %3246 = vsyncadd [#allocation6], %s3245
      %s3247 = sshll.u32 [#allocation8], 4
      %s3248 = int_to_ptr.vmem [resolvable:$true] %s3247
      %3253 = dma.vmem_to_hbm [thread:$0]  %s3248, 256, %s12, [#allocation6], 128, 128, 8
    $region57: #{batched_toy_stack_forward.1} parent=1 // pred_fallthru
      _
    // Predicated region
    $region58: #{batched_toy_stack_forward.1} parent=1 // pred_check
      _
    $region59: #{batched_toy_stack_forward.1} parent=1 // pred_check_branch
      %3255 = sbr.rel (0) target = $region61
    $region60: #{batched_toy_stack_forward.1} parent=1 // pred_region
      %3256 = dma.done [#allocation6], 256
    $region61: #{batched_toy_stack_forward.1} parent=1 // pred_fallthru
      _
    %3257 = vsyncpa [#allocation6], 1
    %3258 = vsyncpa [#allocation7], 1

</llo_original>
